<compile_context>
chip_gen: v7x
topology: tpu7x:2x2x1
jax: 0.10.0
libtpu: 0.0.40
codegen_flags: <defaults>
</compile_context>

<pallas_src>
import jax
import jax.numpy as jnp
from jax import lax
from jax.experimental import pallas as pl
from jax.experimental.pallas import tpu as pltpu

# ----------------------------- configuration (scaled-down ViT-L/16) -----------------------------
B = 2              # batch
C = 3              # input channels (RGB)
RES = 32           # resolution (H == W)
PATCH = 16         # patch size (as in vit_large_patch16)
D = 128            # embed dim (1024 in the real model) -- lane-dense
HEADS = 4          # num heads (16 in the real model)
DEPTH = 2          # num blocks (24 in the real model)
MLP = 4 * D        # mlp hidden
HD = D // HEADS    # head dim
NP = (RES // PATCH) ** 2     # number of patches
T = NP + 1                   # real tokens (cls + patches)
TPAD = 8                     # tokens padded to a sublane multiple (pad keys masked)
BT = B * TPAD
CPP = C * PATCH * PATCH      # flattened patch pixels (conv weight K dim)
EPS = 1e-6
WDTYPE = jnp.bfloat16        # matmul-operand dtype (MXU is a bf16 engine on v5e/v6e/v7x)
NEG_INF = -1e30


# --------------------------------------- shared helpers -----------------------------------------

def _ln(x, g, b, eps):
    """LayerNorm over last axis; all operands f32."""
    mu = jnp.mean(x, axis=-1, keepdims=True)
    xc = x - mu
    var = jnp.mean(xc * xc, axis=-1, keepdims=True)
    return xc * lax.rsqrt(var + eps) * g + b


# ------------------------------------ fused backbone kernel -------------------------------------

def _backbone_kernel(
        patches_ref, patch_w_ref, tok_init_ref, norm_g_ref, norm_b_ref,
        ln1_g_ref, ln1_b_ref, qkv_w_ref, qkv_b_ref, proj_w_ref, proj_b_ref,
        ln2_g_ref, ln2_b_ref, fc1_w_ref, fc1_b_ref, fc2_w_ref, fc2_b_ref,
        out_ref, tok_ref):
    """One grid step == one transformer block over the whole (padded) batch.

    The [B, TPAD, D] token slab lives in VMEM scratch and carries across the depth axis.
    depth==0 additionally runs the patch-embed matmul + cls/pos fold; depth==DEPTH-1
    additionally runs the final LayerNorm on the cls rows and writes the summary.
    """
    layer = pl.program_id(0)

    # ---- depth == 0: patch-embed (stride-16 conv as matmul) + cls/pos/bias fold ----
    @pl.when(layer == 0)
    def _init_tokens():
        emb = jnp.dot(patches_ref[...], patch_w_ref[...],
                      preferred_element_type=jnp.float32)                 # [B*TPAD, D] f32
        # tok_init: row 0 = cls + pos[0]; rows 1..T-1 = patch_b + pos; pad rows = 0.
        tok_ref[...] = emb.reshape(B, TPAD, D) + tok_init_ref[...][None]

    x = tok_ref[...].reshape(BT, D)                                       # f32 [B*TPAD, D]

    # ---- attention: LN1 -> QKV -> per-head softmax-attn accumulated into proj -> residual ----
    y = _ln(x, ln1_g_ref[0], ln1_b_ref[0], EPS)
    qkv = jnp.dot(y.astype(WDTYPE), qkv_w_ref[0], preferred_element_type=jnp.float32)
    qkv = qkv + qkv_b_ref[0]                                              # [BT, 3D] f32

    # additive mask: padded key columns (tokens T..TPAD-1) never receive attention weight
    key_col = lax.broadcasted_iota(jnp.int32, (1, TPAD), 1)
    kmask = jnp.where(key_col < T, 0.0, NEG_INF)

    proj_w = proj_w_ref[0]
    scale = 1.0 / (HD ** 0.5)
    acc = x + proj_b_ref[0]            # residual + proj bias; head contributions added below
    # HEADS=4 static unroll; each head's context feeds the projection directly (no concat).
    # TODO(synk): at HEADS=16 batch heads through a dot_general batch dim instead of unrolling.
    for h in range(HEADS):
        lo = h * HD
        q = (qkv[:, lo:lo + HD] * scale).reshape(B, TPAD, HD)
        k = qkv[:, D + lo:D + lo + HD].reshape(B, TPAD, HD)
        v = qkv[:, 2 * D + lo:2 * D + lo + HD].reshape(B, TPAD, HD)
        s = lax.dot_general(q.astype(WDTYPE), k.astype(WDTYPE),
                            (((2,), (2,)), ((0,), (0,))),
                            preferred_element_type=jnp.float32)           # [B, TPAD, TPAD]
        s = s + kmask
        s = s - jnp.max(s, axis=-1, keepdims=True)
        p = jnp.exp(s)
        p = p / jnp.sum(p, axis=-1, keepdims=True)     # exact divide on [B,TPAD,1] (cheap)
        ctx = lax.dot_general(p.astype(WDTYPE), v.astype(WDTYPE),
                              (((2,), (1,)), ((0,), (0,))),
                              preferred_element_type=jnp.float32)         # [B, TPAD, HD]
        acc = acc + jnp.dot(ctx.reshape(BT, HD).astype(WDTYPE),
                            proj_w[lo:lo + HD, :],
                            preferred_element_type=jnp.float32)
    x = acc                                                               # [BT, D] f32

    # ---- MLP: LN2 -> fc1 + GELU -> fc2 -> residual ----
    y = _ln(x, ln2_g_ref[0], ln2_b_ref[0], EPS)
    h1 = jnp.dot(y.astype(WDTYPE), fc1_w_ref[0], preferred_element_type=jnp.float32)
    # timm ViT uses exact-erf nn.GELU(); tanh approx keeps the lowering on the EUP.
    # TODO(synk): switch to exact erf GELU if bit-parity with the PyTorch reference is needed.
    h1 = jax.nn.gelu(h1 + fc1_b_ref[0], approximate=True)
    h2 = jnp.dot(h1.astype(WDTYPE), fc2_w_ref[0], preferred_element_type=jnp.float32)
    x = x + h2 + fc2_b_ref[0]

    tok_ref[...] = x.reshape(B, TPAD, D)

    # ---- depth == DEPTH-1: final LayerNorm on cls rows; summary = normed cls token ----
    @pl.when(layer == DEPTH - 1)
    def _write_summary():
        cls_out = x.reshape(B, TPAD, D)[:, 0:1, :].reshape(B, D)
        out_ref[...] = _ln(cls_out, norm_g_ref[...], norm_b_ref[...], EPS).astype(out_ref.dtype)


# --------------------------------------- pallas_call wrapper ------------------------------------

def _const_spec(shape):
    n = len(shape)
    return pl.BlockSpec(shape, lambda l, _n=n: (0,) * _n)


def _depth_spec(full_shape):
    block = (1,) + tuple(full_shape[1:])
    n = len(full_shape) - 1
    return pl.BlockSpec(block, lambda l, _n=n: (l,) + (0,) * _n)


def patchify(x):
    """x: [B, C, H, W] (NCHW) -> [B, NP, C*P*P], matching Conv2d(k=16,s=16) flatten order."""
    b, c, h, w = x.shape
    gh, gw = h // PATCH, w // PATCH
    x = x.reshape(b, c, gh, PATCH, gw, PATCH)
    x = jnp.transpose(x, (0, 2, 4, 1, 3, 5))           # [B, gh, gw, C, P, P]
    return x.reshape(b, gh * gw, c * PATCH * PATCH)


# ImageNet input conditioner (RADIO's InputConditioner) — tiny plain-JAX glue.
_IMAGENET_MEAN = jnp.array([0.485, 0.456, 0.406], jnp.float32).reshape(1, C, 1, 1)
_IMAGENET_STD = jnp.array([0.229, 0.224, 0.225], jnp.float32).reshape(1, C, 1, 1)


def cradio_v2_summary(params, x):
    """Forward pass. x: [B, C, RES, RES] NCHW. Returns summary: [B, D]."""
    x = (x.astype(jnp.float32) - _IMAGENET_MEAN) / _IMAGENET_STD

    # Patchify; pad rows 0 (cls slot) and T..TPAD-1 with zero pixels so the in-kernel
    # patch-embed matmul directly produces an (8,128)-aligned token slab.
    patches = patchify(x)                                              # [B, NP, CPP]
    patches_pad = jnp.concatenate(
        [jnp.zeros((B, 1, CPP), jnp.float32), patches,
         jnp.zeros((B, TPAD - T, CPP), jnp.float32)], axis=1)
    patches_pad = patches_pad.reshape(BT, CPP).astype(WDTYPE)

    # Additive token init (parameter-only preprocessing, [TPAD, D]):
    #   row 0 = cls + pos[0]; rows 1..T-1 = patch_b + pos[1..]; pad rows = 0.
    tok_init = jnp.concatenate(
        [params["cls"] + params["pos"][0:1, :],
         params["pos"][1:T, :] + params["patch_b"],
         jnp.zeros((TPAD - T, D), jnp.float32)], axis=0)

    blk = params["blocks"]

    per_layer_flops = (2 * BT * D * 3 * D + 2 * BT * D * D + 4 * BT * D * MLP
                       + 4 * B * HEADS * TPAD * TPAD * HD)
    flops = 2 * BT * CPP * D + DEPTH * per_layer_flops
    transcendentals = DEPTH * (B * HEADS * TPAD * TPAD + BT * MLP)
    bytes_accessed = (
        BT * CPP * 2 + CPP * D * 2 + TPAD * D * 4 + 2 * D * 4 + B * D * 4
        + DEPTH * ((3 * D * D + D * D + 2 * D * MLP) * 2
                   + (3 * D + D + MLP + D + 4 * D) * 4))

    grid_spec = pltpu.PrefetchScalarGridSpec(
        num_scalar_prefetch=0,
        grid=(DEPTH,),
        in_specs=[
            _const_spec((BT, CPP)),            # padded patch pixels (bf16)
            _const_spec((CPP, D)),             # patch-embed weight (bf16)
            _const_spec((TPAD, D)),            # cls/pos/bias token init (f32)
            _const_spec((1, D)),               # final norm gamma
            _const_spec((1, D)),               # final norm beta
            _depth_spec((DEPTH, 1, D)),        # ln1 gamma
            _depth_spec((DEPTH, 1, D)),        # ln1 beta
            _depth_spec((DEPTH, D, 3 * D)),    # qkv weight (bf16)
            _depth_spec((DEPTH, 1, 3 * D)),    # qkv bias
            _depth_spec((DEPTH, D, D)),        # proj weight (bf16)
            _depth_spec((DEPTH, 1, D)),        # proj bias
            _depth_spec((DEPTH, 1, D)),        # ln2 gamma
            _depth_spec((DEPTH, 1, D)),        # ln2 beta
            _depth_spec((DEPTH, D, MLP)),      # fc1 weight (bf16)
            _depth_spec((DEPTH, 1, MLP)),      # fc1 bias
            _depth_spec((DEPTH, MLP, D)),      # fc2 weight (bf16)
            _depth_spec((DEPTH, 1, D)),        # fc2 bias
        ],
        out_specs=pl.BlockSpec((B, D), lambda l: (0, 0)),
        scratch_shapes=[pltpu.VMEM((B, TPAD, D), jnp.float32)],   # token slab, carried over depth
    )

    return pl.pallas_call(
        _backbone_kernel,
        out_shape=jax.ShapeDtypeStruct((B, D), jnp.float32),
        grid_spec=grid_spec,
        compiler_params=pltpu.CompilerParams(dimension_semantics=("arbitrary",)),
        cost_estimate=pl.CostEstimate(flops=flops,
                                      transcendentals=transcendentals,
                                      bytes_accessed=bytes_accessed),
    )(patches_pad, params["patch_w"], tok_init,
      params["norm_g"], params["norm_b"],
      blk["ln1_g"], blk["ln1_b"], blk["qkv_w"], blk["qkv_b"],
      blk["proj_w"], blk["proj_b"], blk["ln2_g"], blk["ln2_b"],
      blk["fc1_w"], blk["fc1_b"], blk["fc2_w"], blk["fc2_b"])


# ------------------------------------- parameter initialization ---------------------------------

def init_params(key):
    ks = jax.random.split(key, 8)

    def nrm(k, shape, dtype=jnp.float32):
        return (0.02 * jax.random.normal(k, shape, jnp.float32)).astype(dtype)

    return {
        # patch-embed conv [D, C, P, P] flattened to matmul weight [C*P*P, D]
        "patch_w": nrm(ks[0], (CPP, D), WDTYPE),
        "patch_b": jnp.zeros((1, D), jnp.float32),
        "cls": nrm(ks[1], (1, D)),
        "pos": nrm(ks[2], (T, D)),
        "norm_g": jnp.ones((1, D), jnp.float32),
        "norm_b": jnp.zeros((1, D), jnp.float32),
        # per-block weights stacked along a leading DEPTH axis (streamed per grid step)
        "blocks": {
            "ln1_g": jnp.ones((DEPTH, 1, D), jnp.float32),
            "ln1_b": jnp.zeros((DEPTH, 1, D), jnp.float32),
            "qkv_w": nrm(ks[3], (DEPTH, D, 3 * D), WDTYPE),
            "qkv_b": jnp.zeros((DEPTH, 1, 3 * D), jnp.float32),
            "proj_w": nrm(ks[4], (DEPTH, D, D), WDTYPE),
            "proj_b": jnp.zeros((DEPTH, 1, D), jnp.float32),
            "ln2_g": jnp.ones((DEPTH, 1, D), jnp.float32),
            "ln2_b": jnp.zeros((DEPTH, 1, D), jnp.float32),
            "fc1_w": nrm(ks[5], (DEPTH, D, MLP), WDTYPE),
            "fc1_b": jnp.zeros((DEPTH, 1, MLP), jnp.float32),
            "fc2_w": nrm(ks[6], (DEPTH, MLP, D), WDTYPE),
            "fc2_b": jnp.zeros((DEPTH, 1, D), jnp.float32),
        },
    }


# ---------------------------------------------- main --------------------------------------------

if __name__ == "__main__":
    key = jax.random.PRNGKey(0)
    k_params, k_input = jax.random.split(key)
    params = init_params(k_params)
    x = jax.random.uniform(k_input, (B, C, RES, RES), dtype=jnp.float32)  # NCHW in [0,1)

    fwd = jax.jit(cradio_v2_summary)
    summary = jax.block_until_ready(fwd(params, x))

    assert summary.shape == (B, D), summary.shape
    assert bool(jnp.all(jnp.isfinite(summary)))
    print("KERNEL_OK")
</pallas_src>

<mosaic_0001>
module attributes {stable_mosaic.version = 11 : i64} {
  func.func @_backbone_kernel(%arg0: i32, %arg1: memref<16x768xbf16, #tpu.memory_space<vmem>>, %arg2: memref<768x128xbf16, #tpu.memory_space<vmem>>, %arg3: memref<8x128xf32, #tpu.memory_space<vmem>>, %arg4: memref<1x128xf32, #tpu.memory_space<vmem>>, %arg5: memref<1x128xf32, #tpu.memory_space<vmem>>, %arg6: memref<1x1x128xf32, #tpu.memory_space<vmem>>, %arg7: memref<1x1x128xf32, #tpu.memory_space<vmem>>, %arg8: memref<1x128x384xbf16, #tpu.memory_space<vmem>>, %arg9: memref<1x1x384xf32, #tpu.memory_space<vmem>>, %arg10: memref<1x128x128xbf16, #tpu.memory_space<vmem>>, %arg11: memref<1x1x128xf32, #tpu.memory_space<vmem>>, %arg12: memref<1x1x128xf32, #tpu.memory_space<vmem>>, %arg13: memref<1x1x128xf32, #tpu.memory_space<vmem>>, %arg14: memref<1x128x512xbf16, #tpu.memory_space<vmem>>, %arg15: memref<1x1x512xf32, #tpu.memory_space<vmem>>, %arg16: memref<1x512x128xbf16, #tpu.memory_space<vmem>>, %arg17: memref<1x1x128xf32, #tpu.memory_space<vmem>>, %arg18: memref<2x128xf32, #tpu.memory_space<vmem>>, %arg19: memref<2x8x128xf32, #tpu.memory_space<vmem>>) attributes {dimension_semantics = [#tpu.dimension_semantics<arbitrary>], iteration_bounds = array<i64: 2>, scalar_prefetch = 0 : i64, scratch_operands = 1 : i64, tpu.core_type = #tpu.core_type<tc>, window_params = [{pipeline_mode = #tpu.pipeline_mode<synchronous>, transform_indices = @transform_0, window_bounds = array<i64: 16, 768>}, {pipeline_mode = #tpu.pipeline_mode<synchronous>, transform_indices = @transform_1, window_bounds = array<i64: 768, 128>}, {pipeline_mode = #tpu.pipeline_mode<synchronous>, transform_indices = @transform_2, window_bounds = array<i64: 8, 128>}, {pipeline_mode = #tpu.pipeline_mode<synchronous>, transform_indices = @transform_3, window_bounds = array<i64: 1, 128>}, {pipeline_mode = #tpu.pipeline_mode<synchronous>, transform_indices = @transform_4, window_bounds = array<i64: 1, 128>}, {transform_indices = @transform_5, window_bounds = array<i64: 1, 1, 128>}, {transform_indices = @transform_6, window_bounds = array<i64: 1, 1, 128>}, {transform_indices = @transform_7, window_bounds = array<i64: 1, 128, 384>}, {transform_indices = @transform_8, window_bounds = array<i64: 1, 1, 384>}, {transform_indices = @transform_9, window_bounds = array<i64: 1, 128, 128>}, {transform_indices = @transform_10, window_bounds = array<i64: 1, 1, 128>}, {transform_indices = @transform_11, window_bounds = array<i64: 1, 1, 128>}, {transform_indices = @transform_12, window_bounds = array<i64: 1, 1, 128>}, {transform_indices = @transform_13, window_bounds = array<i64: 1, 128, 512>}, {transform_indices = @transform_14, window_bounds = array<i64: 1, 1, 512>}, {transform_indices = @transform_15, window_bounds = array<i64: 1, 512, 128>}, {transform_indices = @transform_16, window_bounds = array<i64: 1, 1, 128>}, {pipeline_mode = #tpu.pipeline_mode<synchronous>, transform_indices = @transform_17, window_bounds = array<i64: 2, 128>}]} {
    %c0_i32 = arith.constant 0 : i32
    %0 = arith.cmpi eq, %arg0, %c0_i32 : i32
    %1 = arith.extui %0 : i1 to i32
    %c0_i32_0 = arith.constant 0 : i32
    %2 = arith.cmpi ne, %1, %c0_i32_0 : i32
    scf.if %2 {
      %c0_85 = arith.constant 0 : index
      %c0_86 = arith.constant 0 : index
      %232 = vector.load %arg1[%c0_85, %c0_86] : memref<16x768xbf16, #tpu.memory_space<vmem>>, vector<16x768xbf16>
      %c0_87 = arith.constant 0 : index
      %c0_88 = arith.constant 0 : index
      %233 = vector.load %arg2[%c0_87, %c0_88] : memref<768x128xbf16, #tpu.memory_space<vmem>>, vector<768x128xbf16>
      %cst_89 = arith.constant dense<0.000000e+00> : vector<16x128xf32>
      %234 = tpu.matmul %232, %233, %cst_89 {dimension_numbers = #tpu.dot_dimension_numbers<[1], [0], [0], [1], [0, 0, 1, 1], [], []>} : vector<16x768xbf16>, vector<768x128xbf16>, vector<16x128xf32> -> vector<16x128xf32>
      %235 = vector.shape_cast %234 : vector<16x128xf32> to vector<2x8x128xf32>
      %c0_90 = arith.constant 0 : index
      %c0_91 = arith.constant 0 : index
      %236 = vector.load %arg3[%c0_90, %c0_91] : memref<8x128xf32, #tpu.memory_space<vmem>>, vector<8x128xf32>
      %237 = vector.shape_cast %236 : vector<8x128xf32> to vector<1x8x128xf32>
      %238 = vector.broadcast %237 : vector<1x8x128xf32> to vector<2x8x128xf32>
      %239 = arith.addf %235, %238 : vector<2x8x128xf32>
      %c0_92 = arith.constant 0 : index
      %c0_93 = arith.constant 0 : index
      %c0_94 = arith.constant 0 : index
      %240 = vector.load %arg19[%c0_92, %c0_93, %c0_94] : memref<2x8x128xf32, #tpu.memory_space<vmem>>, vector<2x8x128xf32>
      tpu.vector_store %arg19[%c0_92, %c0_93, %c0_94], %239 {strides = array<i32>} : memref<2x8x128xf32, #tpu.memory_space<vmem>>, vector<2x8x128xf32>,
    } else {
    }
    %c0 = arith.constant 0 : index
    %c0_1 = arith.constant 0 : index
    %c0_2 = arith.constant 0 : index
    %3 = vector.load %arg19[%c0, %c0_1, %c0_2] : memref<2x8x128xf32, #tpu.memory_space<vmem>>, vector<2x8x128xf32>
    %4 = vector.shape_cast %3 : vector<2x8x128xf32> to vector<16x128xf32>
    %c0_3 = arith.constant 0 : index
    %c0_4 = arith.constant 0 : index
    %c0_5 = arith.constant 0 : index
    %5 = vector.load %arg6[%c0_3, %c0_4, %c0_5] : memref<1x1x128xf32, #tpu.memory_space<vmem>>, vector<1x1x128xf32>
    %6 = vector.shape_cast %5 : vector<1x1x128xf32> to vector<1x128xf32>
    %c0_6 = arith.constant 0 : index
    %c0_7 = arith.constant 0 : index
    %c0_8 = arith.constant 0 : index
    %7 = vector.load %arg7[%c0_6, %c0_7, %c0_8] : memref<1x1x128xf32, #tpu.memory_space<vmem>>, vector<1x1x128xf32>
    %8 = vector.shape_cast %7 : vector<1x1x128xf32> to vector<1x128xf32>
    %cst = arith.constant dense<0.000000e+00> : vector<16xf32>
    %9 = vector.multi_reduction <add>, %4, %cst [1] : vector<16x128xf32> to vector<16xf32>
    %10 = vector.shape_cast %9 : vector<16xf32> to vector<16x1xf32>
    %cst_9 = arith.constant 1.280000e+02 : f32
    %11 = vector.broadcast %cst_9 : f32 to vector<16x1xf32>
    %12 = arith.divf %10, %11 : vector<16x1xf32>
    %13 = vector.broadcast %12 : vector<16x1xf32> to vector<16x128xf32>
    %14 = arith.subf %4, %13 : vector<16x128xf32>
    %15 = arith.mulf %14, %14 : vector<16x128xf32>
    %cst_10 = arith.constant dense<0.000000e+00> : vector<16xf32>
    %16 = vector.multi_reduction <add>, %15, %cst_10 [1] : vector<16x128xf32> to vector<16xf32>
    %17 = vector.shape_cast %16 : vector<16xf32> to vector<16x1xf32>
    %cst_11 = arith.constant 1.280000e+02 : f32
    %18 = vector.broadcast %cst_11 : f32 to vector<16x1xf32>
    %19 = arith.divf %17, %18 : vector<16x1xf32>
    %cst_12 = arith.constant 9.99999997E-7 : f32
    %20 = vector.broadcast %cst_12 : f32 to vector<16x1xf32>
    %21 = arith.addf %19, %20 : vector<16x1xf32>
    %22 = math.rsqrt %21 : vector<16x1xf32>
    %23 = vector.broadcast %22 : vector<16x1xf32> to vector<16x128xf32>
    %24 = arith.mulf %14, %23 : vector<16x128xf32>
    %25 = vector.broadcast %6 : vector<1x128xf32> to vector<16x128xf32>
    %26 = arith.mulf %24, %25 : vector<16x128xf32>
    %27 = vector.broadcast %8 : vector<1x128xf32> to vector<16x128xf32>
    %28 = arith.addf %26, %27 : vector<16x128xf32>
    %29 = arith.truncf %28 : vector<16x128xf32> to vector<16x128xbf16>
    %c0_13 = arith.constant 0 : index
    %c0_14 = arith.constant 0 : index
    %c0_15 = arith.constant 0 : index
    %30 = vector.load %arg8[%c0_13, %c0_14, %c0_15] : memref<1x128x384xbf16, #tpu.memory_space<vmem>>, vector<1x128x384xbf16>
    %31 = vector.shape_cast %30 : vector<1x128x384xbf16> to vector<128x384xbf16>
    %cst_16 = arith.constant dense<0.000000e+00> : vector<16x384xf32>
    %32 = tpu.matmul %29, %31, %cst_16 {dimension_numbers = #tpu.dot_dimension_numbers<[1], [0], [0], [1], [0, 0, 1, 1], [], []>} : vector<16x128xbf16>, vector<128x384xbf16>, vector<16x384xf32> -> vector<16x384xf32>
    %c0_17 = arith.constant 0 : index
    %c0_18 = arith.constant 0 : index
    %c0_19 = arith.constant 0 : index
    %33 = vector.load %arg9[%c0_17, %c0_18, %c0_19] : memref<1x1x384xf32, #tpu.memory_space<vmem>>, vector<1x1x384xf32>
    %34 = vector.shape_cast %33 : vector<1x1x384xf32> to vector<1x384xf32>
    %35 = vector.broadcast %34 : vector<1x384xf32> to vector<16x384xf32>
    %36 = arith.addf %32, %35 : vector<16x384xf32>
    %37 = tpu.iota {dimensions = array<i32: 1>} : vector<1x8xi32>
    %c5_i32 = arith.constant 5 : i32
    %38 = vector.broadcast %c5_i32 : i32 to vector<1x8xi32>
    %39 = arith.cmpi slt, %37, %38 : vector<1x8xi32>
    %cst_20 = arith.constant 0.000000e+00 : f32
    %cst_21 = arith.constant -1.000000e+30 : f32
    %40 = vector.broadcast %cst_20 : f32 to vector<1x8xf32>
    %41 = vector.broadcast %cst_21 : f32 to vector<1x8xf32>
    %42 = arith.select %39, %40, %41 : vector<1x8xi1>, vector<1x8xf32>
    %c0_22 = arith.constant 0 : index
    %c0_23 = arith.constant 0 : index
    %c0_24 = arith.constant 0 : index
    %43 = vector.load %arg10[%c0_22, %c0_23, %c0_24] : memref<1x128x128xbf16, #tpu.memory_space<vmem>>, vector<1x128x128xbf16>
    %44 = vector.shape_cast %43 : vector<1x128x128xbf16> to vector<128x128xbf16>
    %c0_25 = arith.constant 0 : index
    %c0_26 = arith.constant 0 : index
    %c0_27 = arith.constant 0 : index
    %45 = vector.load %arg11[%c0_25, %c0_26, %c0_27] : memref<1x1x128xf32, #tpu.memory_space<vmem>>, vector<1x1x128xf32>
    %46 = vector.shape_cast %45 : vector<1x1x128xf32> to vector<1x128xf32>
    %47 = vector.broadcast %46 : vector<1x128xf32> to vector<16x128xf32>
    %48 = arith.addf %4, %47 : vector<16x128xf32>
    %49 = vector.extract_strided_slice %36 {offsets = [0, 0], sizes = [16, 32], strides = [1, 1]} : vector<16x384xf32> to vector<16x32xf32>
    %cst_28 = arith.constant 0.176776692 : f32
    %50 = vector.broadcast %cst_28 : f32 to vector<16x32xf32>
    %51 = arith.mulf %49, %50 : vector<16x32xf32>
    %52 = vector.shape_cast %51 : vector<16x32xf32> to vector<2x8x32xf32>
    %53 = vector.extract_strided_slice %36 {offsets = [0, 128], sizes = [16, 32], strides = [1, 1]} : vector<16x384xf32> to vector<16x32xf32>
    %54 = vector.shape_cast %53 : vector<16x32xf32> to vector<2x8x32xf32>
    %55 = vector.extract_strided_slice %36 {offsets = [0, 256], sizes = [16, 32], strides = [1, 1]} : vector<16x384xf32> to vector<16x32xf32>
    %56 = vector.shape_cast %55 : vector<16x32xf32> to vector<2x8x32xf32>
    %57 = arith.truncf %52 : vector<2x8x32xf32> to vector<2x8x32xbf16>
    %58 = arith.truncf %54 : vector<2x8x32xf32> to vector<2x8x32xbf16>
    %cst_29 = arith.constant dense<0.000000e+00> : vector<2x8x8xf32>
    %59 = tpu.matmul %57, %58, %cst_29 {dimension_numbers = #tpu.dot_dimension_numbers<[2], [2], [1], [1], [0, 0, 0, 1, 1, 1], [0], [0]>} : vector<2x8x32xbf16>, vector<2x8x32xbf16>, vector<2x8x8xf32> -> vector<2x8x8xf32>
    %60 = vector.shape_cast %42 : vector<1x8xf32> to vector<1x1x8xf32>
    %61 = vector.broadcast %60 : vector<1x1x8xf32> to vector<2x8x8xf32>
    %62 = arith.addf %59, %61 : vector<2x8x8xf32>
    %cst_30 = arith.constant dense<0xFF800000> : vector<2x8xf32>
    %63 = vector.multi_reduction <maximumf>, %62, %cst_30 [2] : vector<2x8x8xf32> to vector<2x8xf32>
    %64 = vector.shape_cast %63 : vector<2x8xf32> to vector<2x8x1xf32>
    %65 = vector.broadcast %64 : vector<2x8x1xf32> to vector<2x8x8xf32>
    %66 = arith.subf %62, %65 : vector<2x8x8xf32>
    %67 = math.exp %66 : vector<2x8x8xf32>
    %cst_31 = arith.constant dense<0.000000e+00> : vector<2x8xf32>
    %68 = vector.multi_reduction <add>, %67, %cst_31 [2] : vector<2x8x8xf32> to vector<2x8xf32>
    %69 = vector.shape_cast %68 : vector<2x8xf32> to vector<2x8x1xf32>
    %70 = vector.broadcast %69 : vector<2x8x1xf32> to vector<2x8x8xf32>
    %71 = arith.divf %67, %70 : vector<2x8x8xf32>
    %72 = arith.truncf %71 : vector<2x8x8xf32> to vector<2x8x8xbf16>
    %73 = arith.truncf %56 : vector<2x8x32xf32> to vector<2x8x32xbf16>
    %cst_32 = arith.constant dense<0.000000e+00> : vector<2x8x32xf32>
    %74 = tpu.matmul %72, %73, %cst_32 {dimension_numbers = #tpu.dot_dimension_numbers<[2], [1], [1], [2], [0, 0, 0, 1, 1, 2], [0], [0]>} : vector<2x8x8xbf16>, vector<2x8x32xbf16>, vector<2x8x32xf32> -> vector<2x8x32xf32>
    %75 = vector.shape_cast %74 : vector<2x8x32xf32> to vector<16x32xf32>
    %76 = arith.truncf %75 : vector<16x32xf32> to vector<16x32xbf16>
    %77 = vector.extract_strided_slice %44 {offsets = [0, 0], sizes = [32, 128], strides = [1, 1]} : vector<128x128xbf16> to vector<32x128xbf16>
    %cst_33 = arith.constant dense<0.000000e+00> : vector<16x128xf32>
    %78 = tpu.matmul %76, %77, %cst_33 {dimension_numbers = #tpu.dot_dimension_numbers<[1], [0], [0], [1], [0, 0, 1, 1], [], []>} : vector<16x32xbf16>, vector<32x128xbf16>, vector<16x128xf32> -> vector<16x128xf32>
    %79 = arith.addf %48, %78 : vector<16x128xf32>
    %80 = vector.extract_strided_slice %36 {offsets = [0, 32], sizes = [16, 32], strides = [1, 1]} : vector<16x384xf32> to vector<16x32xf32>
    %cst_34 = arith.constant 0.176776692 : f32
    %81 = vector.broadcast %cst_34 : f32 to vector<16x32xf32>
    %82 = arith.mulf %80, %81 : vector<16x32xf32>
    %83 = vector.shape_cast %82 : vector<16x32xf32> to vector<2x8x32xf32>
    %84 = vector.extract_strided_slice %36 {offsets = [0, 160], sizes = [16, 32], strides = [1, 1]} : vector<16x384xf32> to vector<16x32xf32>
    %85 = vector.shape_cast %84 : vector<16x32xf32> to vector<2x8x32xf32>
    %86 = vector.extract_strided_slice %36 {offsets = [0, 288], sizes = [16, 32], strides = [1, 1]} : vector<16x384xf32> to vector<16x32xf32>
    %87 = vector.shape_cast %86 : vector<16x32xf32> to vector<2x8x32xf32>
    %88 = arith.truncf %83 : vector<2x8x32xf32> to vector<2x8x32xbf16>
    %89 = arith.truncf %85 : vector<2x8x32xf32> to vector<2x8x32xbf16>
    %cst_35 = arith.constant dense<0.000000e+00> : vector<2x8x8xf32>
    %90 = tpu.matmul %88, %89, %cst_35 {dimension_numbers = #tpu.dot_dimension_numbers<[2], [2], [1], [1], [0, 0, 0, 1, 1, 1], [0], [0]>} : vector<2x8x32xbf16>, vector<2x8x32xbf16>, vector<2x8x8xf32> -> vector<2x8x8xf32>
    %91 = vector.shape_cast %42 : vector<1x8xf32> to vector<1x1x8xf32>
    %92 = vector.broadcast %91 : vector<1x1x8xf32> to vector<2x8x8xf32>
    %93 = arith.addf %90, %92 : vector<2x8x8xf32>
    %cst_36 = arith.constant dense<0xFF800000> : vector<2x8xf32>
    %94 = vector.multi_reduction <maximumf>, %93, %cst_36 [2] : vector<2x8x8xf32> to vector<2x8xf32>
    %95 = vector.shape_cast %94 : vector<2x8xf32> to vector<2x8x1xf32>
    %96 = vector.broadcast %95 : vector<2x8x1xf32> to vector<2x8x8xf32>
    %97 = arith.subf %93, %96 : vector<2x8x8xf32>
    %98 = math.exp %97 : vector<2x8x8xf32>
    %cst_37 = arith.constant dense<0.000000e+00> : vector<2x8xf32>
    %99 = vector.multi_reduction <add>, %98, %cst_37 [2] : vector<2x8x8xf32> to vector<2x8xf32>
    %100 = vector.shape_cast %99 : vector<2x8xf32> to vector<2x8x1xf32>
    %101 = vector.broadcast %100 : vector<2x8x1xf32> to vector<2x8x8xf32>
    %102 = arith.divf %98, %101 : vector<2x8x8xf32>
    %103 = arith.truncf %102 : vector<2x8x8xf32> to vector<2x8x8xbf16>
    %104 = arith.truncf %87 : vector<2x8x32xf32> to vector<2x8x32xbf16>
    %cst_38 = arith.constant dense<0.000000e+00> : vector<2x8x32xf32>
    %105 = tpu.matmul %103, %104, %cst_38 {dimension_numbers = #tpu.dot_dimension_numbers<[2], [1], [1], [2], [0, 0, 0, 1, 1, 2], [0], [0]>} : vector<2x8x8xbf16>, vector<2x8x32xbf16>, vector<2x8x32xf32> -> vector<2x8x32xf32>
    %106 = vector.shape_cast %105 : vector<2x8x32xf32> to vector<16x32xf32>
    %107 = arith.truncf %106 : vector<16x32xf32> to vector<16x32xbf16>
    %108 = vector.extract_strided_slice %44 {offsets = [32, 0], sizes = [32, 128], strides = [1, 1]} : vector<128x128xbf16> to vector<32x128xbf16>
    %cst_39 = arith.constant dense<0.000000e+00> : vector<16x128xf32>
    %109 = tpu.matmul %107, %108, %cst_39 {dimension_numbers = #tpu.dot_dimension_numbers<[1], [0], [0], [1], [0, 0, 1, 1], [], []>} : vector<16x32xbf16>, vector<32x128xbf16>, vector<16x128xf32> -> vector<16x128xf32>
    %110 = arith.addf %79, %109 : vector<16x128xf32>
    %111 = vector.extract_strided_slice %36 {offsets = [0, 64], sizes = [16, 32], strides = [1, 1]} : vector<16x384xf32> to vector<16x32xf32>
    %cst_40 = arith.constant 0.176776692 : f32
    %112 = vector.broadcast %cst_40 : f32 to vector<16x32xf32>
    %113 = arith.mulf %111, %112 : vector<16x32xf32>
    %114 = vector.shape_cast %113 : vector<16x32xf32> to vector<2x8x32xf32>
    %115 = vector.extract_strided_slice %36 {offsets = [0, 192], sizes = [16, 32], strides = [1, 1]} : vector<16x384xf32> to vector<16x32xf32>
    %116 = vector.shape_cast %115 : vector<16x32xf32> to vector<2x8x32xf32>
    %117 = vector.extract_strided_slice %36 {offsets = [0, 320], sizes = [16, 32], strides = [1, 1]} : vector<16x384xf32> to vector<16x32xf32>
    %118 = vector.shape_cast %117 : vector<16x32xf32> to vector<2x8x32xf32>
    %119 = arith.truncf %114 : vector<2x8x32xf32> to vector<2x8x32xbf16>
    %120 = arith.truncf %116 : vector<2x8x32xf32> to vector<2x8x32xbf16>
    %cst_41 = arith.constant dense<0.000000e+00> : vector<2x8x8xf32>
    %121 = tpu.matmul %119, %120, %cst_41 {dimension_numbers = #tpu.dot_dimension_numbers<[2], [2], [1], [1], [0, 0, 0, 1, 1, 1], [0], [0]>} : vector<2x8x32xbf16>, vector<2x8x32xbf16>, vector<2x8x8xf32> -> vector<2x8x8xf32>
    %122 = vector.shape_cast %42 : vector<1x8xf32> to vector<1x1x8xf32>
    %123 = vector.broadcast %122 : vector<1x1x8xf32> to vector<2x8x8xf32>
    %124 = arith.addf %121, %123 : vector<2x8x8xf32>
    %cst_42 = arith.constant dense<0xFF800000> : vector<2x8xf32>
    %125 = vector.multi_reduction <maximumf>, %124, %cst_42 [2] : vector<2x8x8xf32> to vector<2x8xf32>
    %126 = vector.shape_cast %125 : vector<2x8xf32> to vector<2x8x1xf32>
    %127 = vector.broadcast %126 : vector<2x8x1xf32> to vector<2x8x8xf32>
    %128 = arith.subf %124, %127 : vector<2x8x8xf32>
    %129 = math.exp %128 : vector<2x8x8xf32>
    %cst_43 = arith.constant dense<0.000000e+00> : vector<2x8xf32>
    %130 = vector.multi_reduction <add>, %129, %cst_43 [2] : vector<2x8x8xf32> to vector<2x8xf32>
    %131 = vector.shape_cast %130 : vector<2x8xf32> to vector<2x8x1xf32>
    %132 = vector.broadcast %131 : vector<2x8x1xf32> to vector<2x8x8xf32>
    %133 = arith.divf %129, %132 : vector<2x8x8xf32>
    %134 = arith.truncf %133 : vector<2x8x8xf32> to vector<2x8x8xbf16>
    %135 = arith.truncf %118 : vector<2x8x32xf32> to vector<2x8x32xbf16>
    %cst_44 = arith.constant dense<0.000000e+00> : vector<2x8x32xf32>
    %136 = tpu.matmul %134, %135, %cst_44 {dimension_numbers = #tpu.dot_dimension_numbers<[2], [1], [1], [2], [0, 0, 0, 1, 1, 2], [0], [0]>} : vector<2x8x8xbf16>, vector<2x8x32xbf16>, vector<2x8x32xf32> -> vector<2x8x32xf32>
    %137 = vector.shape_cast %136 : vector<2x8x32xf32> to vector<16x32xf32>
    %138 = arith.truncf %137 : vector<16x32xf32> to vector<16x32xbf16>
    %139 = vector.extract_strided_slice %44 {offsets = [64, 0], sizes = [32, 128], strides = [1, 1]} : vector<128x128xbf16> to vector<32x128xbf16>
    %cst_45 = arith.constant dense<0.000000e+00> : vector<16x128xf32>
    %140 = tpu.matmul %138, %139, %cst_45 {dimension_numbers = #tpu.dot_dimension_numbers<[1], [0], [0], [1], [0, 0, 1, 1], [], []>} : vector<16x32xbf16>, vector<32x128xbf16>, vector<16x128xf32> -> vector<16x128xf32>
    %141 = arith.addf %110, %140 : vector<16x128xf32>
    %142 = vector.extract_strided_slice %36 {offsets = [0, 96], sizes = [16, 32], strides = [1, 1]} : vector<16x384xf32> to vector<16x32xf32>
    %cst_46 = arith.constant 0.176776692 : f32
    %143 = vector.broadcast %cst_46 : f32 to vector<16x32xf32>
    %144 = arith.mulf %142, %143 : vector<16x32xf32>
    %145 = vector.shape_cast %144 : vector<16x32xf32> to vector<2x8x32xf32>
    %146 = vector.extract_strided_slice %36 {offsets = [0, 224], sizes = [16, 32], strides = [1, 1]} : vector<16x384xf32> to vector<16x32xf32>
    %147 = vector.shape_cast %146 : vector<16x32xf32> to vector<2x8x32xf32>
    %148 = vector.extract_strided_slice %36 {offsets = [0, 352], sizes = [16, 32], strides = [1, 1]} : vector<16x384xf32> to vector<16x32xf32>
    %149 = vector.shape_cast %148 : vector<16x32xf32> to vector<2x8x32xf32>
    %150 = arith.truncf %145 : vector<2x8x32xf32> to vector<2x8x32xbf16>
    %151 = arith.truncf %147 : vector<2x8x32xf32> to vector<2x8x32xbf16>
    %cst_47 = arith.constant dense<0.000000e+00> : vector<2x8x8xf32>
    %152 = tpu.matmul %150, %151, %cst_47 {dimension_numbers = #tpu.dot_dimension_numbers<[2], [2], [1], [1], [0, 0, 0, 1, 1, 1], [0], [0]>} : vector<2x8x32xbf16>, vector<2x8x32xbf16>, vector<2x8x8xf32> -> vector<2x8x8xf32>
    %153 = vector.shape_cast %42 : vector<1x8xf32> to vector<1x1x8xf32>
    %154 = vector.broadcast %153 : vector<1x1x8xf32> to vector<2x8x8xf32>
    %155 = arith.addf %152, %154 : vector<2x8x8xf32>
    %cst_48 = arith.constant dense<0xFF800000> : vector<2x8xf32>
    %156 = vector.multi_reduction <maximumf>, %155, %cst_48 [2] : vector<2x8x8xf32> to vector<2x8xf32>
    %157 = vector.shape_cast %156 : vector<2x8xf32> to vector<2x8x1xf32>
    %158 = vector.broadcast %157 : vector<2x8x1xf32> to vector<2x8x8xf32>
    %159 = arith.subf %155, %158 : vector<2x8x8xf32>
    %160 = math.exp %159 : vector<2x8x8xf32>
    %cst_49 = arith.constant dense<0.000000e+00> : vector<2x8xf32>
    %161 = vector.multi_reduction <add>, %160, %cst_49 [2] : vector<2x8x8xf32> to vector<2x8xf32>
    %162 = vector.shape_cast %161 : vector<2x8xf32> to vector<2x8x1xf32>
    %163 = vector.broadcast %162 : vector<2x8x1xf32> to vector<2x8x8xf32>
    %164 = arith.divf %160, %163 : vector<2x8x8xf32>
    %165 = arith.truncf %164 : vector<2x8x8xf32> to vector<2x8x8xbf16>
    %166 = arith.truncf %149 : vector<2x8x32xf32> to vector<2x8x32xbf16>
    %cst_50 = arith.constant dense<0.000000e+00> : vector<2x8x32xf32>
    %167 = tpu.matmul %165, %166, %cst_50 {dimension_numbers = #tpu.dot_dimension_numbers<[2], [1], [1], [2], [0, 0, 0, 1, 1, 2], [0], [0]>} : vector<2x8x8xbf16>, vector<2x8x32xbf16>, vector<2x8x32xf32> -> vector<2x8x32xf32>
    %168 = vector.shape_cast %167 : vector<2x8x32xf32> to vector<16x32xf32>
    %169 = arith.truncf %168 : vector<16x32xf32> to vector<16x32xbf16>
    %170 = vector.extract_strided_slice %44 {offsets = [96, 0], sizes = [32, 128], strides = [1, 1]} : vector<128x128xbf16> to vector<32x128xbf16>
    %cst_51 = arith.constant dense<0.000000e+00> : vector<16x128xf32>
    %171 = tpu.matmul %169, %170, %cst_51 {dimension_numbers = #tpu.dot_dimension_numbers<[1], [0], [0], [1], [0, 0, 1, 1], [], []>} : vector<16x32xbf16>, vector<32x128xbf16>, vector<16x128xf32> -> vector<16x128xf32>
    %172 = arith.addf %141, %171 : vector<16x128xf32>
    %c0_52 = arith.constant 0 : index
    %c0_53 = arith.constant 0 : index
    %c0_54 = arith.constant 0 : index
    %173 = vector.load %arg12[%c0_52, %c0_53, %c0_54] : memref<1x1x128xf32, #tpu.memory_space<vmem>>, vector<1x1x128xf32>
    %174 = vector.shape_cast %173 : vector<1x1x128xf32> to vector<1x128xf32>
    %c0_55 = arith.constant 0 : index
    %c0_56 = arith.constant 0 : index
    %c0_57 = arith.constant 0 : index
    %175 = vector.load %arg13[%c0_55, %c0_56, %c0_57] : memref<1x1x128xf32, #tpu.memory_space<vmem>>, vector<1x1x128xf32>
    %176 = vector.shape_cast %175 : vector<1x1x128xf32> to vector<1x128xf32>
    %cst_58 = arith.constant dense<0.000000e+00> : vector<16xf32>
    %177 = vector.multi_reduction <add>, %172, %cst_58 [1] : vector<16x128xf32> to vector<16xf32>
    %178 = vector.shape_cast %177 : vector<16xf32> to vector<16x1xf32>
    %cst_59 = arith.constant 1.280000e+02 : f32
    %179 = vector.broadcast %cst_59 : f32 to vector<16x1xf32>
    %180 = arith.divf %178, %179 : vector<16x1xf32>
    %181 = vector.broadcast %180 : vector<16x1xf32> to vector<16x128xf32>
    %182 = arith.subf %172, %181 : vector<16x128xf32>
    %183 = arith.mulf %182, %182 : vector<16x128xf32>
    %cst_60 = arith.constant dense<0.000000e+00> : vector<16xf32>
    %184 = vector.multi_reduction <add>, %183, %cst_60 [1] : vector<16x128xf32> to vector<16xf32>
    %185 = vector.shape_cast %184 : vector<16xf32> to vector<16x1xf32>
    %cst_61 = arith.constant 1.280000e+02 : f32
    %186 = vector.broadcast %cst_61 : f32 to vector<16x1xf32>
    %187 = arith.divf %185, %186 : vector<16x1xf32>
    %cst_62 = arith.constant 9.99999997E-7 : f32
    %188 = vector.broadcast %cst_62 : f32 to vector<16x1xf32>
    %189 = arith.addf %187, %188 : vector<16x1xf32>
    %190 = math.rsqrt %189 : vector<16x1xf32>
    %191 = vector.broadcast %190 : vector<16x1xf32> to vector<16x128xf32>
    %192 = arith.mulf %182, %191 : vector<16x128xf32>
    %193 = vector.broadcast %174 : vector<1x128xf32> to vector<16x128xf32>
    %194 = arith.mulf %192, %193 : vector<16x128xf32>
    %195 = vector.broadcast %176 : vector<1x128xf32> to vector<16x128xf32>
    %196 = arith.addf %194, %195 : vector<16x128xf32>
    %197 = arith.truncf %196 : vector<16x128xf32> to vector<16x128xbf16>
    %c0_63 = arith.constant 0 : index
    %c0_64 = arith.constant 0 : index
    %c0_65 = arith.constant 0 : index
    %198 = vector.load %arg14[%c0_63, %c0_64, %c0_65] : memref<1x128x512xbf16, #tpu.memory_space<vmem>>, vector<1x128x512xbf16>
    %199 = vector.shape_cast %198 : vector<1x128x512xbf16> to vector<128x512xbf16>
    %cst_66 = arith.constant dense<0.000000e+00> : vector<16x512xf32>
    %200 = tpu.matmul %197, %199, %cst_66 {dimension_numbers = #tpu.dot_dimension_numbers<[1], [0], [0], [1], [0, 0, 1, 1], [], []>} : vector<16x128xbf16>, vector<128x512xbf16>, vector<16x512xf32> -> vector<16x512xf32>
    %c0_67 = arith.constant 0 : index
    %c0_68 = arith.constant 0 : index
    %c0_69 = arith.constant 0 : index
    %201 = vector.load %arg15[%c0_67, %c0_68, %c0_69] : memref<1x1x512xf32, #tpu.memory_space<vmem>>, vector<1x1x512xf32>
    %202 = vector.shape_cast %201 : vector<1x1x512xf32> to vector<1x512xf32>
    %203 = vector.broadcast %202 : vector<1x512xf32> to vector<16x512xf32>
    %204 = arith.addf %200, %203 : vector<16x512xf32>
    %205 = arith.mulf %204, %204 : vector<16x512xf32>
    %206 = arith.mulf %204, %205 : vector<16x512xf32>
    %cst_70 = arith.constant 4.471500e-02 : f32
    %207 = vector.broadcast %cst_70 : f32 to vector<16x512xf32>
    %208 = arith.mulf %207, %206 : vector<16x512xf32>
    %209 = arith.addf %204, %208 : vector<16x512xf32>
    %cst_71 = arith.constant 0.797884583 : f32
    %210 = vector.broadcast %cst_71 : f32 to vector<16x512xf32>
    %211 = arith.mulf %210, %209 : vector<16x512xf32>
    %212 = math.tanh %211 : vector<16x512xf32>
    %cst_72 = arith.constant 1.000000e+00 : f32
    %213 = vector.broadcast %cst_72 : f32 to vector<16x512xf32>
    %214 = arith.addf %213, %212 : vector<16x512xf32>
    %cst_73 = arith.constant 5.000000e-01 : f32
    %215 = vector.broadcast %cst_73 : f32 to vector<16x512xf32>
    %216 = arith.mulf %215, %214 : vector<16x512xf32>
    %217 = arith.mulf %204, %216 : vector<16x512xf32>
    %218 = arith.truncf %217 : vector<16x512xf32> to vector<16x512xbf16>
    %c0_74 = arith.constant 0 : index
    %c0_75 = arith.constant 0 : index
    %c0_76 = arith.constant 0 : index
    %219 = vector.load %arg16[%c0_74, %c0_75, %c0_76] : memref<1x512x128xbf16, #tpu.memory_space<vmem>>, vector<1x512x128xbf16>
    %220 = vector.shape_cast %219 : vector<1x512x128xbf16> to vector<512x128xbf16>
    %cst_77 = arith.constant dense<0.000000e+00> : vector<16x128xf32>
    %221 = tpu.matmul %218, %220, %cst_77 {dimension_numbers = #tpu.dot_dimension_numbers<[1], [0], [0], [1], [0, 0, 1, 1], [], []>} : vector<16x512xbf16>, vector<512x128xbf16>, vector<16x128xf32> -> vector<16x128xf32>
    %222 = arith.addf %172, %221 : vector<16x128xf32>
    %c0_78 = arith.constant 0 : index
    %c0_79 = arith.constant 0 : index
    %c0_80 = arith.constant 0 : index
    %223 = vector.load %arg17[%c0_78, %c0_79, %c0_80] : memref<1x1x128xf32, #tpu.memory_space<vmem>>, vector<1x1x128xf32>
    %224 = vector.shape_cast %223 : vector<1x1x128xf32> to vector<1x128xf32>
    %225 = vector.broadcast %224 : vector<1x128xf32> to vector<16x128xf32>
    %226 = arith.addf %222, %225 : vector<16x128xf32>
    %227 = vector.shape_cast %226 : vector<16x128xf32> to vector<2x8x128xf32>
    %c0_81 = arith.constant 0 : index
    %c0_82 = arith.constant 0 : index
    %c0_83 = arith.constant 0 : index
    %228 = vector.load %arg19[%c0_81, %c0_82, %c0_83] : memref<2x8x128xf32, #tpu.memory_space<vmem>>, vector<2x8x128xf32>
    tpu.vector_store %arg19[%c0_81, %c0_82, %c0_83], %227 {strides = array<i32>} : memref<2x8x128xf32, #tpu.memory_space<vmem>>, vector<2x8x128xf32>,
    %c1_i32 = arith.constant 1 : i32
    %229 = arith.cmpi eq, %arg0, %c1_i32 : i32
    %230 = arith.extui %229 : i1 to i32
    %c0_i32_84 = arith.constant 0 : i32
    %231 = arith.cmpi ne, %230, %c0_i32_84 : i32
    scf.if %231 {
      %232 = vector.shape_cast %226 : vector<16x128xf32> to vector<2x8x128xf32>
      %233 = vector.extract_strided_slice %232 {offsets = [0, 0, 0], sizes = [2, 1, 128], strides = [1, 1, 1]} : vector<2x8x128xf32> to vector<2x1x128xf32>
      %234 = vector.shape_cast %233 : vector<2x1x128xf32> to vector<2x128xf32>
      %c0_85 = arith.constant 0 : index
      %c0_86 = arith.constant 0 : index
      %235 = vector.load %arg4[%c0_85, %c0_86] : memref<1x128xf32, #tpu.memory_space<vmem>>, vector<1x128xf32>
      %c0_87 = arith.constant 0 : index
      %c0_88 = arith.constant 0 : index
      %236 = vector.load %arg5[%c0_87, %c0_88] : memref<1x128xf32, #tpu.memory_space<vmem>>, vector<1x128xf32>
      %cst_89 = arith.constant dense<0.000000e+00> : vector<2xf32>
      %237 = vector.multi_reduction <add>, %234, %cst_89 [1] : vector<2x128xf32> to vector<2xf32>
      %238 = vector.shape_cast %237 : vector<2xf32> to vector<2x1xf32>
      %cst_90 = arith.constant 1.280000e+02 : f32
      %239 = vector.broadcast %cst_90 : f32 to vector<2x1xf32>
      %240 = arith.divf %238, %239 : vector<2x1xf32>
      %241 = vector.broadcast %240 : vector<2x1xf32> to vector<2x128xf32>
      %242 = arith.subf %234, %241 : vector<2x128xf32>
      %243 = arith.mulf %242, %242 : vector<2x128xf32>
      %cst_91 = arith.constant dense<0.000000e+00> : vector<2xf32>
      %244 = vector.multi_reduction <add>, %243, %cst_91 [1] : vector<2x128xf32> to vector<2xf32>
      %245 = vector.shape_cast %244 : vector<2xf32> to vector<2x1xf32>
      %cst_92 = arith.constant 1.280000e+02 : f32
      %246 = vector.broadcast %cst_92 : f32 to vector<2x1xf32>
      %247 = arith.divf %245, %246 : vector<2x1xf32>
      %cst_93 = arith.constant 9.99999997E-7 : f32
      %248 = vector.broadcast %cst_93 : f32 to vector<2x1xf32>
      %249 = arith.addf %247, %248 : vector<2x1xf32>
      %250 = math.rsqrt %249 : vector<2x1xf32>
      %251 = vector.broadcast %250 : vector<2x1xf32> to vector<2x128xf32>
      %252 = arith.mulf %242, %251 : vector<2x128xf32>
      %253 = vector.broadcast %235 : vector<1x128xf32> to vector<2x128xf32>
      %254 = arith.mulf %252, %253 : vector<2x128xf32>
      %255 = vector.broadcast %236 : vector<1x128xf32> to vector<2x128xf32>
      %256 = arith.addf %254, %255 : vector<2x128xf32>
      %c0_94 = arith.constant 0 : index
      %c0_95 = arith.constant 0 : index
      %257 = vector.load %arg18[%c0_94, %c0_95] : memref<2x128xf32, #tpu.memory_space<vmem>>, vector<2x128xf32>
      tpu.vector_store %arg18[%c0_94, %c0_95], %256 {strides = array<i32>} : memref<2x128xf32, #tpu.memory_space<vmem>>, vector<2x128xf32>,
    } else {
    }
    return
  }
  func.func @transform_0(%arg0: i32) -> (i32, i32) {
    %c0_i32 = arith.constant 0 : i32
    %c0_i32_0 = arith.constant 0 : i32
    %c0_i32_1 = arith.constant 0 : i32
    return %c0_i32, %c0_i32_0 : i32, i32
  }
  func.func @transform_1(%arg0: i32) -> (i32, i32) {
    %c0_i32 = arith.constant 0 : i32
    %c0_i32_0 = arith.constant 0 : i32
    %c0_i32_1 = arith.constant 0 : i32
    return %c0_i32, %c0_i32_0 : i32, i32
  }
  func.func @transform_2(%arg0: i32) -> (i32, i32) {
    %c0_i32 = arith.constant 0 : i32
    %c0_i32_0 = arith.constant 0 : i32
    %c0_i32_1 = arith.constant 0 : i32
    return %c0_i32, %c0_i32_0 : i32, i32
  }
  func.func @transform_3(%arg0: i32) -> (i32, i32) {
    %c0_i32 = arith.constant 0 : i32
    %c0_i32_0 = arith.constant 0 : i32
    %c0_i32_1 = arith.constant 0 : i32
    return %c0_i32, %c0_i32_0 : i32, i32
  }
  func.func @transform_4(%arg0: i32) -> (i32, i32) {
    %c0_i32 = arith.constant 0 : i32
    %c0_i32_0 = arith.constant 0 : i32
    %c0_i32_1 = arith.constant 0 : i32
    return %c0_i32, %c0_i32_0 : i32, i32
  }
  func.func @transform_5(%arg0: i32) -> (i32, i32, i32) {
    %c0_i32 = arith.constant 0 : i32
    %c0_i32_0 = arith.constant 0 : i32
    %c0_i32_1 = arith.constant 0 : i32
    return %arg0, %c0_i32, %c0_i32_0 : i32, i32, i32
  }
  func.func @transform_6(%arg0: i32) -> (i32, i32, i32) {
    %c0_i32 = arith.constant 0 : i32
    %c0_i32_0 = arith.constant 0 : i32
    %c0_i32_1 = arith.constant 0 : i32
    return %arg0, %c0_i32, %c0_i32_0 : i32, i32, i32
  }
  func.func @transform_7(%arg0: i32) -> (i32, i32, i32) {
    %c0_i32 = arith.constant 0 : i32
    %c0_i32_0 = arith.constant 0 : i32
    %c0_i32_1 = arith.constant 0 : i32
    return %arg0, %c0_i32, %c0_i32_0 : i32, i32, i32
  }
  func.func @transform_8(%arg0: i32) -> (i32, i32, i32) {
    %c0_i32 = arith.constant 0 : i32
    %c0_i32_0 = arith.constant 0 : i32
    %c0_i32_1 = arith.constant 0 : i32
    return %arg0, %c0_i32, %c0_i32_0 : i32, i32, i32
  }
  func.func @transform_9(%arg0: i32) -> (i32, i32, i32) {
    %c0_i32 = arith.constant 0 : i32
    %c0_i32_0 = arith.constant 0 : i32
    %c0_i32_1 = arith.constant 0 : i32
    return %arg0, %c0_i32, %c0_i32_0 : i32, i32, i32
  }
  func.func @transform_10(%arg0: i32) -> (i32, i32, i32) {
    %c0_i32 = arith.constant 0 : i32
    %c0_i32_0 = arith.constant 0 : i32
    %c0_i32_1 = arith.constant 0 : i32
    return %arg0, %c0_i32, %c0_i32_0 : i32, i32, i32
  }
  func.func @transform_11(%arg0: i32) -> (i32, i32, i32) {
    %c0_i32 = arith.constant 0 : i32
    %c0_i32_0 = arith.constant 0 : i32
    %c0_i32_1 = arith.constant 0 : i32
    return %arg0, %c0_i32, %c0_i32_0 : i32, i32, i32
  }
  func.func @transform_12(%arg0: i32) -> (i32, i32, i32) {
    %c0_i32 = arith.constant 0 : i32
    %c0_i32_0 = arith.constant 0 : i32
    %c0_i32_1 = arith.constant 0 : i32
    return %arg0, %c0_i32, %c0_i32_0 : i32, i32, i32
  }
  func.func @transform_13(%arg0: i32) -> (i32, i32, i32) {
    %c0_i32 = arith.constant 0 : i32
    %c0_i32_0 = arith.constant 0 : i32
    %c0_i32_1 = arith.constant 0 : i32
    return %arg0, %c0_i32, %c0_i32_0 : i32, i32, i32
  }
  func.func @transform_14(%arg0: i32) -> (i32, i32, i32) {
    %c0_i32 = arith.constant 0 : i32
    %c0_i32_0 = arith.constant 0 : i32
    %c0_i32_1 = arith.constant 0 : i32
    return %arg0, %c0_i32, %c0_i32_0 : i32, i32, i32
  }
  func.func @transform_15(%arg0: i32) -> (i32, i32, i32) {
    %c0_i32 = arith.constant 0 : i32
    %c0_i32_0 = arith.constant 0 : i32
    %c0_i32_1 = arith.constant 0 : i32
    return %arg0, %c0_i32, %c0_i32_0 : i32, i32, i32
  }
  func.func @transform_16(%arg0: i32) -> (i32, i32, i32) {
    %c0_i32 = arith.constant 0 : i32
    %c0_i32_0 = arith.constant 0 : i32
    %c0_i32_1 = arith.constant 0 : i32
    return %arg0, %c0_i32, %c0_i32_0 : i32, i32, i32
  }
  func.func @transform_17(%arg0: i32) -> (i32, i32) {
    %c0_i32 = arith.constant 0 : i32
    %c0_i32_0 = arith.constant 0 : i32
    %c0_i32_1 = arith.constant 0 : i32
    return %c0_i32, %c0_i32_0 : i32, i32
  }
}

</mosaic_0001>

<llo_original>
// kernel: cradio_v2_summary.1
$region0: #{cradio_v2_summary.1}
  #allocation0 [shape = 'u32[]', space=smem, size = 0x4, offset = 0x4, fixed_abs, tag = 'smem constant byte address 0x4 - core index']
  #allocation1 [shape = 'u32[144,128]{1,0:T(1,128)}', space=vmem, size = 0x12000, scoped, tag = 'internal scratch']
  #allocation2 [shape = 'f32[2,8,128]{2,1,0:T(8,128)}', space=vmem, size = 0x2000, scoped, tag = 'scratch operand']
  %s0 = inlined_call_operand.vmem [shape: bf16[16,768], index: 0, kind: input, shape index: {}]
  %s1 = inlined_call_operand.hbm [shape: bf16[768,128], index: 1, kind: input, shape index: {}]
  %s2 = inlined_call_operand.vmem [shape: f32[8,128], index: 2, kind: input, shape index: {}]
  %s3 = inlined_call_operand.vmem [shape: f32[1,128], index: 3, kind: input, shape index: {}]
  %s4 = inlined_call_operand.vmem [shape: f32[1,128], index: 4, kind: input, shape index: {}]
  %s5 = inlined_call_operand.vmem [shape: f32[2,1,128], index: 5, kind: input, shape index: {}]
  %s6 = inlined_call_operand.vmem [shape: f32[2,1,128], index: 6, kind: input, shape index: {}]
  %s7 = inlined_call_operand.hbm [shape: bf16[2,128,384], index: 7, kind: input, shape index: {}]
  %s8 = inlined_call_operand.vmem [shape: f32[2,1,384], index: 8, kind: input, shape index: {}]
  %s9 = inlined_call_operand.vmem [shape: bf16[2,128,128], index: 9, kind: input, shape index: {}]
  %s10 = inlined_call_operand.vmem [shape: f32[2,1,128], index: 10, kind: input, shape index: {}]
  %s11 = inlined_call_operand.vmem [shape: f32[2,1,128], index: 11, kind: input, shape index: {}]
  %s12 = inlined_call_operand.vmem [shape: f32[2,1,128], index: 12, kind: input, shape index: {}]
  %s13 = inlined_call_operand.vmem [shape: bf16[2,128,512], index: 13, kind: input, shape index: {}]
  %s14 = inlined_call_operand.vmem [shape: f32[2,1,512], index: 14, kind: input, shape index: {}]
  %s15 = inlined_call_operand.vmem [shape: bf16[2,512,128], index: 15, kind: input, shape index: {}]
  %s16 = inlined_call_operand.vmem [shape: f32[2,1,128], index: 16, kind: input, shape index: {}]
  %s17 = inlined_call_operand.hbm [shape: f32[2,128], index: 17, kind: output, shape index: {}]
  %s18 = sld [smem:[#allocation0]]
  $region117: #{cradio_v2_summary.1} parent=0
    _
  %s20 = ssub.s32 1, %s18
  %s21 = scalar_select 0, %s20, %s18
  $region1: #{cradio_v2_summary.1} parent=0
    #allocation3 [shape = 'u8[196608]{0}', space=vmem, size = 0x30000, scoped, tag = 'input window, operand 1, single buffered']
    #allocation4 [shape = 's32[2]{0}', space=sflag, size = 0x8, scoped, tag = 'scoped memory for cradio_v2_summary.1']
    #allocation5 [shape = 's32[2]{0}', space=sflag, size = 0x8, scoped, tag = 'scoped memory for cradio_v2_summary.1']
    #allocation6 [shape = 'u8[196608]{0}', space=vmem, size = 0x30000, scoped, tag = 'input window, operand 7']
    #allocation7 [shape = 's32[2]{0}', space=sflag, size = 0x8, scoped, tag = 'scoped memory for cradio_v2_summary.1']
    #allocation8 [shape = 'u8[1024]{0}', space=vmem, size = 0x400, scoped, tag = 'output window, operand 0, single buffered']
    %22 = vsyncpa [#allocation4], 0
    %23 = vsyncpa [#allocation7], 0
    %s24 = scalar_lea.sflag [#allocation7], 1
    %25 = vsyncpa %s24, 0
    %26 = vsyncpa [#allocation5], 0
    loop: start=0, step=1, limit=4
    $region2: #{cradio_v2_summary.1} parent=1 // loop_pre_header
      _
    $region3: #{cradio_v2_summary.1} parent=1 // loop_header
      %s28 = sphi 0, %s32
      %p29 = scmp.ge.s32.totalorder %s28, 4
      %s36 = sphi 0, %s36
      %s38 = sphi 0, %s36
      %s39 = sphi 0, %s38
      %s53 = sphi 0, %s39
      %s57 = sphi 0, %s57
      %s59 = sphi 0, %s57
      %s60 = sphi 0, %s59
      %s74 = sphi 0, %s60
      %s78 = sphi 0, %s78
      %s80 = sphi 0, %s78
      %s81 = sphi 0, %s80
      %s95 = sphi 0, %s81
      %s99 = sphi 0, %s99
      %s101 = sphi 0, %s99
      %s102 = sphi 0, %s101
      %s116 = sphi 0, %s102
      %s120 = sphi 0, %s120
      %s122 = sphi 0, %s120
      %s123 = sphi 0, %s122
      %s137 = sphi 0, %s123
      %s143 = sphi 0, %s145
      %s146 = sphi 0, %s143
      %s147 = sphi 0, %s146
      %s163 = sphi 0, %s147
      %s169 = sphi 0, %s171
      %s172 = sphi 0, %s169
      %s173 = sphi 0, %s172
      %s189 = sphi 0, %s173
      %s195 = sphi 0, %s197
      %s198 = sphi 0, %s195
      %s199 = sphi 0, %s198
      %s215 = sphi 0, %s199
      %s221 = sphi 0, %s223
      %s224 = sphi 0, %s221
      %s225 = sphi 0, %s224
      %s241 = sphi 0, %s225
      %s247 = sphi 0, %s249
      %s250 = sphi 0, %s247
      %s251 = sphi 0, %s250
      %s267 = sphi 0, %s251
      %s273 = sphi 0, %s275
      %s276 = sphi 0, %s273
      %s277 = sphi 0, %s276
      %s293 = sphi 0, %s277
      %s299 = sphi 0, %s301
      %s302 = sphi 0, %s299
      %s303 = sphi 0, %s302
      %s319 = sphi 0, %s303
      %s325 = sphi 0, %s327
      %s328 = sphi 0, %s325
      %s329 = sphi 0, %s328
      %s345 = sphi 0, %s329
      %s351 = sphi 0, %s353
      %s354 = sphi 0, %s351
      %s355 = sphi 0, %s354
      %s371 = sphi 0, %s355
      %s377 = sphi 0, %s379
      %s380 = sphi 0, %s377
      %s381 = sphi 0, %s380
      %s397 = sphi 0, %s381
      %s403 = sphi 0, %s405
      %s406 = sphi 0, %s403
      %s407 = sphi 0, %s406
      %s423 = sphi 0, %s407
      %s429 = sphi 0, %s431
      %s432 = sphi 0, %s429
      %s433 = sphi 0, %s432
      %s449 = sphi 0, %s433
      %s453 = sphi 0, %s453
      %s455 = sphi 0, %s453
      %s456 = sphi 0, %s455
      %s470 = sphi 0, %s456
    $region4: #{cradio_v2_summary.1} parent=1 // loop_header_branch
      %31 = sbr.rel (%p29) target = $region8
    $region5: #{cradio_v2_summary.1} parent=1 // loop_body
      %s33 = ssub.s32 %s28, 1
      %s34 = ssub.s32 %s28, 2
      %s35 = sadd.s32 %s28, 1
      %s37 = sadd.s32 %s36, 1
      %p40 = scmp.eq.s32.totalorder %s28, 1
      %p41 = scmp.ne.s32.totalorder %s36, %s38
      %p42 = scmp.eq.s32.totalorder %s28, 0
      %p43 = por %p41, %p42
      %p44 = scmp.ne.s32.totalorder %s36, %s38
      %p45 = scmp.eq.s32.totalorder %s33, 1
      %p46 = por %p44, %p45
      %p47 = scmp.ne.s32.totalorder %s38, %s39
      %p48 = scmp.eq.s32.totalorder %s33, 0
      %p49 = por %p47, %p48
      %p50 = scmp.ne.s32.totalorder %s38, %s39
      %p51 = scmp.eq.s32.totalorder %s34, 1
      %p52 = por %p50, %p51
      %p54 = scmp.ne.s32.totalorder %s39, %s53
      %p55 = scmp.eq.s32.totalorder %s34, 0
      %p56 = por %p54, %p55
      %s58 = sadd.s32 %s57, 1
      %p61 = scmp.eq.s32.totalorder %s28, 1
      %p62 = scmp.ne.s32.totalorder %s57, %s59
      %p63 = scmp.eq.s32.totalorder %s28, 0
      %p64 = por %p62, %p63
      %p65 = scmp.ne.s32.totalorder %s57, %s59
      %p66 = scmp.eq.s32.totalorder %s33, 1
      %p67 = por %p65, %p66
      %p68 = scmp.ne.s32.totalorder %s59, %s60
      %p69 = scmp.eq.s32.totalorder %s33, 0
      %p70 = por %p68, %p69
      %p71 = scmp.ne.s32.totalorder %s59, %s60
      %p72 = scmp.eq.s32.totalorder %s34, 1
      %p73 = por %p71, %p72
      %p75 = scmp.ne.s32.totalorder %s60, %s74
      %p76 = scmp.eq.s32.totalorder %s34, 0
      %p77 = por %p75, %p76
      %s79 = sadd.s32 %s78, 1
      %p82 = scmp.eq.s32.totalorder %s28, 1
      %p83 = scmp.ne.s32.totalorder %s78, %s80
      %p84 = scmp.eq.s32.totalorder %s28, 0
      %p85 = por %p83, %p84
      %p86 = scmp.ne.s32.totalorder %s78, %s80
      %p87 = scmp.eq.s32.totalorder %s33, 1
      %p88 = por %p86, %p87
      %p89 = scmp.ne.s32.totalorder %s80, %s81
      %p90 = scmp.eq.s32.totalorder %s33, 0
      %p91 = por %p89, %p90
      %p92 = scmp.ne.s32.totalorder %s80, %s81
      %p93 = scmp.eq.s32.totalorder %s34, 1
      %p94 = por %p92, %p93
      %p96 = scmp.ne.s32.totalorder %s81, %s95
      %p97 = scmp.eq.s32.totalorder %s34, 0
      %p98 = por %p96, %p97
      %s100 = sadd.s32 %s99, 1
      %p103 = scmp.eq.s32.totalorder %s28, 1
      %p104 = scmp.ne.s32.totalorder %s99, %s101
      %p105 = scmp.eq.s32.totalorder %s28, 0
      %p106 = por %p104, %p105
      %p107 = scmp.ne.s32.totalorder %s99, %s101
      %p108 = scmp.eq.s32.totalorder %s33, 1
      %p109 = por %p107, %p108
      %p110 = scmp.ne.s32.totalorder %s101, %s102
      %p111 = scmp.eq.s32.totalorder %s33, 0
      %p112 = por %p110, %p111
      %p113 = scmp.ne.s32.totalorder %s101, %s102
      %p114 = scmp.eq.s32.totalorder %s34, 1
      %p115 = por %p113, %p114
      %p117 = scmp.ne.s32.totalorder %s102, %s116
      %p118 = scmp.eq.s32.totalorder %s34, 0
      %p119 = por %p117, %p118
      %s121 = sadd.s32 %s120, 1
      %p124 = scmp.eq.s32.totalorder %s28, 1
      %p125 = scmp.ne.s32.totalorder %s120, %s122
      %p126 = scmp.eq.s32.totalorder %s28, 0
      %p127 = por %p125, %p126
      %p128 = scmp.ne.s32.totalorder %s120, %s122
      %p129 = scmp.eq.s32.totalorder %s33, 1
      %p130 = por %p128, %p129
      %p131 = scmp.ne.s32.totalorder %s122, %s123
      %p132 = scmp.eq.s32.totalorder %s33, 0
      %p133 = por %p131, %p132
      %p134 = scmp.ne.s32.totalorder %s122, %s123
      %p135 = scmp.eq.s32.totalorder %s34, 1
      %p136 = por %p134, %p135
      %p138 = scmp.ne.s32.totalorder %s123, %s137
      %p139 = scmp.eq.s32.totalorder %s34, 0
      %p140 = por %p138, %p139
      %s141 = ssub.s32 %s28, %s35
      %p142 = scmp.eq.s32.totalorder %s141, 0
      %s144 = sadd.s32 %s143, 1
      %s145 = scalar_select %p142, %s143, %s144
      %p148 = pneg %p142
      %p149 = scmp.eq.s32.totalorder %s28, 1
      %p150 = por %p148, %p149
      %p151 = scmp.ne.s32.totalorder %s143, %s146
      %p152 = scmp.eq.s32.totalorder %s28, 0
      %p153 = por %p151, %p152
      %p154 = scmp.ne.s32.totalorder %s143, %s146
      %p155 = scmp.eq.s32.totalorder %s33, 1
      %p156 = por %p154, %p155
      %p157 = scmp.ne.s32.totalorder %s146, %s147
      %p158 = scmp.eq.s32.totalorder %s33, 0
      %p159 = por %p157, %p158
      %p160 = scmp.ne.s32.totalorder %s146, %s147
      %p161 = scmp.eq.s32.totalorder %s34, 1
      %p162 = por %p160, %p161
      %p164 = scmp.ne.s32.totalorder %s147, %s163
      %p165 = scmp.eq.s32.totalorder %s34, 0
      %p166 = por %p164, %p165
      %s167 = ssub.s32 %s28, %s35
      %p168 = scmp.eq.s32.totalorder %s167, 0
      %s170 = sadd.s32 %s169, 1
      %s171 = scalar_select %p168, %s169, %s170
      %p174 = pneg %p168
      %p175 = scmp.eq.s32.totalorder %s28, 1
      %p176 = por %p174, %p175
      %p177 = scmp.ne.s32.totalorder %s169, %s172
      %p178 = scmp.eq.s32.totalorder %s28, 0
      %p179 = por %p177, %p178
      %p180 = scmp.ne.s32.totalorder %s169, %s172
      %p181 = scmp.eq.s32.totalorder %s33, 1
      %p182 = por %p180, %p181
      %p183 = scmp.ne.s32.totalorder %s172, %s173
      %p184 = scmp.eq.s32.totalorder %s33, 0
      %p185 = por %p183, %p184
      %p186 = scmp.ne.s32.totalorder %s172, %s173
      %p187 = scmp.eq.s32.totalorder %s34, 1
      %p188 = por %p186, %p187
      %p190 = scmp.ne.s32.totalorder %s173, %s189
      %p191 = scmp.eq.s32.totalorder %s34, 0
      %p192 = por %p190, %p191
      %s193 = ssub.s32 %s28, %s35
      %p194 = scmp.eq.s32.totalorder %s193, 0
      %s196 = sadd.s32 %s195, 1
      %s197 = scalar_select %p194, %s195, %s196
      %p200 = pneg %p194
      %p201 = scmp.eq.s32.totalorder %s28, 1
      %p202 = por %p200, %p201
      %p203 = scmp.ne.s32.totalorder %s195, %s198
      %p204 = scmp.eq.s32.totalorder %s28, 0
      %p205 = por %p203, %p204
      %p206 = scmp.ne.s32.totalorder %s195, %s198
      %p207 = scmp.eq.s32.totalorder %s33, 1
      %p208 = por %p206, %p207
      %p209 = scmp.ne.s32.totalorder %s198, %s199
      %p210 = scmp.eq.s32.totalorder %s33, 0
      %p211 = por %p209, %p210
      %p212 = scmp.ne.s32.totalorder %s198, %s199
      %p213 = scmp.eq.s32.totalorder %s34, 1
      %p214 = por %p212, %p213
      %p216 = scmp.ne.s32.totalorder %s199, %s215
      %p217 = scmp.eq.s32.totalorder %s34, 0
      %p218 = por %p216, %p217
      %s219 = ssub.s32 %s28, %s35
      %p220 = scmp.eq.s32.totalorder %s219, 0
      %s222 = sadd.s32 %s221, 1
      %s223 = scalar_select %p220, %s221, %s222
      %p226 = pneg %p220
      %p227 = scmp.eq.s32.totalorder %s28, 1
      %p228 = por %p226, %p227
      %p229 = scmp.ne.s32.totalorder %s221, %s224
      %p230 = scmp.eq.s32.totalorder %s28, 0
      %p231 = por %p229, %p230
      %p232 = scmp.ne.s32.totalorder %s221, %s224
      %p233 = scmp.eq.s32.totalorder %s33, 1
      %p234 = por %p232, %p233
      %p235 = scmp.ne.s32.totalorder %s224, %s225
      %p236 = scmp.eq.s32.totalorder %s33, 0
      %p237 = por %p235, %p236
      %p238 = scmp.ne.s32.totalorder %s224, %s225
      %p239 = scmp.eq.s32.totalorder %s34, 1
      %p240 = por %p238, %p239
      %p242 = scmp.ne.s32.totalorder %s225, %s241
      %p243 = scmp.eq.s32.totalorder %s34, 0
      %p244 = por %p242, %p243
      %s245 = ssub.s32 %s28, %s35
      %p246 = scmp.eq.s32.totalorder %s245, 0
      %s248 = sadd.s32 %s247, 1
      %s249 = scalar_select %p246, %s247, %s248
      %p252 = pneg %p246
      %p253 = scmp.eq.s32.totalorder %s28, 1
      %p254 = por %p252, %p253
      %p255 = scmp.ne.s32.totalorder %s247, %s250
      %p256 = scmp.eq.s32.totalorder %s28, 0
      %p257 = por %p255, %p256
      %p258 = scmp.ne.s32.totalorder %s247, %s250
      %p259 = scmp.eq.s32.totalorder %s33, 1
      %p260 = por %p258, %p259
      %p261 = scmp.ne.s32.totalorder %s250, %s251
      %p262 = scmp.eq.s32.totalorder %s33, 0
      %p263 = por %p261, %p262
      %p264 = scmp.ne.s32.totalorder %s250, %s251
      %p265 = scmp.eq.s32.totalorder %s34, 1
      %p266 = por %p264, %p265
      %p268 = scmp.ne.s32.totalorder %s251, %s267
      %p269 = scmp.eq.s32.totalorder %s34, 0
      %p270 = por %p268, %p269
      %s271 = ssub.s32 %s28, %s35
      %p272 = scmp.eq.s32.totalorder %s271, 0
      %s274 = sadd.s32 %s273, 1
      %s275 = scalar_select %p272, %s273, %s274
      %p278 = pneg %p272
      %p279 = scmp.eq.s32.totalorder %s28, 1
      %p280 = por %p278, %p279
      %p281 = scmp.ne.s32.totalorder %s273, %s276
      %p282 = scmp.eq.s32.totalorder %s28, 0
      %p283 = por %p281, %p282
      %p284 = scmp.ne.s32.totalorder %s273, %s276
      %p285 = scmp.eq.s32.totalorder %s33, 1
      %p286 = por %p284, %p285
      %p287 = scmp.ne.s32.totalorder %s276, %s277
      %p288 = scmp.eq.s32.totalorder %s33, 0
      %p289 = por %p287, %p288
      %p290 = scmp.ne.s32.totalorder %s276, %s277
      %p291 = scmp.eq.s32.totalorder %s34, 1
      %p292 = por %p290, %p291
      %p294 = scmp.ne.s32.totalorder %s277, %s293
      %p295 = scmp.eq.s32.totalorder %s34, 0
      %p296 = por %p294, %p295
      %s297 = ssub.s32 %s28, %s35
      %p298 = scmp.eq.s32.totalorder %s297, 0
      %s300 = sadd.s32 %s299, 1
      %s301 = scalar_select %p298, %s299, %s300
      %p304 = pneg %p298
      %p305 = scmp.eq.s32.totalorder %s28, 1
      %p306 = por %p304, %p305
      %p307 = scmp.ne.s32.totalorder %s299, %s302
      %p308 = scmp.eq.s32.totalorder %s28, 0
      %p309 = por %p307, %p308
      %p310 = scmp.ne.s32.totalorder %s299, %s302
      %p311 = scmp.eq.s32.totalorder %s33, 1
      %p312 = por %p310, %p311
      %p313 = scmp.ne.s32.totalorder %s302, %s303
      %p314 = scmp.eq.s32.totalorder %s33, 0
      %p315 = por %p313, %p314
      %p316 = scmp.ne.s32.totalorder %s302, %s303
      %p317 = scmp.eq.s32.totalorder %s34, 1
      %p318 = por %p316, %p317
      %p320 = scmp.ne.s32.totalorder %s303, %s319
      %p321 = scmp.eq.s32.totalorder %s34, 0
      %p322 = por %p320, %p321
      %s323 = ssub.s32 %s28, %s35
      %p324 = scmp.eq.s32.totalorder %s323, 0
      %s326 = sadd.s32 %s325, 1
      %s327 = scalar_select %p324, %s325, %s326
      %p330 = pneg %p324
      %p331 = scmp.eq.s32.totalorder %s28, 1
      %p332 = por %p330, %p331
      %p333 = scmp.ne.s32.totalorder %s325, %s328
      %p334 = scmp.eq.s32.totalorder %s28, 0
      %p335 = por %p333, %p334
      %p336 = scmp.ne.s32.totalorder %s325, %s328
      %p337 = scmp.eq.s32.totalorder %s33, 1
      %p338 = por %p336, %p337
      %p339 = scmp.ne.s32.totalorder %s328, %s329
      %p340 = scmp.eq.s32.totalorder %s33, 0
      %p341 = por %p339, %p340
      %p342 = scmp.ne.s32.totalorder %s328, %s329
      %p343 = scmp.eq.s32.totalorder %s34, 1
      %p344 = por %p342, %p343
      %p346 = scmp.ne.s32.totalorder %s329, %s345
      %p347 = scmp.eq.s32.totalorder %s34, 0
      %p348 = por %p346, %p347
      %s349 = ssub.s32 %s28, %s35
      %p350 = scmp.eq.s32.totalorder %s349, 0
      %s352 = sadd.s32 %s351, 1
      %s353 = scalar_select %p350, %s351, %s352
      %p356 = pneg %p350
      %p357 = scmp.eq.s32.totalorder %s28, 1
      %p358 = por %p356, %p357
      %p359 = scmp.ne.s32.totalorder %s351, %s354
      %p360 = scmp.eq.s32.totalorder %s28, 0
      %p361 = por %p359, %p360
      %p362 = scmp.ne.s32.totalorder %s351, %s354
      %p363 = scmp.eq.s32.totalorder %s33, 1
      %p364 = por %p362, %p363
      %p365 = scmp.ne.s32.totalorder %s354, %s355
      %p366 = scmp.eq.s32.totalorder %s33, 0
      %p367 = por %p365, %p366
      %p368 = scmp.ne.s32.totalorder %s354, %s355
      %p369 = scmp.eq.s32.totalorder %s34, 1
      %p370 = por %p368, %p369
      %p372 = scmp.ne.s32.totalorder %s355, %s371
      %p373 = scmp.eq.s32.totalorder %s34, 0
      %p374 = por %p372, %p373
      %s375 = ssub.s32 %s28, %s35
      %p376 = scmp.eq.s32.totalorder %s375, 0
      %s378 = sadd.s32 %s377, 1
      %s379 = scalar_select %p376, %s377, %s378
      %p382 = pneg %p376
      %p383 = scmp.eq.s32.totalorder %s28, 1
      %p384 = por %p382, %p383
      %p385 = scmp.ne.s32.totalorder %s377, %s380
      %p386 = scmp.eq.s32.totalorder %s28, 0
      %p387 = por %p385, %p386
      %p388 = scmp.ne.s32.totalorder %s377, %s380
      %p389 = scmp.eq.s32.totalorder %s33, 1
      %p390 = por %p388, %p389
      %p391 = scmp.ne.s32.totalorder %s380, %s381
      %p392 = scmp.eq.s32.totalorder %s33, 0
      %p393 = por %p391, %p392
      %p394 = scmp.ne.s32.totalorder %s380, %s381
      %p395 = scmp.eq.s32.totalorder %s34, 1
      %p396 = por %p394, %p395
      %p398 = scmp.ne.s32.totalorder %s381, %s397
      %p399 = scmp.eq.s32.totalorder %s34, 0
      %p400 = por %p398, %p399
      %s401 = ssub.s32 %s28, %s35
      %p402 = scmp.eq.s32.totalorder %s401, 0
      %s404 = sadd.s32 %s403, 1
      %s405 = scalar_select %p402, %s403, %s404
      %p408 = pneg %p402
      %p409 = scmp.eq.s32.totalorder %s28, 1
      %p410 = por %p408, %p409
      %p411 = scmp.ne.s32.totalorder %s403, %s406
      %p412 = scmp.eq.s32.totalorder %s28, 0
      %p413 = por %p411, %p412
      %p414 = scmp.ne.s32.totalorder %s403, %s406
      %p415 = scmp.eq.s32.totalorder %s33, 1
      %p416 = por %p414, %p415
      %p417 = scmp.ne.s32.totalorder %s406, %s407
      %p418 = scmp.eq.s32.totalorder %s33, 0
      %p419 = por %p417, %p418
      %p420 = scmp.ne.s32.totalorder %s406, %s407
      %p421 = scmp.eq.s32.totalorder %s34, 1
      %p422 = por %p420, %p421
      %p424 = scmp.ne.s32.totalorder %s407, %s423
      %p425 = scmp.eq.s32.totalorder %s34, 0
      %p426 = por %p424, %p425
      %s427 = ssub.s32 %s28, %s35
      %p428 = scmp.eq.s32.totalorder %s427, 0
      %s430 = sadd.s32 %s429, 1
      %s431 = scalar_select %p428, %s429, %s430
      %p434 = pneg %p428
      %p435 = scmp.eq.s32.totalorder %s28, 1
      %p436 = por %p434, %p435
      %p437 = scmp.ne.s32.totalorder %s429, %s432
      %p438 = scmp.eq.s32.totalorder %s28, 0
      %p439 = por %p437, %p438
      %p440 = scmp.ne.s32.totalorder %s429, %s432
      %p441 = scmp.eq.s32.totalorder %s33, 1
      %p442 = por %p440, %p441
      %p443 = scmp.ne.s32.totalorder %s432, %s433
      %p444 = scmp.eq.s32.totalorder %s33, 0
      %p445 = por %p443, %p444
      %p446 = scmp.ne.s32.totalorder %s432, %s433
      %p447 = scmp.eq.s32.totalorder %s34, 1
      %p448 = por %p446, %p447
      %p450 = scmp.ne.s32.totalorder %s433, %s449
      %p451 = scmp.eq.s32.totalorder %s34, 0
      %p452 = por %p450, %p451
      %s454 = sadd.s32 %s453, 1
      %p457 = scmp.eq.s32.totalorder %s28, 1
      %p458 = scmp.ne.s32.totalorder %s453, %s455
      %p459 = scmp.eq.s32.totalorder %s28, 0
      %p460 = por %p458, %p459
      %p461 = scmp.ne.s32.totalorder %s453, %s455
      %p462 = scmp.eq.s32.totalorder %s33, 1
      %p463 = por %p461, %p462
      %p464 = scmp.ne.s32.totalorder %s455, %s456
      %p465 = scmp.eq.s32.totalorder %s33, 0
      %p466 = por %p464, %p465
      %p467 = scmp.ne.s32.totalorder %s455, %s456
      %p468 = scmp.eq.s32.totalorder %s34, 1
      %p469 = por %p467, %p468
      %p471 = scmp.ne.s32.totalorder %s456, %s470
      %p472 = scmp.eq.s32.totalorder %s34, 0
      %p473 = por %p471, %p472
      %p474 = scmp.le.s32.totalorder 1, %s28
      %p475 = scmp.lt.s32.totalorder %s28, 3
      %p476 = pnand %p474, %p475
      %p477 = pneg %p476
      // Predicated region
      $region9: #{cradio_v2_summary.1} parent=5 // pred_check
        _
      $region10: #{cradio_v2_summary.1} parent=5 // pred_check_branch
        %479 = sbr.rel (%p476) target = $region12
      $region11: #{cradio_v2_summary.1} parent=5 // pred_region
        %s480 = ssub.s32 %s28, 1
        // Predicated region
        $region13: #{cradio_v2_summary.1} parent=11 // pred_check
          %p481 = pneg %p49
        $region14: #{cradio_v2_summary.1} parent=11 // pred_check_branch
          %483 = sbr.rel (%p481) target = $region16
        $region15: #{cradio_v2_summary.1} parent=11 // pred_region
          _
        $region16: #{cradio_v2_summary.1} parent=11 // pred_fallthru
          _
        // Predicated region
        $region17: #{cradio_v2_summary.1} parent=11 // pred_check
          %p484 = pneg %p70
        $region18: #{cradio_v2_summary.1} parent=11 // pred_check_branch
          %486 = sbr.rel (%p484) target = $region20
        $region19: #{cradio_v2_summary.1} parent=11 // pred_region
          %s488 = ssub.s32 6144, 6144
          %489 = vsyncadd [#allocation4], %s488
          %s490 = sshll.u32 [#allocation3], 4
          %s491 = int_to_ptr.vmem [resolvable:$true] %s490
          %496 = dma.hbm_to_vmem [thread:$0]  %s1, 6144, %s491, [#allocation4], 64, 64, 4
        $region20: #{cradio_v2_summary.1} parent=11 // pred_fallthru
          _
        // Predicated region
        $region21: #{cradio_v2_summary.1} parent=11 // pred_check
          %p497 = pneg %p91
        $region22: #{cradio_v2_summary.1} parent=11 // pred_check_branch
          %499 = sbr.rel (%p497) target = $region24
        $region23: #{cradio_v2_summary.1} parent=11 // pred_region
          _
        $region24: #{cradio_v2_summary.1} parent=11 // pred_fallthru
          _
        // Predicated region
        $region25: #{cradio_v2_summary.1} parent=11 // pred_check
          %p500 = pneg %p112
        $region26: #{cradio_v2_summary.1} parent=11 // pred_check_branch
          %502 = sbr.rel (%p500) target = $region28
        $region27: #{cradio_v2_summary.1} parent=11 // pred_region
          _
        $region28: #{cradio_v2_summary.1} parent=11 // pred_fallthru
          _
        // Predicated region
        $region29: #{cradio_v2_summary.1} parent=11 // pred_check
          %p503 = pneg %p133
        $region30: #{cradio_v2_summary.1} parent=11 // pred_check_branch
          %505 = sbr.rel (%p503) target = $region32
        $region31: #{cradio_v2_summary.1} parent=11 // pred_region
          _
        $region32: #{cradio_v2_summary.1} parent=11 // pred_fallthru
          _
      $region12: #{cradio_v2_summary.1} parent=5 // pred_fallthru
        _
      %p506 = scmp.lt.s32.totalorder %s28, 2
      // Predicated region
      $region33: #{cradio_v2_summary.1} parent=5 // pred_check
        %p507 = pneg %p506
      $region34: #{cradio_v2_summary.1} parent=5 // pred_check_branch
        %509 = sbr.rel (%p507) target = $region36
      $region35: #{cradio_v2_summary.1} parent=5 // pred_region
        // Predicated region
        $region37: #{cradio_v2_summary.1} parent=35 // pred_check
          %p510 = pneg %p153
        $region38: #{cradio_v2_summary.1} parent=35 // pred_check_branch
          %512 = sbr.rel (%p510) target = $region40
        $region39: #{cradio_v2_summary.1} parent=35 // pred_region
          %p513 = scmp.lt.s32.totalorder %s28, 1
          %s514 = scalar_select %p513, %s28, 1
          %s515 = scalar_lea.vmem %s5, %s514
        $region40: #{cradio_v2_summary.1} parent=35 // pred_fallthru
          _
        // Predicated region
        $region41: #{cradio_v2_summary.1} parent=35 // pred_check
          %p516 = pneg %p179
        $region42: #{cradio_v2_summary.1} parent=35 // pred_check_branch
          %518 = sbr.rel (%p516) target = $region44
        $region43: #{cradio_v2_summary.1} parent=35 // pred_region
          %p519 = scmp.lt.s32.totalorder %s28, 1
          %s520 = scalar_select %p519, %s28, 1
          %s521 = scalar_lea.vmem %s6, %s520
        $region44: #{cradio_v2_summary.1} parent=35 // pred_fallthru
          _
        // Predicated region
        $region45: #{cradio_v2_summary.1} parent=35 // pred_check
          %p522 = pneg %p205
        $region46: #{cradio_v2_summary.1} parent=35 // pred_check_branch
          %524 = sbr.rel (%p522) target = $region48
        $region47: #{cradio_v2_summary.1} parent=35 // pred_region
          %s525 = sand.u32 %s195, 1
          %s526 = scalar_lea.sflag [#allocation7], %s525
          %s527 = sand.u32 %s195, 1
          %s528 = smul.addr %s527, 192
          %s529 = scalar_lea.vmem [#allocation6], %s528
          %s531 = ssub.s32 3072, 3072
          %532 = vsyncadd %s526, %s531
          %s533 = smul.addr %s28, 48
          %s534 = smul.addr %s533, 64
          %s535 = scalar_lea.hbm %s7, %s534
          %s536 = sshll.u32 %s529, 4
          %s537 = int_to_ptr.vmem [resolvable:$true] %s536
          %542 = dma.hbm_to_vmem [thread:$0]  %s535, 3072, %s537, %s526, 192, 192, 12
        $region48: #{cradio_v2_summary.1} parent=35 // pred_fallthru
          _
        // Predicated region
        $region49: #{cradio_v2_summary.1} parent=35 // pred_check
          %p543 = pneg %p231
        $region50: #{cradio_v2_summary.1} parent=35 // pred_check_branch
          %545 = sbr.rel (%p543) target = $region52
        $region51: #{cradio_v2_summary.1} parent=35 // pred_region
          %p546 = scmp.lt.s32.totalorder %s28, 1
          %s547 = scalar_select %p546, %s28, 1
          %s548 = smul.addr %s547, 3
          %s549 = scalar_lea.vmem %s8, %s548
        $region52: #{cradio_v2_summary.1} parent=35 // pred_fallthru
          _
        // Predicated region
        $region53: #{cradio_v2_summary.1} parent=35 // pred_check
          %p550 = pneg %p257
        $region54: #{cradio_v2_summary.1} parent=35 // pred_check_branch
          %552 = sbr.rel (%p550) target = $region56
        $region55: #{cradio_v2_summary.1} parent=35 // pred_region
          %p553 = scmp.lt.s32.totalorder %s28, 1
          %s554 = scalar_select %p553, %s28, 1
          %s555 = smul.addr %s554, 16
          %s556 = smul.addr %s555, 4
          %s557 = scalar_lea.vmem %s9, %s556
        $region56: #{cradio_v2_summary.1} parent=35 // pred_fallthru
          _
        // Predicated region
        $region57: #{cradio_v2_summary.1} parent=35 // pred_check
          %p558 = pneg %p283
        $region58: #{cradio_v2_summary.1} parent=35 // pred_check_branch
          %560 = sbr.rel (%p558) target = $region60
        $region59: #{cradio_v2_summary.1} parent=35 // pred_region
          %p561 = scmp.lt.s32.totalorder %s28, 1
          %s562 = scalar_select %p561, %s28, 1
          %s563 = scalar_lea.vmem %s10, %s562
        $region60: #{cradio_v2_summary.1} parent=35 // pred_fallthru
          _
        // Predicated region
        $region61: #{cradio_v2_summary.1} parent=35 // pred_check
          %p564 = pneg %p309
        $region62: #{cradio_v2_summary.1} parent=35 // pred_check_branch
          %566 = sbr.rel (%p564) target = $region64
        $region63: #{cradio_v2_summary.1} parent=35 // pred_region
          %p567 = scmp.lt.s32.totalorder %s28, 1
          %s568 = scalar_select %p567, %s28, 1
          %s569 = scalar_lea.vmem %s11, %s568
        $region64: #{cradio_v2_summary.1} parent=35 // pred_fallthru
          _
        // Predicated region
        $region65: #{cradio_v2_summary.1} parent=35 // pred_check
          %p570 = pneg %p335
        $region66: #{cradio_v2_summary.1} parent=35 // pred_check_branch
          %572 = sbr.rel (%p570) target = $region68
        $region67: #{cradio_v2_summary.1} parent=35 // pred_region
          %p573 = scmp.lt.s32.totalorder %s28, 1
          %s574 = scalar_select %p573, %s28, 1
          %s575 = scalar_lea.vmem %s12, %s574
        $region68: #{cradio_v2_summary.1} parent=35 // pred_fallthru
          _
        // Predicated region
        $region69: #{cradio_v2_summary.1} parent=35 // pred_check
          %p576 = pneg %p361
        $region70: #{cradio_v2_summary.1} parent=35 // pred_check_branch
          %578 = sbr.rel (%p576) target = $region72
        $region71: #{cradio_v2_summary.1} parent=35 // pred_region
          %p579 = scmp.lt.s32.totalorder %s28, 1
          %s580 = scalar_select %p579, %s28, 1
          %s581 = smul.addr %s580, 64
          %s582 = smul.addr %s581, 4
          %s583 = scalar_lea.vmem %s13, %s582
        $region72: #{cradio_v2_summary.1} parent=35 // pred_fallthru
          _
        // Predicated region
        $region73: #{cradio_v2_summary.1} parent=35 // pred_check
          %p584 = pneg %p387
        $region74: #{cradio_v2_summary.1} parent=35 // pred_check_branch
          %586 = sbr.rel (%p584) target = $region76
        $region75: #{cradio_v2_summary.1} parent=35 // pred_region
          %p587 = scmp.lt.s32.totalorder %s28, 1
          %s588 = scalar_select %p587, %s28, 1
          %s589 = smul.addr %s588, 4
          %s590 = scalar_lea.vmem %s14, %s589
        $region76: #{cradio_v2_summary.1} parent=35 // pred_fallthru
          _
        // Predicated region
        $region77: #{cradio_v2_summary.1} parent=35 // pred_check
          %p591 = pneg %p413
        $region78: #{cradio_v2_summary.1} parent=35 // pred_check_branch
          %593 = sbr.rel (%p591) target = $region80
        $region79: #{cradio_v2_summary.1} parent=35 // pred_region
          %p594 = scmp.lt.s32.totalorder %s28, 1
          %s595 = scalar_select %p594, %s28, 1
          %s596 = smul.addr %s595, 64
          %s597 = smul.addr %s596, 4
          %s598 = scalar_lea.vmem %s15, %s597
        $region80: #{cradio_v2_summary.1} parent=35 // pred_fallthru
          _
        // Predicated region
        $region81: #{cradio_v2_summary.1} parent=35 // pred_check
          %p599 = pneg %p439
        $region82: #{cradio_v2_summary.1} parent=35 // pred_check_branch
          %601 = sbr.rel (%p599) target = $region84
        $region83: #{cradio_v2_summary.1} parent=35 // pred_region
          %p602 = scmp.lt.s32.totalorder %s28, 1
          %s603 = scalar_select %p602, %s28, 1
          %s604 = scalar_lea.vmem %s16, %s603
        $region84: #{cradio_v2_summary.1} parent=35 // pred_fallthru
          _
      $region36: #{cradio_v2_summary.1} parent=5 // pred_fallthru
        _
      %p605 = scmp.le.s32.totalorder 1, %s28
      %p606 = scmp.lt.s32.totalorder %s28, 3
      %p607 = pnand %p605, %p606
      %p608 = pneg %p607
      // Predicated region
      $region85: #{cradio_v2_summary.1} parent=5 // pred_check
        _
      $region86: #{cradio_v2_summary.1} parent=5 // pred_check_branch
        %610 = sbr.rel (%p607) target = $region88
      $region87: #{cradio_v2_summary.1} parent=5 // pred_region
        %s611 = ssub.s32 %s28, 1
        // Predicated region
        $region89: #{cradio_v2_summary.1} parent=87 // pred_check
          %p612 = pneg %p70
        $region90: #{cradio_v2_summary.1} parent=87 // pred_check_branch
          %614 = sbr.rel (%p612) target = $region92
        $region91: #{cradio_v2_summary.1} parent=87 // pred_region
          %615 = dma.done [#allocation4], 6144
        $region92: #{cradio_v2_summary.1} parent=87 // pred_fallthru
          _
        %s616 = sand.u32 %s198, 1
        %s617 = scalar_lea.sflag [#allocation7], %s616
        %s618 = sand.u32 %s198, 1
        %s619 = smul.addr %s618, 192
        %s620 = scalar_lea.vmem [#allocation6], %s619
        // Predicated region
        $region93: #{cradio_v2_summary.1} parent=87 // pred_check
          %p621 = pneg %p211
        $region94: #{cradio_v2_summary.1} parent=87 // pred_check_branch
          %623 = sbr.rel (%p621) target = $region96
        $region95: #{cradio_v2_summary.1} parent=87 // pred_region
          %624 = dma.done %s617, 3072
        $region96: #{cradio_v2_summary.1} parent=87 // pred_fallthru
          _
        %p625 = pneg %p49
        %p626 = pneg %p46
        %p627 = pneg %p70
        %p628 = pneg %p67
        %p629 = pneg %p91
        %p630 = pneg %p88
        %p631 = pneg %p112
        %p632 = pneg %p109
        %p633 = pneg %p133
        %p634 = pneg %p130
        %p635 = scmp.lt.s32.totalorder %s33, 1
        %s636 = scalar_select %p635, %s33, 1
        %s637 = scalar_lea.vmem %s5, %s636
        %p638 = pneg %p159
        %p639 = pneg %p156
        %p640 = scmp.lt.s32.totalorder %s33, 1
        %s641 = scalar_select %p640, %s33, 1
        %s642 = scalar_lea.vmem %s6, %s641
        %p643 = pneg %p185
        %p644 = pneg %p182
        %s645 = sand.u32 %s198, 1
        %s646 = scalar_lea.sflag [#allocation7], %s645
        %s647 = sand.u32 %s198, 1
        %s648 = smul.addr %s647, 192
        %s649 = scalar_lea.vmem [#allocation6], %s648
        %p650 = pneg %p211
        %p651 = pneg %p208
        %p652 = scmp.lt.s32.totalorder %s33, 1
        %s653 = scalar_select %p652, %s33, 1
        %s654 = smul.addr %s653, 3
        %s655 = scalar_lea.vmem %s8, %s654
        %p656 = pneg %p237
        %p657 = pneg %p234
        %p658 = scmp.lt.s32.totalorder %s33, 1
        %s659 = scalar_select %p658, %s33, 1
        %s660 = smul.addr %s659, 16
        %s661 = smul.addr %s660, 4
        %s662 = scalar_lea.vmem %s9, %s661
        %p663 = pneg %p263
        %p664 = pneg %p260
        %p665 = scmp.lt.s32.totalorder %s33, 1
        %s666 = scalar_select %p665, %s33, 1
        %s667 = scalar_lea.vmem %s10, %s666
        %p668 = pneg %p289
        %p669 = pneg %p286
        %p670 = scmp.lt.s32.totalorder %s33, 1
        %s671 = scalar_select %p670, %s33, 1
        %s672 = scalar_lea.vmem %s11, %s671
        %p673 = pneg %p315
        %p674 = pneg %p312
        %p675 = scmp.lt.s32.totalorder %s33, 1
        %s676 = scalar_select %p675, %s33, 1
        %s677 = scalar_lea.vmem %s12, %s676
        %p678 = pneg %p341
        %p679 = pneg %p338
        %p680 = scmp.lt.s32.totalorder %s33, 1
        %s681 = scalar_select %p680, %s33, 1
        %s682 = smul.addr %s681, 64
        %s683 = smul.addr %s682, 4
        %s684 = scalar_lea.vmem %s13, %s683
        %p685 = pneg %p367
        %p686 = pneg %p364
        %p687 = scmp.lt.s32.totalorder %s33, 1
        %s688 = scalar_select %p687, %s33, 1
        %s689 = smul.addr %s688, 4
        %s690 = scalar_lea.vmem %s14, %s689
        %p691 = pneg %p393
        %p692 = pneg %p390
        %p693 = scmp.lt.s32.totalorder %s33, 1
        %s694 = scalar_select %p693, %s33, 1
        %s695 = smul.addr %s694, 64
        %s696 = smul.addr %s695, 4
        %s697 = scalar_lea.vmem %s15, %s696
        %p698 = pneg %p419
        %p699 = pneg %p416
        %p700 = scmp.lt.s32.totalorder %s33, 1
        %s701 = scalar_select %p700, %s33, 1
        %s702 = scalar_lea.vmem %s16, %s701
        %p703 = pneg %p445
        %p704 = pneg %p442
        %p705 = pneg %p466
        %p706 = pneg %p463
        %p707 = scmp.lt.s32.totalorder %s33, 1
        %s708 = scalar_select %p707, %s33, 1
        %s709 = scalar_lea.vmem %s5, %s708
        %p710 = scmp.lt.s32.totalorder %s33, 1
        %s711 = scalar_select %p710, %s33, 1
        %s712 = scalar_lea.vmem %s6, %s711
        %p713 = scmp.lt.s32.totalorder %s33, 1
        %s714 = scalar_select %p713, %s33, 1
        %s715 = smul.addr %s714, 3
        %s716 = scalar_lea.vmem %s8, %s715
        %p717 = scmp.lt.s32.totalorder %s33, 1
        %s718 = scalar_select %p717, %s33, 1
        %s719 = smul.addr %s718, 16
        %s720 = smul.addr %s719, 4
        %s721 = scalar_lea.vmem %s9, %s720
        %p722 = scmp.lt.s32.totalorder %s33, 1
        %s723 = scalar_select %p722, %s33, 1
        %s724 = scalar_lea.vmem %s10, %s723
        %p725 = scmp.lt.s32.totalorder %s33, 1
        %s726 = scalar_select %p725, %s33, 1
        %s727 = scalar_lea.vmem %s11, %s726
        %p728 = scmp.lt.s32.totalorder %s33, 1
        %s729 = scalar_select %p728, %s33, 1
        %s730 = scalar_lea.vmem %s12, %s729
        %p731 = scmp.lt.s32.totalorder %s33, 1
        %s732 = scalar_select %p731, %s33, 1
        %s733 = smul.addr %s732, 64
        %s734 = smul.addr %s733, 4
        %s735 = scalar_lea.vmem %s13, %s734
        %p736 = scmp.lt.s32.totalorder %s33, 1
        %s737 = scalar_select %p736, %s33, 1
        %s738 = smul.addr %s737, 4
        %s739 = scalar_lea.vmem %s14, %s738
        %p740 = scmp.lt.s32.totalorder %s33, 1
        %s741 = scalar_select %p740, %s33, 1
        %s742 = smul.addr %s741, 64
        %s743 = smul.addr %s742, 4
        %s744 = scalar_lea.vmem %s15, %s743
        %p745 = scmp.lt.s32.totalorder %s33, 1
        %s746 = scalar_select %p745, %s33, 1
        %s747 = scalar_lea.vmem %s16, %s746
        %p749 = scmp.eq.s32.totalorder %s33, 0
        // Predicated region
        $region97: #{cradio_v2_summary.1} parent=87 // pred_check
          %p750 = pneg %p749
        $region98: #{cradio_v2_summary.1} parent=87 // pred_check_branch
          %752 = sbr.rel (%p750) target = $region100
        $region99: #{cradio_v2_summary.1} parent=87 // pred_region
          %v753 = vld [vmem:[%s0] sm:$0xff]
          %v754 = vld [vmem:[%s0 + $0x8] sm:$0xff]
          %v755 = vld [vmem:[%s0 + $0x10] sm:$0xff]
          %v756 = vld [vmem:[%s0 + $0x18] sm:$0xff]
          %v757 = vld [vmem:[%s0 + $0x20] sm:$0xff]
          %v758 = vld [vmem:[%s0 + $0x28] sm:$0xff]
          %v759 = vld [vmem:[#allocation3] sm:$0xf]
          %v760 = vld [vmem:[#allocation3 + $0x4] sm:$0xf]
          %v761 = vld [vmem:[#allocation3 + $0x8] sm:$0xf]
          %v762 = vld [vmem:[#allocation3 + $0xc] sm:$0xf]
          %v763 = vld [vmem:[#allocation3 + $0x10] sm:$0xf]
          %v764 = vld [vmem:[#allocation3 + $0x14] sm:$0xf]
          %v765 = vld [vmem:[#allocation3 + $0x18] sm:$0xf]
          %v766 = vld [vmem:[#allocation3 + $0x1c] sm:$0xf]
          %v767 = vld [vmem:[#allocation3 + $0x20] sm:$0xf]
          %v768 = vld [vmem:[#allocation3 + $0x24] sm:$0xf]
          %v769 = vld [vmem:[#allocation3 + $0x28] sm:$0xf]
          %v770 = vld [vmem:[#allocation3 + $0x2c] sm:$0xf]
          %v771 = vld [vmem:[#allocation3 + $0x30] sm:$0xf]
          %v772 = vld [vmem:[#allocation3 + $0x34] sm:$0xf]
          %v773 = vld [vmem:[#allocation3 + $0x38] sm:$0xf]
          %v774 = vld [vmem:[#allocation3 + $0x3c] sm:$0xf]
          %v775 = vld [vmem:[#allocation3 + $0x40] sm:$0xf]
          %v776 = vld [vmem:[#allocation3 + $0x44] sm:$0xf]
          %v777 = vld [vmem:[#allocation3 + $0x48] sm:$0xf]
          %v778 = vld [vmem:[#allocation3 + $0x4c] sm:$0xf]
          %v779 = vld [vmem:[#allocation3 + $0x50] sm:$0xf]
          %v780 = vld [vmem:[#allocation3 + $0x54] sm:$0xf]
          %v781 = vld [vmem:[#allocation3 + $0x58] sm:$0xf]
          %v782 = vld [vmem:[#allocation3 + $0x5c] sm:$0xf]
          %v783 = vld [vmem:[#allocation3 + $0x60] sm:$0xf]
          %v784 = vld [vmem:[#allocation3 + $0x64] sm:$0xf]
          %v785 = vld [vmem:[#allocation3 + $0x68] sm:$0xf]
          %v786 = vld [vmem:[#allocation3 + $0x6c] sm:$0xf]
          %v787 = vld [vmem:[#allocation3 + $0x70] sm:$0xf]
          %v788 = vld [vmem:[#allocation3 + $0x74] sm:$0xf]
          %v789 = vld [vmem:[#allocation3 + $0x78] sm:$0xf]
          %v790 = vld [vmem:[#allocation3 + $0x7c] sm:$0xf]
          %v791 = vld [vmem:[#allocation3 + $0x80] sm:$0xf]
          %v792 = vld [vmem:[#allocation3 + $0x84] sm:$0xf]
          %v793 = vld [vmem:[#allocation3 + $0x88] sm:$0xf]
          %v794 = vld [vmem:[#allocation3 + $0x8c] sm:$0xf]
          %v795 = vld [vmem:[#allocation3 + $0x90] sm:$0xf]
          %v796 = vld [vmem:[#allocation3 + $0x94] sm:$0xf]
          %v797 = vld [vmem:[#allocation3 + $0x98] sm:$0xf]
          %v798 = vld [vmem:[#allocation3 + $0x9c] sm:$0xf]
          %v799 = vld [vmem:[#allocation3 + $0xa0] sm:$0xf]
          %v800 = vld [vmem:[#allocation3 + $0xa4] sm:$0xf]
          %v801 = vld [vmem:[#allocation3 + $0xa8] sm:$0xf]
          %v802 = vld [vmem:[#allocation3 + $0xac] sm:$0xf]
          %v803 = vld [vmem:[#allocation3 + $0xb0] sm:$0xf]
          %v804 = vld [vmem:[#allocation3 + $0xb4] sm:$0xf]
          %v805 = vld [vmem:[#allocation3 + $0xb8] sm:$0xf]
          %v806 = vld [vmem:[#allocation3 + $0xbc] sm:$0xf]
          %v807 = vld [vmem:[#allocation3 + $0xc0] sm:$0xf]
          %v808 = vld [vmem:[#allocation3 + $0xc4] sm:$0xf]
          %v809 = vld [vmem:[#allocation3 + $0xc8] sm:$0xf]
          %v810 = vld [vmem:[#allocation3 + $0xcc] sm:$0xf]
          %v811 = vld [vmem:[#allocation3 + $0xd0] sm:$0xf]
          %v812 = vld [vmem:[#allocation3 + $0xd4] sm:$0xf]
          %v813 = vld [vmem:[#allocation3 + $0xd8] sm:$0xf]
          %v814 = vld [vmem:[#allocation3 + $0xdc] sm:$0xf]
          %v815 = vld [vmem:[#allocation3 + $0xe0] sm:$0xf]
          %v816 = vld [vmem:[#allocation3 + $0xe4] sm:$0xf]
          %v817 = vld [vmem:[#allocation3 + $0xe8] sm:$0xf]
          %v818 = vld [vmem:[#allocation3 + $0xec] sm:$0xf]
          %v819 = vld [vmem:[#allocation3 + $0xf0] sm:$0xf]
          %v820 = vld [vmem:[#allocation3 + $0xf4] sm:$0xf]
          %v821 = vld [vmem:[#allocation3 + $0xf8] sm:$0xf]
          %v822 = vld [vmem:[#allocation3 + $0xfc] sm:$0xf]
          %v823 = vld [vmem:[#allocation3 + $0x100] sm:$0xf]
          %v824 = vld [vmem:[#allocation3 + $0x104] sm:$0xf]
          %v825 = vld [vmem:[#allocation3 + $0x108] sm:$0xf]
          %v826 = vld [vmem:[#allocation3 + $0x10c] sm:$0xf]
          %v827 = vld [vmem:[#allocation3 + $0x110] sm:$0xf]
          %v828 = vld [vmem:[#allocation3 + $0x114] sm:$0xf]
          %v829 = vld [vmem:[#allocation3 + $0x118] sm:$0xf]
          %v830 = vld [vmem:[#allocation3 + $0x11c] sm:$0xf]
          %v831 = vld [vmem:[#allocation3 + $0x120] sm:$0xf]
          %v832 = vld [vmem:[#allocation3 + $0x124] sm:$0xf]
          %v833 = vld [vmem:[#allocation3 + $0x128] sm:$0xf]
          %v834 = vld [vmem:[#allocation3 + $0x12c] sm:$0xf]
          %v835 = vld [vmem:[#allocation3 + $0x130] sm:$0xf]
          %v836 = vld [vmem:[#allocation3 + $0x134] sm:$0xf]
          %v837 = vld [vmem:[#allocation3 + $0x138] sm:$0xf]
          %v838 = vld [vmem:[#allocation3 + $0x13c] sm:$0xf]
          %v839 = vld [vmem:[#allocation3 + $0x140] sm:$0xf]
          %v840 = vld [vmem:[#allocation3 + $0x144] sm:$0xf]
          %v841 = vld [vmem:[#allocation3 + $0x148] sm:$0xf]
          %v842 = vld [vmem:[#allocation3 + $0x14c] sm:$0xf]
          %v843 = vld [vmem:[#allocation3 + $0x150] sm:$0xf]
          %v844 = vld [vmem:[#allocation3 + $0x154] sm:$0xf]
          %v845 = vld [vmem:[#allocation3 + $0x158] sm:$0xf]
          %v846 = vld [vmem:[#allocation3 + $0x15c] sm:$0xf]
          %v847 = vld [vmem:[#allocation3 + $0x160] sm:$0xf]
          %v848 = vld [vmem:[#allocation3 + $0x164] sm:$0xf]
          %v849 = vld [vmem:[#allocation3 + $0x168] sm:$0xf]
          %v850 = vld [vmem:[#allocation3 + $0x16c] sm:$0xf]
          %v851 = vld [vmem:[#allocation3 + $0x170] sm:$0xf]
          %v852 = vld [vmem:[#allocation3 + $0x174] sm:$0xf]
          %v853 = vld [vmem:[#allocation3 + $0x178] sm:$0xf]
          %v854 = vld [vmem:[#allocation3 + $0x17c] sm:$0xf]
          %v861 = vunpack.c.l.b16 %v753
          %v862 = vunpack.c.h.b16 %v753
          %v863 = vunpack.c.l.b16 %v754
          %v864 = vunpack.c.h.b16 %v754
          %v865 = vunpack.c.l.b16 %v755
          %v866 = vunpack.c.h.b16 %v755
          %v867 = vunpack.c.l.b16 %v756
          %v868 = vunpack.c.h.b16 %v756
          %v869 = vunpack.c.l.b16 %v757
          %v870 = vunpack.c.h.b16 %v757
          %v871 = vunpack.c.l.b16 %v758
          %v872 = vunpack.c.h.b16 %v758
          %v873 = vpack.c.b16 %v867, %v861
          %v874 = vpack.c.b16 %v868, %v862
          %v875 = vpack.c.b16 %v869, %v863
          %v876 = vpack.c.b16 %v870, %v864
          %v877 = vpack.c.b16 %v871, %v865
          %v878 = vpack.c.b16 %v872, %v866
          %v981 = vunpack.c.l.b16 %v759
          %v982 = vunpack.c.l.b16 %v760
          %v983 = vunpack.c.l.b16 %v761
          %v984 = vunpack.c.l.b16 %v762
          %v985 = vunpack.c.l.b16 %v763
          %v986 = vunpack.c.l.b16 %v764
          %v987 = vunpack.c.l.b16 %v765
          %v988 = vunpack.c.l.b16 %v766
          %v989 = vunpack.c.l.b16 %v767
          %v990 = vunpack.c.l.b16 %v768
          %v991 = vunpack.c.l.b16 %v769
          %v992 = vunpack.c.l.b16 %v770
          %v993 = vunpack.c.l.b16 %v771
          %v994 = vunpack.c.l.b16 %v772
          %v995 = vunpack.c.l.b16 %v773
          %v996 = vunpack.c.l.b16 %v774
          %v997 = vunpack.c.l.b16 %v775
          %v998 = vunpack.c.l.b16 %v776
          %v999 = vunpack.c.l.b16 %v777
          %v1000 = vunpack.c.l.b16 %v778
          %v1001 = vunpack.c.l.b16 %v779
          %v1002 = vunpack.c.l.b16 %v780
          %v1003 = vunpack.c.l.b16 %v781
          %v1004 = vunpack.c.l.b16 %v782
          %v1005 = vunpack.c.l.b16 %v783
          %v1006 = vunpack.c.l.b16 %v784
          %v1007 = vunpack.c.l.b16 %v785
          %v1008 = vunpack.c.l.b16 %v786
          %v1009 = vunpack.c.l.b16 %v787
          %v1010 = vunpack.c.l.b16 %v788
          %v1011 = vunpack.c.l.b16 %v789
          %v1012 = vunpack.c.l.b16 %v790
          %v1013 = vunpack.c.l.b16 %v791
          %v1014 = vunpack.c.l.b16 %v792
          %v1015 = vunpack.c.l.b16 %v793
          %v1016 = vunpack.c.l.b16 %v794
          %v1017 = vunpack.c.l.b16 %v795
          %v1018 = vunpack.c.l.b16 %v796
          %v1019 = vunpack.c.l.b16 %v797
          %v1020 = vunpack.c.l.b16 %v798
          %v1021 = vunpack.c.l.b16 %v799
          %v1022 = vunpack.c.l.b16 %v800
          %v1023 = vunpack.c.l.b16 %v801
          %v1024 = vunpack.c.l.b16 %v802
          %v1025 = vunpack.c.l.b16 %v803
          %v1026 = vunpack.c.l.b16 %v804
          %v1027 = vunpack.c.l.b16 %v805
          %v1028 = vunpack.c.l.b16 %v806
          %v1029 = vunpack.c.l.b16 %v807
          %v1030 = vunpack.c.l.b16 %v808
          %v1031 = vunpack.c.l.b16 %v809
          %v1032 = vunpack.c.l.b16 %v810
          %v1033 = vunpack.c.l.b16 %v811
          %v1034 = vunpack.c.l.b16 %v812
          %v1035 = vunpack.c.l.b16 %v813
          %v1036 = vunpack.c.l.b16 %v814
          %v1037 = vunpack.c.l.b16 %v815
          %v1038 = vunpack.c.l.b16 %v816
          %v1039 = vunpack.c.l.b16 %v817
          %v1040 = vunpack.c.l.b16 %v818
          %v1041 = vunpack.c.l.b16 %v819
          %v1042 = vunpack.c.l.b16 %v820
          %v1043 = vunpack.c.l.b16 %v821
          %v1044 = vunpack.c.l.b16 %v822
          %v1045 = vunpack.c.l.b16 %v823
          %v1046 = vunpack.c.l.b16 %v824
          %v1047 = vunpack.c.l.b16 %v825
          %v1048 = vunpack.c.l.b16 %v826
          %v1049 = vunpack.c.l.b16 %v827
          %v1050 = vunpack.c.l.b16 %v828
          %v1051 = vunpack.c.l.b16 %v829
          %v1052 = vunpack.c.l.b16 %v830
          %v1053 = vunpack.c.l.b16 %v831
          %v1054 = vunpack.c.l.b16 %v832
          %v1055 = vunpack.c.l.b16 %v833
          %v1056 = vunpack.c.l.b16 %v834
          %v1057 = vunpack.c.l.b16 %v835
          %v1058 = vunpack.c.l.b16 %v836
          %v1059 = vunpack.c.l.b16 %v837
          %v1060 = vunpack.c.l.b16 %v838
          %v1061 = vunpack.c.l.b16 %v839
          %v1062 = vunpack.c.l.b16 %v840
          %v1063 = vunpack.c.l.b16 %v841
          %v1064 = vunpack.c.l.b16 %v842
          %v1065 = vunpack.c.l.b16 %v843
          %v1066 = vunpack.c.l.b16 %v844
          %v1067 = vunpack.c.l.b16 %v845
          %v1068 = vunpack.c.l.b16 %v846
          %v1069 = vunpack.c.l.b16 %v847
          %v1070 = vunpack.c.l.b16 %v848
          %v1071 = vunpack.c.l.b16 %v849
          %v1072 = vunpack.c.l.b16 %v850
          %v1073 = vunpack.c.l.b16 %v851
          %v1074 = vunpack.c.l.b16 %v852
          %v1075 = vunpack.c.l.b16 %v853
          %v1076 = vunpack.c.l.b16 %v854
          %v1077 = vpack.c.b16 %v982, %v981
          %v1078 = vpack.c.b16 %v984, %v983
          %v1079 = vpack.c.b16 %v986, %v985
          %v1080 = vpack.c.b16 %v988, %v987
          %v1081 = vpack.c.b16 %v990, %v989
          %v1082 = vpack.c.b16 %v992, %v991
          %v1083 = vpack.c.b16 %v994, %v993
          %v1084 = vpack.c.b16 %v996, %v995
          %v1085 = vpack.c.b16 %v998, %v997
          %v1086 = vpack.c.b16 %v1000, %v999
          %v1087 = vpack.c.b16 %v1002, %v1001
          %v1088 = vpack.c.b16 %v1004, %v1003
          %v1089 = vpack.c.b16 %v1006, %v1005
          %v1090 = vpack.c.b16 %v1008, %v1007
          %v1091 = vpack.c.b16 %v1010, %v1009
          %v1092 = vpack.c.b16 %v1012, %v1011
          %v1093 = vpack.c.b16 %v1014, %v1013
          %v1094 = vpack.c.b16 %v1016, %v1015
          %v1095 = vpack.c.b16 %v1018, %v1017
          %v1096 = vpack.c.b16 %v1020, %v1019
          %v1097 = vpack.c.b16 %v1022, %v1021
          %v1098 = vpack.c.b16 %v1024, %v1023
          %v1099 = vpack.c.b16 %v1026, %v1025
          %v1100 = vpack.c.b16 %v1028, %v1027
          %v1101 = vpack.c.b16 %v1030, %v1029
          %v1102 = vpack.c.b16 %v1032, %v1031
          %v1103 = vpack.c.b16 %v1034, %v1033
          %v1104 = vpack.c.b16 %v1036, %v1035
          %v1105 = vpack.c.b16 %v1038, %v1037
          %v1106 = vpack.c.b16 %v1040, %v1039
          %v1107 = vpack.c.b16 %v1042, %v1041
          %v1108 = vpack.c.b16 %v1044, %v1043
          %v1109 = vpack.c.b16 %v1046, %v1045
          %v1110 = vpack.c.b16 %v1048, %v1047
          %v1111 = vpack.c.b16 %v1050, %v1049
          %v1112 = vpack.c.b16 %v1052, %v1051
          %v1113 = vpack.c.b16 %v1054, %v1053
          %v1114 = vpack.c.b16 %v1056, %v1055
          %v1115 = vpack.c.b16 %v1058, %v1057
          %v1116 = vpack.c.b16 %v1060, %v1059
          %v1117 = vpack.c.b16 %v1062, %v1061
          %v1118 = vpack.c.b16 %v1064, %v1063
          %v1119 = vpack.c.b16 %v1066, %v1065
          %v1120 = vpack.c.b16 %v1068, %v1067
          %v1121 = vpack.c.b16 %v1070, %v1069
          %v1122 = vpack.c.b16 %v1072, %v1071
          %v1123 = vpack.c.b16 %v1074, %v1073
          %v1124 = vpack.c.b16 %v1076, %v1075
          %1173 = vmatprep.subr.bf16.mxu0 0
          %1174 = vmatpush1.bf16.msra.mxu0 %v1077
          %1175 = vmatprep.subr.bf16.mxu0 0
          %1176 = vmatpush1.bf16.msra.mxu0 %v1078
          %1177 = vmatprep.subr.bf16.mxu0 0
          %1178 = vmatpush1.bf16.msra.mxu0 %v1079
          %1179 = vmatprep.subr.bf16.mxu0 0
          %1180 = vmatpush1.bf16.msra.mxu0 %v1080
          %1181 = vmatprep.subr.bf16.mxu0 0
          %1182 = vmatpush1.bf16.msra.mxu0 %v1081
          %1183 = vmatprep.subr.bf16.mxu0 0
          %1184 = vmatpush1.bf16.msra.mxu0 %v1082
          %1185 = vmatprep.subr.bf16.mxu0 0
          %1186 = vmatpush1.bf16.msra.mxu0 %v1083
          %1187 = vmatprep.subr.bf16.mxu0 0
          %1188 = vmatpush1.bf16.msra.mxu0 %v1084
          %1189 = vmatprep.subr.bf16.mxu0 0
          %1190 = vmatpush1.bf16.msra.mxu0 %v1085
          %1191 = vmatprep.subr.bf16.mxu0 0
          %1192 = vmatpush1.bf16.msra.mxu0 %v1086
          %1193 = vmatprep.subr.bf16.mxu0 0
          %1194 = vmatpush1.bf16.msra.mxu0 %v1087
          %1195 = vmatprep.subr.bf16.mxu0 0
          %1196 = vmatpush1.bf16.msra.mxu0 %v1088
          %1197 = vmatprep.subr.bf16.mxu0 0
          %1198 = vmatpush1.bf16.msra.mxu0 %v1089
          %1199 = vmatprep.subr.bf16.mxu0 0
          %1200 = vmatpush1.bf16.msra.mxu0 %v1090
          %1201 = vmatprep.subr.bf16.mxu0 0
          %1202 = vmatpush1.bf16.msra.mxu0 %v1091
          %1203 = vmatprep.subr.bf16.mxu0 0
          %1204 = vmatpush1.bf16.msra.mxu0 %v1092
          %1205 = vmatprep.mubr.bf16.mxu0 %v874
          %1206 = vmatmul.mubr.bf16.gmra.mrb[0].mxu0 %v873
          %v1207 = vpop.f32.mrb[0].mxu0
          %v1208 = vadd.f32 0.0, %v1207
          %v1209 = vpop.f32.mrb[0].mxu0
          %v1210 = vpop.f32.mrb[0].mxu0
          %v1211 = vadd.f32 0.0, %v1210
          %v1212 = vpop.f32.mrb[0].mxu0
          %1213 = vdwg.mxu0
          %1214 = vmatprep.subr.bf16.mxu0 0
          %1215 = vmatpush1.bf16.msra.mxu0 %v1093
          %1216 = vmatprep.subr.bf16.mxu0 0
          %1217 = vmatpush1.bf16.msra.mxu0 %v1094
          %1218 = vmatprep.subr.bf16.mxu0 0
          %1219 = vmatpush1.bf16.msra.mxu0 %v1095
          %1220 = vmatprep.subr.bf16.mxu0 0
          %1221 = vmatpush1.bf16.msra.mxu0 %v1096
          %1222 = vmatprep.subr.bf16.mxu0 0
          %1223 = vmatpush1.bf16.msra.mxu0 %v1097
          %1224 = vmatprep.subr.bf16.mxu0 0
          %1225 = vmatpush1.bf16.msra.mxu0 %v1098
          %1226 = vmatprep.subr.bf16.mxu0 0
          %1227 = vmatpush1.bf16.msra.mxu0 %v1099
          %1228 = vmatprep.subr.bf16.mxu0 0
          %1229 = vmatpush1.bf16.msra.mxu0 %v1100
          %1230 = vmatprep.subr.bf16.mxu0 0
          %1231 = vmatpush1.bf16.msra.mxu0 %v1101
          %1232 = vmatprep.subr.bf16.mxu0 0
          %1233 = vmatpush1.bf16.msra.mxu0 %v1102
          %1234 = vmatprep.subr.bf16.mxu0 0
          %1235 = vmatpush1.bf16.msra.mxu0 %v1103
          %1236 = vmatprep.subr.bf16.mxu0 0
          %1237 = vmatpush1.bf16.msra.mxu0 %v1104
          %1238 = vmatprep.subr.bf16.mxu0 0
          %1239 = vmatpush1.bf16.msra.mxu0 %v1105
          %1240 = vmatprep.subr.bf16.mxu0 0
          %1241 = vmatpush1.bf16.msra.mxu0 %v1106
          %1242 = vmatprep.subr.bf16.mxu0 0
          %1243 = vmatpush1.bf16.msra.mxu0 %v1107
          %1244 = vmatprep.subr.bf16.mxu0 0
          %1245 = vmatpush1.bf16.msra.mxu0 %v1108
          %1246 = vmatprep.mubr.bf16.mxu0 %v876
          %1247 = vmatmul.mubr.bf16.gmra.mrb[0].mxu0 %v875
          %v1248 = vpop.f32.mrb[0].mxu0
          %v1249 = vadd.f32 %v1208, %v1248
          %v1250 = vpop.f32.mrb[0].mxu0
          %v1251 = vpop.f32.mrb[0].mxu0
          %v1252 = vadd.f32 %v1211, %v1251
          %v1253 = vpop.f32.mrb[0].mxu0
          %1254 = vdwg.mxu0
          %1255 = vmatprep.subr.bf16.mxu0 0
          %1256 = vmatpush1.bf16.msra.mxu0 %v1109
          %1257 = vmatprep.subr.bf16.mxu0 0
          %1258 = vmatpush1.bf16.msra.mxu0 %v1110
          %1259 = vmatprep.subr.bf16.mxu0 0
          %1260 = vmatpush1.bf16.msra.mxu0 %v1111
          %1261 = vmatprep.subr.bf16.mxu0 0
          %1262 = vmatpush1.bf16.msra.mxu0 %v1112
          %1263 = vmatprep.subr.bf16.mxu0 0
          %1264 = vmatpush1.bf16.msra.mxu0 %v1113
          %1265 = vmatprep.subr.bf16.mxu0 0
          %1266 = vmatpush1.bf16.msra.mxu0 %v1114
          %1267 = vmatprep.subr.bf16.mxu0 0
          %1268 = vmatpush1.bf16.msra.mxu0 %v1115
          %1269 = vmatprep.subr.bf16.mxu0 0
          %1270 = vmatpush1.bf16.msra.mxu0 %v1116
          %1271 = vmatprep.subr.bf16.mxu0 0
          %1272 = vmatpush1.bf16.msra.mxu0 %v1117
          %1273 = vmatprep.subr.bf16.mxu0 0
          %1274 = vmatpush1.bf16.msra.mxu0 %v1118
          %1275 = vmatprep.subr.bf16.mxu0 0
          %1276 = vmatpush1.bf16.msra.mxu0 %v1119
          %1277 = vmatprep.subr.bf16.mxu0 0
          %1278 = vmatpush1.bf16.msra.mxu0 %v1120
          %1279 = vmatprep.subr.bf16.mxu0 0
          %1280 = vmatpush1.bf16.msra.mxu0 %v1121
          %1281 = vmatprep.subr.bf16.mxu0 0
          %1282 = vmatpush1.bf16.msra.mxu0 %v1122
          %1283 = vmatprep.subr.bf16.mxu0 0
          %1284 = vmatpush1.bf16.msra.mxu0 %v1123
          %1285 = vmatprep.subr.bf16.mxu0 0
          %1286 = vmatpush1.bf16.msra.mxu0 %v1124
          %1287 = vmatprep.mubr.bf16.mxu0 %v878
          %1288 = vmatmul.mubr.bf16.gmra.mrb[0].mxu0 %v877
          %v1289 = vpop.f32.mrb[0].mxu0
          %v1290 = vadd.f32 %v1249, %v1289
          %v1291 = vpop.f32.mrb[0].mxu0
          %v1292 = vpop.f32.mrb[0].mxu0
          %v1293 = vadd.f32 %v1252, %v1292
          %v1294 = vpop.f32.mrb[0].mxu0
          %1295 = vdwg.mxu0
          %v1296 = vld [vmem:[%s2] sm:$0xff]
          %v1297 = vadd.f32 %v1290, %v1296
          %v1298 = vadd.f32 %v1293, %v1296
          %1299 = vst [vmem:[#allocation2] sm:$0xff] %v1297
          %1300 = vst [vmem:[#allocation2 + $0x8] sm:$0xff] %v1298
        $region100: #{cradio_v2_summary.1} parent=87 // pred_fallthru
          _
        %v1301 = vld [vmem:[#allocation2] sm:$0xff]
        %v1302 = vld [vmem:[#allocation2 + $0x8] sm:$0xff]
        %v1303 = vld [vmem:[%s709] sm:$0x1]
        %v1304 = vld [vmem:[%s712] sm:$0x1]
        %1305 = vadd.xlane.f32.xlu0 %v1301
        %v1306 = vpop.xlane.xlu0 %1305
        %1307 = vadd.xlane.f32.xlu0 %v1302
        %v1308 = vpop.xlane.xlu0 %1307
        %v1309 = vrcp.pop 128.0
        %v1310 = vmul.f32 %v1306, %v1309
        %v1311 = vmul.f32 %v1308, %v1309
        %v1312 = vsub.f32 %v1301, %v1310
        %v1313 = vsub.f32 %v1302, %v1311
        %v1314 = vmul.f32 %v1312, %v1312
        %v1315 = vmul.f32 %v1313, %v1313
        %1316 = vadd.xlane.f32.xlu0 %v1314
        %v1317 = vpop.xlane.xlu0 %1316
        %1318 = vadd.xlane.f32.xlu0 %v1315
        %v1319 = vpop.xlane.xlu0 %1318
        %v1320 = vmul.f32 %v1317, %v1309
        %v1321 = vmul.f32 %v1319, %v1309
        %v1322 = vadd.f32 %v1320, 1e-06
        %v1323 = vadd.f32 %v1321, 1e-06
        %v1324 = vrsqrt.pop %v1322
        %v1325 = vrsqrt.pop %v1323
        %v1326 = vmul.f32 %v1312, %v1324
        %v1327 = vmul.f32 %v1313, %v1325
        %v1329 = vlaneseq
        %v1330 = vshrl.u32 %v1329, 7
        %v1331 = vsub.s32 0, %v1330
        %v1332 = vrot.slane %v1303, %v1331
        %v1334 = vmul.f32 %v1326, %v1332
        %v1335 = vmul.f32 %v1327, %v1332
        %v1337 = vlaneseq
        %v1338 = vshrl.u32 %v1337, 7
        %v1339 = vsub.s32 0, %v1338
        %v1340 = vrot.slane %v1304, %v1339
        %v1342 = vadd.f32 %v1334, %v1340
        %v1343 = vadd.f32 %v1335, %v1340
        %v1344 = vpack.c.bf16 %v1343, %v1342
        %v1345 = vld [vmem:[%s620] sm:$0xff]
        %v1346 = vld [vmem:[%s620 + $0x8] sm:$0xf]
        %v1347 = vld [vmem:[%s620 + $0xc] sm:$0xff]
        %v1348 = vld [vmem:[%s620 + $0x14] sm:$0xf]
        %v1349 = vld [vmem:[%s620 + $0x18] sm:$0xff]
        %v1350 = vld [vmem:[%s620 + $0x20] sm:$0xf]
        %v1351 = vld [vmem:[%s620 + $0x24] sm:$0xff]
        %v1352 = vld [vmem:[%s620 + $0x2c] sm:$0xf]
        %v1353 = vld [vmem:[%s620 + $0x30] sm:$0xff]
        %v1354 = vld [vmem:[%s620 + $0x38] sm:$0xf]
        %v1355 = vld [vmem:[%s620 + $0x3c] sm:$0xff]
        %v1356 = vld [vmem:[%s620 + $0x44] sm:$0xf]
        %v1357 = vld [vmem:[%s620 + $0x48] sm:$0xff]
        %v1358 = vld [vmem:[%s620 + $0x50] sm:$0xf]
        %v1359 = vld [vmem:[%s620 + $0x54] sm:$0xff]
        %v1360 = vld [vmem:[%s620 + $0x5c] sm:$0xf]
        %v1361 = vld [vmem:[%s620 + $0x60] sm:$0xff]
        %v1362 = vld [vmem:[%s620 + $0x68] sm:$0xf]
        %v1363 = vld [vmem:[%s620 + $0x6c] sm:$0xff]
        %v1364 = vld [vmem:[%s620 + $0x74] sm:$0xf]
        %v1365 = vld [vmem:[%s620 + $0x78] sm:$0xff]
        %v1366 = vld [vmem:[%s620 + $0x80] sm:$0xf]
        %v1367 = vld [vmem:[%s620 + $0x84] sm:$0xff]
        %v1368 = vld [vmem:[%s620 + $0x8c] sm:$0xf]
        %v1369 = vld [vmem:[%s620 + $0x90] sm:$0xff]
        %v1370 = vld [vmem:[%s620 + $0x98] sm:$0xf]
        %v1371 = vld [vmem:[%s620 + $0x9c] sm:$0xff]
        %v1372 = vld [vmem:[%s620 + $0xa4] sm:$0xf]
        %v1373 = vld [vmem:[%s620 + $0xa8] sm:$0xff]
        %v1374 = vld [vmem:[%s620 + $0xb0] sm:$0xf]
        %v1375 = vld [vmem:[%s620 + $0xb4] sm:$0xff]
        %v1376 = vld [vmem:[%s620 + $0xbc] sm:$0xf]
        %v1377 = vld [vmem:[%s716] sm:$0x7]
        %v1379 = vlaneseq
        %v1380 = vshrl.u32 %v1379, 7
        %v1381 = vsub.s32 0, %v1380
        %v1382 = vrot.slane %v1377, %v1381
        %v1383 = vlaneseq
        %v1384 = vshrl.u32 %v1383, 7
        %v1385 = vsub.s32 1, %v1384
        %v1386 = vrot.slane %v1377, %v1385
        %v1387 = vlaneseq
        %v1388 = vshrl.u32 %v1387, 7
        %v1389 = vsub.s32 2, %v1388
        %v1390 = vrot.slane %v1377, %v1389
        %v1426 = vunpack.c.l.b16 %v1345
        %v1427 = vunpack.c.h.b16 %v1345
        %v1428 = vunpack.c.l.b16 %v1346
        %v1429 = vunpack.c.l.b16 %v1347
        %v1430 = vunpack.c.h.b16 %v1347
        %v1431 = vunpack.c.l.b16 %v1348
        %v1432 = vunpack.c.l.b16 %v1349
        %v1433 = vunpack.c.h.b16 %v1349
        %v1434 = vunpack.c.l.b16 %v1350
        %v1435 = vunpack.c.l.b16 %v1351
        %v1436 = vunpack.c.h.b16 %v1351
        %v1437 = vunpack.c.l.b16 %v1352
        %v1438 = vunpack.c.l.b16 %v1353
        %v1439 = vunpack.c.h.b16 %v1353
        %v1440 = vunpack.c.l.b16 %v1354
        %v1441 = vunpack.c.l.b16 %v1355
        %v1442 = vunpack.c.h.b16 %v1355
        %v1443 = vunpack.c.l.b16 %v1356
        %v1444 = vunpack.c.l.b16 %v1357
        %v1445 = vunpack.c.h.b16 %v1357
        %v1446 = vunpack.c.l.b16 %v1358
        %v1447 = vunpack.c.l.b16 %v1359
        %v1448 = vunpack.c.h.b16 %v1359
        %v1449 = vunpack.c.l.b16 %v1360
        %v1450 = vunpack.c.l.b16 %v1361
        %v1451 = vunpack.c.h.b16 %v1361
        %v1452 = vunpack.c.l.b16 %v1362
        %v1453 = vunpack.c.l.b16 %v1363
        %v1454 = vunpack.c.h.b16 %v1363
        %v1455 = vunpack.c.l.b16 %v1364
        %v1456 = vunpack.c.l.b16 %v1365
        %v1457 = vunpack.c.h.b16 %v1365
        %v1458 = vunpack.c.l.b16 %v1366
        %v1459 = vunpack.c.l.b16 %v1367
        %v1460 = vunpack.c.h.b16 %v1367
        %v1461 = vunpack.c.l.b16 %v1368
        %v1462 = vunpack.c.l.b16 %v1369
        %v1463 = vunpack.c.h.b16 %v1369
        %v1464 = vunpack.c.l.b16 %v1370
        %v1465 = vunpack.c.l.b16 %v1371
        %v1466 = vunpack.c.h.b16 %v1371
        %v1467 = vunpack.c.l.b16 %v1372
        %v1468 = vunpack.c.l.b16 %v1373
        %v1469 = vunpack.c.h.b16 %v1373
        %v1470 = vunpack.c.l.b16 %v1374
        %v1471 = vunpack.c.l.b16 %v1375
        %v1472 = vunpack.c.h.b16 %v1375
        %v1473 = vunpack.c.l.b16 %v1376
        %v1474 = vpack.c.b16 %v1429, %v1426
        %v1475 = vpack.c.b16 %v1430, %v1427
        %v1476 = vpack.c.b16 %v1431, %v1428
        %v1477 = vpack.c.b16 %v1435, %v1432
        %v1478 = vpack.c.b16 %v1436, %v1433
        %v1479 = vpack.c.b16 %v1437, %v1434
        %v1480 = vpack.c.b16 %v1441, %v1438
        %v1481 = vpack.c.b16 %v1442, %v1439
        %v1482 = vpack.c.b16 %v1443, %v1440
        %v1483 = vpack.c.b16 %v1447, %v1444
        %v1484 = vpack.c.b16 %v1448, %v1445
        %v1485 = vpack.c.b16 %v1449, %v1446
        %v1486 = vpack.c.b16 %v1453, %v1450
        %v1487 = vpack.c.b16 %v1454, %v1451
        %v1488 = vpack.c.b16 %v1455, %v1452
        %v1489 = vpack.c.b16 %v1459, %v1456
        %v1490 = vpack.c.b16 %v1460, %v1457
        %v1491 = vpack.c.b16 %v1461, %v1458
        %v1492 = vpack.c.b16 %v1465, %v1462
        %v1493 = vpack.c.b16 %v1466, %v1463
        %v1494 = vpack.c.b16 %v1467, %v1464
        %v1495 = vpack.c.b16 %v1471, %v1468
        %v1496 = vpack.c.b16 %v1472, %v1469
        %v1497 = vpack.c.b16 %v1473, %v1470
        %1522 = vmatprep.subr.bf16.mxu0 %v1475
        %1523 = vmatpush1.bf16.msra.mxu0 %v1474
        %1524 = vmatprep.subr.bf16.mxu0 %v1478
        %1525 = vmatpush1.bf16.msra.mxu0 %v1477
        %1526 = vmatprep.subr.bf16.mxu0 %v1481
        %1527 = vmatpush1.bf16.msra.mxu0 %v1480
        %1528 = vmatprep.subr.bf16.mxu0 %v1484
        %1529 = vmatpush1.bf16.msra.mxu0 %v1483
        %1530 = vmatprep.subr.bf16.mxu0 %v1487
        %1531 = vmatpush1.bf16.msra.mxu0 %v1486
        %1532 = vmatprep.subr.bf16.mxu0 %v1490
        %1533 = vmatpush1.bf16.msra.mxu0 %v1489
        %1534 = vmatprep.subr.bf16.mxu0 %v1493
        %1535 = vmatpush1.bf16.msra.mxu0 %v1492
        %1536 = vmatprep.subr.bf16.mxu0 %v1496
        %1537 = vmatpush1.bf16.msra.mxu0 %v1495
        %1538 = vmatprep.subr.bf16.mxu0 0
        %1539 = vmatpush1.bf16.msra.mxu0 0
        %1540 = vmatprep.subr.bf16.mxu0 0
        %1541 = vmatpush1.bf16.msra.mxu0 0
        %1542 = vmatprep.subr.bf16.mxu0 0
        %1543 = vmatpush1.bf16.msra.mxu0 0
        %1544 = vmatprep.subr.bf16.mxu0 0
        %1545 = vmatpush1.bf16.msra.mxu0 0
        %1546 = vmatprep.subr.bf16.mxu0 0
        %1547 = vmatpush1.bf16.msra.mxu0 0
        %1548 = vmatprep.subr.bf16.mxu0 0
        %1549 = vmatpush1.bf16.msra.mxu0 0
        %1550 = vmatprep.subr.bf16.mxu0 0
        %1551 = vmatpush1.bf16.msra.mxu0 0
        %1552 = vmatprep.subr.bf16.mxu0 0
        %1553 = vmatpush1.bf16.msra.mxu0 0
        %1554 = vmatprep.mubr.bf16.mxu0 0
        %1555 = vmatmul.mubr.bf16.gmra.mrb[0].mxu0 %v1344
        %v1556 = vpop.f32.mrb[0].mxu0
        %v1557 = vadd.f32 %v1382, %v1556
        %v1558 = vpop.f32.mrb[0].mxu0
        %v1559 = vadd.f32 %v1386, %v1558
        %v1560 = vpop.f32.mrb[0].mxu0
        %v1561 = vadd.f32 %v1382, %v1560
        %v1562 = vpop.f32.mrb[0].mxu0
        %v1563 = vadd.f32 %v1386, %v1562
        %1564 = vdwg.mxu0
        %1565 = vmatprep.subr.bf16.mxu0 0
        %1566 = vmatpush1.bf16.msra.mxu0 %v1476
        %1567 = vmatprep.subr.bf16.mxu0 0
        %1568 = vmatpush1.bf16.msra.mxu0 %v1479
        %1569 = vmatprep.subr.bf16.mxu0 0
        %1570 = vmatpush1.bf16.msra.mxu0 %v1482
        %1571 = vmatprep.subr.bf16.mxu0 0
        %1572 = vmatpush1.bf16.msra.mxu0 %v1485
        %1573 = vmatprep.subr.bf16.mxu0 0
        %1574 = vmatpush1.bf16.msra.mxu0 %v1488
        %1575 = vmatprep.subr.bf16.mxu0 0
        %1576 = vmatpush1.bf16.msra.mxu0 %v1491
        %1577 = vmatprep.subr.bf16.mxu0 0
        %1578 = vmatpush1.bf16.msra.mxu0 %v1494
        %1579 = vmatprep.subr.bf16.mxu0 0
        %1580 = vmatpush1.bf16.msra.mxu0 %v1497
        %1581 = vmatprep.subr.bf16.mxu0 0
        %1582 = vmatpush1.bf16.msra.mxu0 0
        %1583 = vmatprep.subr.bf16.mxu0 0
        %1584 = vmatpush1.bf16.msra.mxu0 0
        %1585 = vmatprep.subr.bf16.mxu0 0
        %1586 = vmatpush1.bf16.msra.mxu0 0
        %1587 = vmatprep.subr.bf16.mxu0 0
        %1588 = vmatpush1.bf16.msra.mxu0 0
        %1589 = vmatprep.subr.bf16.mxu0 0
        %1590 = vmatpush1.bf16.msra.mxu0 0
        %1591 = vmatprep.subr.bf16.mxu0 0
        %1592 = vmatpush1.bf16.msra.mxu0 0
        %1593 = vmatprep.subr.bf16.mxu0 0
        %1594 = vmatpush1.bf16.msra.mxu0 0
        %1595 = vmatprep.subr.bf16.mxu0 0
        %1596 = vmatpush1.bf16.msra.mxu0 0
        %1597 = vmatprep.mubr.bf16.mxu0 0
        %1598 = vmatmul.mubr.bf16.gmra.mrb[0].mxu0 %v1344
        %v1599 = vpop.f32.mrb[0].mxu0
        %v1600 = vadd.f32 %v1390, %v1599
        %v1601 = vpop.f32.mrb[0].mxu0
        %v1602 = vpop.f32.mrb[0].mxu0
        %v1603 = vadd.f32 %v1390, %v1602
        %v1604 = vpop.f32.mrb[0].mxu0
        %1605 = vdwg.mxu0
        %v1606 = vlaneseq
        %v1607 = vand.u32 %v1606, 127
        %vm1608 = vcmp.lt.s32.totalorder %v1607, 5
        %v1609 = vsel %vm1608, 0.0, -1e+30
        %v1610 = vld [vmem:[%s721] sm:$0xf]
        %v1611 = vld [vmem:[%s721 + $0x4] sm:$0xf]
        %v1612 = vld [vmem:[%s721 + $0x8] sm:$0xf]
        %v1613 = vld [vmem:[%s721 + $0xc] sm:$0xf]
        %v1614 = vld [vmem:[%s721 + $0x10] sm:$0xf]
        %v1615 = vld [vmem:[%s721 + $0x14] sm:$0xf]
        %v1616 = vld [vmem:[%s721 + $0x18] sm:$0xf]
        %v1617 = vld [vmem:[%s721 + $0x1c] sm:$0xf]
        %v1618 = vld [vmem:[%s721 + $0x20] sm:$0xf]
        %v1619 = vld [vmem:[%s721 + $0x24] sm:$0xf]
        %v1620 = vld [vmem:[%s721 + $0x28] sm:$0xf]
        %v1621 = vld [vmem:[%s721 + $0x2c] sm:$0xf]
        %v1622 = vld [vmem:[%s721 + $0x30] sm:$0xf]
        %v1623 = vld [vmem:[%s721 + $0x34] sm:$0xf]
        %v1624 = vld [vmem:[%s721 + $0x38] sm:$0xf]
        %v1625 = vld [vmem:[%s721 + $0x3c] sm:$0xf]
        %v1626 = vld [vmem:[%s724] sm:$0x1]
        %v1628 = vlaneseq
        %v1629 = vshrl.u32 %v1628, 7
        %v1630 = vsub.s32 0, %v1629
        %v1631 = vrot.slane %v1626, %v1630
        %v1633 = vadd.f32 %v1301, %v1631
        %v1634 = vadd.f32 %v1302, %v1631
        %v1635 = vmul.f32 %v1557, 0.17677669
        %v1636 = vmul.f32 %v1561, 0.17677669
        %v1637 = vpack.c.bf16 %v1635, %v1635
        %v1638 = vpack.c.bf16 %v1636, %v1636
        %v1639 = vpack.c.bf16 %v1559, %v1559
        %v1640 = vpack.c.bf16 %v1563, %v1563
        %vm1641 = vcmask 261120
        %v1643 = vsel %vm1641, %v1637, 0
        %v1646 = vsel %vm1641, %v1639, 0
        %1648 = vmatprep.subr.bf16.mxu0 0
        %1649 = vmatpush1.bf16.xpose.msra.mxu0 %v1646
        %1650 = vmatprep.subr.bf16.mxu0 0
        %1651 = vmatpush1.bf16.xpose.msra.mxu0 0
        %1652 = vmatprep.subr.bf16.mxu0 0
        %1653 = vmatpush1.bf16.xpose.msra.mxu0 0
        %1654 = vmatprep.subr.bf16.mxu0 0
        %1655 = vmatpush1.bf16.xpose.msra.mxu0 0
        %1656 = vmatprep.subr.bf16.mxu0 0
        %1657 = vmatpush1.bf16.xpose.msra.mxu0 0
        %1658 = vmatprep.subr.bf16.mxu0 0
        %1659 = vmatpush1.bf16.xpose.msra.mxu0 0
        %1660 = vmatprep.subr.bf16.mxu0 0
        %1661 = vmatpush1.bf16.xpose.msra.mxu0 0
        %1662 = vmatprep.subr.bf16.mxu0 0
        %1663 = vmatpush1.bf16.xpose.msra.mxu0 0
        %1664 = vmatprep.subr.bf16.mxu0 0
        %1665 = vmatpush1.bf16.xpose.msra.mxu0 0
        %1666 = vmatprep.subr.bf16.mxu0 0
        %1667 = vmatpush1.bf16.xpose.msra.mxu0 0
        %1668 = vmatprep.subr.bf16.mxu0 0
        %1669 = vmatpush1.bf16.xpose.msra.mxu0 0
        %1670 = vmatprep.subr.bf16.mxu0 0
        %1671 = vmatpush1.bf16.xpose.msra.mxu0 0
        %1672 = vmatprep.subr.bf16.mxu0 0
        %1673 = vmatpush1.bf16.xpose.msra.mxu0 0
        %1674 = vmatprep.subr.bf16.mxu0 0
        %1675 = vmatpush1.bf16.xpose.msra.mxu0 0
        %1676 = vmatprep.subr.bf16.mxu0 0
        %1677 = vmatpush1.bf16.xpose.msra.mxu0 0
        %1678 = vmatprep.subr.bf16.mxu0 0
        %1679 = vmatpush1.bf16.xpose.msra.mxu0 0
        %1680 = vmatprep.mubr.bf16.mxu0 0
        %1681 = vmatmul.mubr.bf16.gmra.mrb[0].mxu0 %v1643
        %v1682 = vpop.f32.mrb[0].mxu0
        %v1683 = vadd.f32 %v1609, %v1682
        %v1684 = vpop.f32.mrb[0].mxu0
        %v1685 = vpop.f32.mrb[0].mxu0
        %v1686 = vpop.f32.mrb[0].mxu0
        %1687 = vdwg.mxu0
        %v1689 = vsel %vm1641, %v1638, 0
        %v1692 = vsel %vm1641, %v1640, 0
        %1694 = vmatprep.subr.bf16.mxu0 0
        %1695 = vmatpush1.bf16.xpose.msra.mxu0 %v1692
        %1696 = vmatprep.subr.bf16.mxu0 0
        %1697 = vmatpush1.bf16.xpose.msra.mxu0 0
        %1698 = vmatprep.subr.bf16.mxu0 0
        %1699 = vmatpush1.bf16.xpose.msra.mxu0 0
        %1700 = vmatprep.subr.bf16.mxu0 0
        %1701 = vmatpush1.bf16.xpose.msra.mxu0 0
        %1702 = vmatprep.subr.bf16.mxu0 0
        %1703 = vmatpush1.bf16.xpose.msra.mxu0 0
        %1704 = vmatprep.subr.bf16.mxu0 0
        %1705 = vmatpush1.bf16.xpose.msra.mxu0 0
        %1706 = vmatprep.subr.bf16.mxu0 0
        %1707 = vmatpush1.bf16.xpose.msra.mxu0 0
        %1708 = vmatprep.subr.bf16.mxu0 0
        %1709 = vmatpush1.bf16.xpose.msra.mxu0 0
        %1710 = vmatprep.subr.bf16.mxu0 0
        %1711 = vmatpush1.bf16.xpose.msra.mxu0 0
        %1712 = vmatprep.subr.bf16.mxu0 0
        %1713 = vmatpush1.bf16.xpose.msra.mxu0 0
        %1714 = vmatprep.subr.bf16.mxu0 0
        %1715 = vmatpush1.bf16.xpose.msra.mxu0 0
        %1716 = vmatprep.subr.bf16.mxu0 0
        %1717 = vmatpush1.bf16.xpose.msra.mxu0 0
        %1718 = vmatprep.subr.bf16.mxu0 0
        %1719 = vmatpush1.bf16.xpose.msra.mxu0 0
        %1720 = vmatprep.subr.bf16.mxu0 0
        %1721 = vmatpush1.bf16.xpose.msra.mxu0 0
        %1722 = vmatprep.subr.bf16.mxu0 0
        %1723 = vmatpush1.bf16.xpose.msra.mxu0 0
        %1724 = vmatprep.subr.bf16.mxu0 0
        %1725 = vmatpush1.bf16.xpose.msra.mxu0 0
        %1726 = vmatprep.mubr.bf16.mxu0 0
        %1727 = vmatmul.mubr.bf16.gmra.mrb[0].mxu0 %v1689
        %v1728 = vpop.f32.mrb[0].mxu0
        %v1729 = vadd.f32 %v1609, %v1728
        %v1730 = vpop.f32.mrb[0].mxu0
        %v1731 = vpop.f32.mrb[0].mxu0
        %v1732 = vpop.f32.mrb[0].mxu0
        %1733 = vdwg.mxu0
        %vm1734 = vcmask 64512
        %v1735 = vsel %vm1734, %v1683, -inf
        %1736 = vmax.xlane.f32.xlu0 %v1735
        %v1737 = vpop.xlane.xlu0 %1736
        %v1738 = vsel %vm1734, %v1729, -inf
        %1739 = vmax.xlane.f32.xlu0 %v1738
        %v1740 = vpop.xlane.xlu0 %1739
        %v1741 = vsub.f32 %v1683, %v1737
        %v1742 = vsub.f32 %v1729, %v1740
        %v1743 = vmul.f32 %v1741, 1.442695
        %v1744 = vpow.pop %v1743
        %v1745 = vmul.f32 %v1742, 1.442695
        %v1746 = vpow.pop %v1745
        %v1747 = vsel %vm1734, %v1744, 0.0
        %1748 = vadd.xlane.f32.xlu0 %v1747
        %v1749 = vpop.xlane.xlu0 %1748
        %v1750 = vsel %vm1734, %v1746, 0.0
        %1751 = vadd.xlane.f32.xlu0 %v1750
        %v1752 = vpop.xlane.xlu0 %1751
        %v1753 = vrcp.pop %v1749
        %v1754 = vmul.f32 %v1744, %v1753
        %v1755 = vrcp.pop %v1752
        %v1756 = vmul.f32 %v1746, %v1755
        %v1757 = vpack.c.bf16 %v1754, %v1754
        %v1758 = vpack.c.bf16 %v1756, %v1756
        %v1759 = vpack.c.bf16 %v1600, %v1600
        %v1760 = vpack.c.bf16 %v1603, %v1603
        %v1762 = vsel %vm1734, %v1757, 0
        %vm1764 = vcmask 1043456
        %v1766 = vsel %vm1764, %v1759, 0
        %1768 = vmatprep.subr.bf16.mxu0 0
        %1769 = vmatpush1.bf16.msra.mxu0 %v1766
        %1770 = vmatprep.subr.bf16.mxu0 0
        %1771 = vmatpush1.bf16.msra.mxu0 0
        %1772 = vmatprep.subr.bf16.mxu0 0
        %1773 = vmatpush1.bf16.msra.mxu0 0
        %1774 = vmatprep.subr.bf16.mxu0 0
        %1775 = vmatpush1.bf16.msra.mxu0 0
        %1776 = vmatprep.subr.bf16.mxu0 0
        %1777 = vmatpush1.bf16.msra.mxu0 0
        %1778 = vmatprep.subr.bf16.mxu0 0
        %1779 = vmatpush1.bf16.msra.mxu0 0
        %1780 = vmatprep.subr.bf16.mxu0 0
        %1781 = vmatpush1.bf16.msra.mxu0 0
        %1782 = vmatprep.subr.bf16.mxu0 0
        %1783 = vmatpush1.bf16.msra.mxu0 0
        %1784 = vmatprep.subr.bf16.mxu0 0
        %1785 = vmatpush1.bf16.msra.mxu0 0
        %1786 = vmatprep.subr.bf16.mxu0 0
        %1787 = vmatpush1.bf16.msra.mxu0 0
        %1788 = vmatprep.subr.bf16.mxu0 0
        %1789 = vmatpush1.bf16.msra.mxu0 0
        %1790 = vmatprep.subr.bf16.mxu0 0
        %1791 = vmatpush1.bf16.msra.mxu0 0
        %1792 = vmatprep.subr.bf16.mxu0 0
        %1793 = vmatpush1.bf16.msra.mxu0 0
        %1794 = vmatprep.subr.bf16.mxu0 0
        %1795 = vmatpush1.bf16.msra.mxu0 0
        %1796 = vmatprep.subr.bf16.mxu0 0
        %1797 = vmatpush1.bf16.msra.mxu0 0
        %1798 = vmatprep.subr.bf16.mxu0 0
        %1799 = vmatpush1.bf16.msra.mxu0 0
        %1800 = vmatprep.mubr.bf16.mxu0 0
        %1801 = vmatmul.mubr.bf16.gmra.mrb[0].mxu0 %v1762
        %v1802 = vpop.f32.mrb[0].mxu0
        %v1803 = vadd.f32 0.0, %v1802
        %v1804 = vpop.f32.mrb[0].mxu0
        %v1805 = vpop.f32.mrb[0].mxu0
        %v1806 = vpop.f32.mrb[0].mxu0
        %1807 = vdwg.mxu0
        %v1809 = vsel %vm1734, %v1758, 0
        %v1812 = vsel %vm1764, %v1760, 0
        %1814 = vmatprep.subr.bf16.mxu0 0
        %1815 = vmatpush1.bf16.msra.mxu0 %v1812
        %1816 = vmatprep.subr.bf16.mxu0 0
        %1817 = vmatpush1.bf16.msra.mxu0 0
        %1818 = vmatprep.subr.bf16.mxu0 0
        %1819 = vmatpush1.bf16.msra.mxu0 0
        %1820 = vmatprep.subr.bf16.mxu0 0
        %1821 = vmatpush1.bf16.msra.mxu0 0
        %1822 = vmatprep.subr.bf16.mxu0 0
        %1823 = vmatpush1.bf16.msra.mxu0 0
        %1824 = vmatprep.subr.bf16.mxu0 0
        %1825 = vmatpush1.bf16.msra.mxu0 0
        %1826 = vmatprep.subr.bf16.mxu0 0
        %1827 = vmatpush1.bf16.msra.mxu0 0
        %1828 = vmatprep.subr.bf16.mxu0 0
        %1829 = vmatpush1.bf16.msra.mxu0 0
        %1830 = vmatprep.subr.bf16.mxu0 0
        %1831 = vmatpush1.bf16.msra.mxu0 0
        %1832 = vmatprep.subr.bf16.mxu0 0
        %1833 = vmatpush1.bf16.msra.mxu0 0
        %1834 = vmatprep.subr.bf16.mxu0 0
        %1835 = vmatpush1.bf16.msra.mxu0 0
        %1836 = vmatprep.subr.bf16.mxu0 0
        %1837 = vmatpush1.bf16.msra.mxu0 0
        %1838 = vmatprep.subr.bf16.mxu0 0
        %1839 = vmatpush1.bf16.msra.mxu0 0
        %1840 = vmatprep.subr.bf16.mxu0 0
        %1841 = vmatpush1.bf16.msra.mxu0 0
        %1842 = vmatprep.subr.bf16.mxu0 0
        %1843 = vmatpush1.bf16.msra.mxu0 0
        %1844 = vmatprep.subr.bf16.mxu0 0
        %1845 = vmatpush1.bf16.msra.mxu0 0
        %1846 = vmatprep.mubr.bf16.mxu0 0
        %1847 = vmatmul.mubr.bf16.gmra.mrb[0].mxu0 %v1809
        %v1848 = vpop.f32.mrb[0].mxu0
        %v1849 = vadd.f32 0.0, %v1848
        %v1850 = vpop.f32.mrb[0].mxu0
        %v1851 = vpop.f32.mrb[0].mxu0
        %v1852 = vpop.f32.mrb[0].mxu0
        %1853 = vdwg.mxu0
        %v1854 = vpack.c.bf16 %v1849, %v1803
        %v1859 = vunpack.c.l.b16 %v1610
        %v1860 = vunpack.c.l.b16 %v1611
        %v1861 = vunpack.c.l.b16 %v1612
        %v1862 = vunpack.c.l.b16 %v1613
        %v1863 = vpack.c.b16 %v1860, %v1859
        %v1864 = vpack.c.b16 %v1862, %v1861
        %v1868 = vsel %vm1641, %v1854, 0
        %1870 = vmatprep.subr.bf16.mxu0 0
        %1871 = vmatpush1.bf16.msra.mxu0 %v1863
        %1872 = vmatprep.subr.bf16.mxu0 0
        %1873 = vmatpush1.bf16.msra.mxu0 %v1864
        %1874 = vmatprep.subr.bf16.mxu0 0
        %1875 = vmatpush1.bf16.msra.mxu0 0
        %1876 = vmatprep.subr.bf16.mxu0 0
        %1877 = vmatpush1.bf16.msra.mxu0 0
        %1878 = vmatprep.subr.bf16.mxu0 0
        %1879 = vmatpush1.bf16.msra.mxu0 0
        %1880 = vmatprep.subr.bf16.mxu0 0
        %1881 = vmatpush1.bf16.msra.mxu0 0
        %1882 = vmatprep.subr.bf16.mxu0 0
        %1883 = vmatpush1.bf16.msra.mxu0 0
        %1884 = vmatprep.subr.bf16.mxu0 0
        %1885 = vmatpush1.bf16.msra.mxu0 0
        %1886 = vmatprep.subr.bf16.mxu0 0
        %1887 = vmatpush1.bf16.msra.mxu0 0
        %1888 = vmatprep.subr.bf16.mxu0 0
        %1889 = vmatpush1.bf16.msra.mxu0 0
        %1890 = vmatprep.subr.bf16.mxu0 0
        %1891 = vmatpush1.bf16.msra.mxu0 0
        %1892 = vmatprep.subr.bf16.mxu0 0
        %1893 = vmatpush1.bf16.msra.mxu0 0
        %1894 = vmatprep.subr.bf16.mxu0 0
        %1895 = vmatpush1.bf16.msra.mxu0 0
        %1896 = vmatprep.subr.bf16.mxu0 0
        %1897 = vmatpush1.bf16.msra.mxu0 0
        %1898 = vmatprep.subr.bf16.mxu0 0
        %1899 = vmatpush1.bf16.msra.mxu0 0
        %1900 = vmatprep.subr.bf16.mxu0 0
        %1901 = vmatpush1.bf16.msra.mxu0 0
        %1902 = vmatprep.mubr.bf16.mxu0 0
        %1903 = vmatmul.mubr.bf16.gmra.mrb[0].mxu0 %v1868
        %v1904 = vpop.f32.mrb[0].mxu0
        %v1905 = vadd.f32 0.0, %v1904
        %v1906 = vpop.f32.mrb[0].mxu0
        %v1907 = vpop.f32.mrb[0].mxu0
        %v1908 = vadd.f32 0.0, %v1907
        %v1909 = vpop.f32.mrb[0].mxu0
        %1910 = vdwg.mxu0
        %v1911 = vadd.f32 %v1633, %v1905
        %v1912 = vadd.f32 %v1634, %v1908
        %1914 = vrot.lane.b32.xlu0 %v1637, 96
        %v1915 = vpop.permute.xlu0 %1914
        %1917 = vrot.lane.b32.xlu0 %v1639, 96
        %v1918 = vpop.permute.xlu0 %1917
        %v1920 = vsel %vm1641, %v1915, 0
        %v1923 = vsel %vm1641, %v1918, 0
        %1925 = vmatprep.subr.bf16.mxu0 0
        %1926 = vmatpush1.bf16.xpose.msra.mxu0 %v1923
        %1927 = vmatprep.subr.bf16.mxu0 0
        %1928 = vmatpush1.bf16.xpose.msra.mxu0 0
        %1929 = vmatprep.subr.bf16.mxu0 0
        %1930 = vmatpush1.bf16.xpose.msra.mxu0 0
        %1931 = vmatprep.subr.bf16.mxu0 0
        %1932 = vmatpush1.bf16.xpose.msra.mxu0 0
        %1933 = vmatprep.subr.bf16.mxu0 0
        %1934 = vmatpush1.bf16.xpose.msra.mxu0 0
        %1935 = vmatprep.subr.bf16.mxu0 0
        %1936 = vmatpush1.bf16.xpose.msra.mxu0 0
        %1937 = vmatprep.subr.bf16.mxu0 0
        %1938 = vmatpush1.bf16.xpose.msra.mxu0 0
        %1939 = vmatprep.subr.bf16.mxu0 0
        %1940 = vmatpush1.bf16.xpose.msra.mxu0 0
        %1941 = vmatprep.subr.bf16.mxu0 0
        %1942 = vmatpush1.bf16.xpose.msra.mxu0 0
        %1943 = vmatprep.subr.bf16.mxu0 0
        %1944 = vmatpush1.bf16.xpose.msra.mxu0 0
        %1945 = vmatprep.subr.bf16.mxu0 0
        %1946 = vmatpush1.bf16.xpose.msra.mxu0 0
        %1947 = vmatprep.subr.bf16.mxu0 0
        %1948 = vmatpush1.bf16.xpose.msra.mxu0 0
        %1949 = vmatprep.subr.bf16.mxu0 0
        %1950 = vmatpush1.bf16.xpose.msra.mxu0 0
        %1951 = vmatprep.subr.bf16.mxu0 0
        %1952 = vmatpush1.bf16.xpose.msra.mxu0 0
        %1953 = vmatprep.subr.bf16.mxu0 0
        %1954 = vmatpush1.bf16.xpose.msra.mxu0 0
        %1955 = vmatprep.subr.bf16.mxu0 0
        %1956 = vmatpush1.bf16.xpose.msra.mxu0 0
        %1957 = vmatprep.mubr.bf16.mxu0 0
        %1958 = vmatmul.mubr.bf16.gmra.mrb[0].mxu0 %v1920
        %v1959 = vpop.f32.mrb[0].mxu0
        %v1960 = vadd.f32 %v1609, %v1959
        %v1961 = vpop.f32.mrb[0].mxu0
        %v1962 = vpop.f32.mrb[0].mxu0
        %v1963 = vpop.f32.mrb[0].mxu0
        %1964 = vdwg.mxu0
        %1966 = vrot.lane.b32.xlu0 %v1638, 96
        %v1967 = vpop.permute.xlu0 %1966
        %1969 = vrot.lane.b32.xlu0 %v1640, 96
        %v1970 = vpop.permute.xlu0 %1969
        %v1972 = vsel %vm1641, %v1967, 0
        %v1975 = vsel %vm1641, %v1970, 0
        %1977 = vmatprep.subr.bf16.mxu0 0
        %1978 = vmatpush1.bf16.xpose.msra.mxu0 %v1975
        %1979 = vmatprep.subr.bf16.mxu0 0
        %1980 = vmatpush1.bf16.xpose.msra.mxu0 0
        %1981 = vmatprep.subr.bf16.mxu0 0
        %1982 = vmatpush1.bf16.xpose.msra.mxu0 0
        %1983 = vmatprep.subr.bf16.mxu0 0
        %1984 = vmatpush1.bf16.xpose.msra.mxu0 0
        %1985 = vmatprep.subr.bf16.mxu0 0
        %1986 = vmatpush1.bf16.xpose.msra.mxu0 0
        %1987 = vmatprep.subr.bf16.mxu0 0
        %1988 = vmatpush1.bf16.xpose.msra.mxu0 0
        %1989 = vmatprep.subr.bf16.mxu0 0
        %1990 = vmatpush1.bf16.xpose.msra.mxu0 0
        %1991 = vmatprep.subr.bf16.mxu0 0
        %1992 = vmatpush1.bf16.xpose.msra.mxu0 0
        %1993 = vmatprep.subr.bf16.mxu0 0
        %1994 = vmatpush1.bf16.xpose.msra.mxu0 0
        %1995 = vmatprep.subr.bf16.mxu0 0
        %1996 = vmatpush1.bf16.xpose.msra.mxu0 0
        %1997 = vmatprep.subr.bf16.mxu0 0
        %1998 = vmatpush1.bf16.xpose.msra.mxu0 0
        %1999 = vmatprep.subr.bf16.mxu0 0
        %2000 = vmatpush1.bf16.xpose.msra.mxu0 0
        %2001 = vmatprep.subr.bf16.mxu0 0
        %2002 = vmatpush1.bf16.xpose.msra.mxu0 0
        %2003 = vmatprep.subr.bf16.mxu0 0
        %2004 = vmatpush1.bf16.xpose.msra.mxu0 0
        %2005 = vmatprep.subr.bf16.mxu0 0
        %2006 = vmatpush1.bf16.xpose.msra.mxu0 0
        %2007 = vmatprep.subr.bf16.mxu0 0
        %2008 = vmatpush1.bf16.xpose.msra.mxu0 0
        %2009 = vmatprep.mubr.bf16.mxu0 0
        %2010 = vmatmul.mubr.bf16.gmra.mrb[0].mxu0 %v1972
        %v2011 = vpop.f32.mrb[0].mxu0
        %v2012 = vadd.f32 %v1609, %v2011
        %v2013 = vpop.f32.mrb[0].mxu0
        %v2014 = vpop.f32.mrb[0].mxu0
        %v2015 = vpop.f32.mrb[0].mxu0
        %2016 = vdwg.mxu0
        %v2017 = vsel %vm1734, %v1960, -inf
        %2018 = vmax.xlane.f32.xlu0 %v2017
        %v2019 = vpop.xlane.xlu0 %2018
        %v2020 = vsel %vm1734, %v2012, -inf
        %2021 = vmax.xlane.f32.xlu0 %v2020
        %v2022 = vpop.xlane.xlu0 %2021
        %v2023 = vsub.f32 %v1960, %v2019
        %v2024 = vsub.f32 %v2012, %v2022
        %v2025 = vmul.f32 %v2023, 1.442695
        %v2026 = vpow.pop %v2025
        %v2027 = vmul.f32 %v2024, 1.442695
        %v2028 = vpow.pop %v2027
        %v2029 = vsel %vm1734, %v2026, 0.0
        %2030 = vadd.xlane.f32.xlu0 %v2029
        %v2031 = vpop.xlane.xlu0 %2030
        %v2032 = vsel %vm1734, %v2028, 0.0
        %2033 = vadd.xlane.f32.xlu0 %v2032
        %v2034 = vpop.xlane.xlu0 %2033
        %v2035 = vrcp.pop %v2031
        %v2036 = vmul.f32 %v2026, %v2035
        %v2037 = vrcp.pop %v2034
        %v2038 = vmul.f32 %v2028, %v2037
        %v2039 = vpack.c.bf16 %v2036, %v2036
        %v2040 = vpack.c.bf16 %v2038, %v2038
        %2042 = vrot.lane.b32.xlu0 %v1759, 96
        %v2043 = vpop.permute.xlu0 %2042
        %v2045 = vsel %vm1734, %v2039, 0
        %v2048 = vsel %vm1764, %v2043, 0
        %2050 = vmatprep.subr.bf16.mxu0 0
        %2051 = vmatpush1.bf16.msra.mxu0 %v2048
        %2052 = vmatprep.subr.bf16.mxu0 0
        %2053 = vmatpush1.bf16.msra.mxu0 0
        %2054 = vmatprep.subr.bf16.mxu0 0
        %2055 = vmatpush1.bf16.msra.mxu0 0
        %2056 = vmatprep.subr.bf16.mxu0 0
        %2057 = vmatpush1.bf16.msra.mxu0 0
        %2058 = vmatprep.subr.bf16.mxu0 0
        %2059 = vmatpush1.bf16.msra.mxu0 0
        %2060 = vmatprep.subr.bf16.mxu0 0
        %2061 = vmatpush1.bf16.msra.mxu0 0
        %2062 = vmatprep.subr.bf16.mxu0 0
        %2063 = vmatpush1.bf16.msra.mxu0 0
        %2064 = vmatprep.subr.bf16.mxu0 0
        %2065 = vmatpush1.bf16.msra.mxu0 0
        %2066 = vmatprep.subr.bf16.mxu0 0
        %2067 = vmatpush1.bf16.msra.mxu0 0
        %2068 = vmatprep.subr.bf16.mxu0 0
        %2069 = vmatpush1.bf16.msra.mxu0 0
        %2070 = vmatprep.subr.bf16.mxu0 0
        %2071 = vmatpush1.bf16.msra.mxu0 0
        %2072 = vmatprep.subr.bf16.mxu0 0
        %2073 = vmatpush1.bf16.msra.mxu0 0
        %2074 = vmatprep.subr.bf16.mxu0 0
        %2075 = vmatpush1.bf16.msra.mxu0 0
        %2076 = vmatprep.subr.bf16.mxu0 0
        %2077 = vmatpush1.bf16.msra.mxu0 0
        %2078 = vmatprep.subr.bf16.mxu0 0
        %2079 = vmatpush1.bf16.msra.mxu0 0
        %2080 = vmatprep.subr.bf16.mxu0 0
        %2081 = vmatpush1.bf16.msra.mxu0 0
        %2082 = vmatprep.mubr.bf16.mxu0 0
        %2083 = vmatmul.mubr.bf16.gmra.mrb[0].mxu0 %v2045
        %v2084 = vpop.f32.mrb[0].mxu0
        %v2085 = vadd.f32 0.0, %v2084
        %v2086 = vpop.f32.mrb[0].mxu0
        %v2087 = vpop.f32.mrb[0].mxu0
        %v2088 = vpop.f32.mrb[0].mxu0
        %2089 = vdwg.mxu0
        %2091 = vrot.lane.b32.xlu0 %v1760, 96
        %v2092 = vpop.permute.xlu0 %2091
        %v2094 = vsel %vm1734, %v2040, 0
        %v2097 = vsel %vm1764, %v2092, 0
        %2099 = vmatprep.subr.bf16.mxu0 0
        %2100 = vmatpush1.bf16.msra.mxu0 %v2097
        %2101 = vmatprep.subr.bf16.mxu0 0
        %2102 = vmatpush1.bf16.msra.mxu0 0
        %2103 = vmatprep.subr.bf16.mxu0 0
        %2104 = vmatpush1.bf16.msra.mxu0 0
        %2105 = vmatprep.subr.bf16.mxu0 0
        %2106 = vmatpush1.bf16.msra.mxu0 0
        %2107 = vmatprep.subr.bf16.mxu0 0
        %2108 = vmatpush1.bf16.msra.mxu0 0
        %2109 = vmatprep.subr.bf16.mxu0 0
        %2110 = vmatpush1.bf16.msra.mxu0 0
        %2111 = vmatprep.subr.bf16.mxu0 0
        %2112 = vmatpush1.bf16.msra.mxu0 0
        %2113 = vmatprep.subr.bf16.mxu0 0
        %2114 = vmatpush1.bf16.msra.mxu0 0
        %2115 = vmatprep.subr.bf16.mxu0 0
        %2116 = vmatpush1.bf16.msra.mxu0 0
        %2117 = vmatprep.subr.bf16.mxu0 0
        %2118 = vmatpush1.bf16.msra.mxu0 0
        %2119 = vmatprep.subr.bf16.mxu0 0
        %2120 = vmatpush1.bf16.msra.mxu0 0
        %2121 = vmatprep.subr.bf16.mxu0 0
        %2122 = vmatpush1.bf16.msra.mxu0 0
        %2123 = vmatprep.subr.bf16.mxu0 0
        %2124 = vmatpush1.bf16.msra.mxu0 0
        %2125 = vmatprep.subr.bf16.mxu0 0
        %2126 = vmatpush1.bf16.msra.mxu0 0
        %2127 = vmatprep.subr.bf16.mxu0 0
        %2128 = vmatpush1.bf16.msra.mxu0 0
        %2129 = vmatprep.subr.bf16.mxu0 0
        %2130 = vmatpush1.bf16.msra.mxu0 0
        %2131 = vmatprep.mubr.bf16.mxu0 0
        %2132 = vmatmul.mubr.bf16.gmra.mrb[0].mxu0 %v2094
        %v2133 = vpop.f32.mrb[0].mxu0
        %v2134 = vadd.f32 0.0, %v2133
        %v2135 = vpop.f32.mrb[0].mxu0
        %v2136 = vpop.f32.mrb[0].mxu0
        %v2137 = vpop.f32.mrb[0].mxu0
        %2138 = vdwg.mxu0
        %v2139 = vpack.c.bf16 %v2134, %v2085
        %v2144 = vunpack.c.l.b16 %v1614
        %v2145 = vunpack.c.l.b16 %v1615
        %v2146 = vunpack.c.l.b16 %v1616
        %v2147 = vunpack.c.l.b16 %v1617
        %v2148 = vpack.c.b16 %v2145, %v2144
        %v2149 = vpack.c.b16 %v2147, %v2146
        %v2153 = vsel %vm1641, %v2139, 0
        %2155 = vmatprep.subr.bf16.mxu0 0
        %2156 = vmatpush1.bf16.msra.mxu0 %v2148
        %2157 = vmatprep.subr.bf16.mxu0 0
        %2158 = vmatpush1.bf16.msra.mxu0 %v2149
        %2159 = vmatprep.subr.bf16.mxu0 0
        %2160 = vmatpush1.bf16.msra.mxu0 0
        %2161 = vmatprep.subr.bf16.mxu0 0
        %2162 = vmatpush1.bf16.msra.mxu0 0
        %2163 = vmatprep.subr.bf16.mxu0 0
        %2164 = vmatpush1.bf16.msra.mxu0 0
        %2165 = vmatprep.subr.bf16.mxu0 0
        %2166 = vmatpush1.bf16.msra.mxu0 0
        %2167 = vmatprep.subr.bf16.mxu0 0
        %2168 = vmatpush1.bf16.msra.mxu0 0
        %2169 = vmatprep.subr.bf16.mxu0 0
        %2170 = vmatpush1.bf16.msra.mxu0 0
        %2171 = vmatprep.subr.bf16.mxu0 0
        %2172 = vmatpush1.bf16.msra.mxu0 0
        %2173 = vmatprep.subr.bf16.mxu0 0
        %2174 = vmatpush1.bf16.msra.mxu0 0
        %2175 = vmatprep.subr.bf16.mxu0 0
        %2176 = vmatpush1.bf16.msra.mxu0 0
        %2177 = vmatprep.subr.bf16.mxu0 0
        %2178 = vmatpush1.bf16.msra.mxu0 0
        %2179 = vmatprep.subr.bf16.mxu0 0
        %2180 = vmatpush1.bf16.msra.mxu0 0
        %2181 = vmatprep.subr.bf16.mxu0 0
        %2182 = vmatpush1.bf16.msra.mxu0 0
        %2183 = vmatprep.subr.bf16.mxu0 0
        %2184 = vmatpush1.bf16.msra.mxu0 0
        %2185 = vmatprep.subr.bf16.mxu0 0
        %2186 = vmatpush1.bf16.msra.mxu0 0
        %2187 = vmatprep.mubr.bf16.mxu0 0
        %2188 = vmatmul.mubr.bf16.gmra.mrb[0].mxu0 %v2153
        %v2189 = vpop.f32.mrb[0].mxu0
        %v2190 = vadd.f32 0.0, %v2189
        %v2191 = vpop.f32.mrb[0].mxu0
        %v2192 = vpop.f32.mrb[0].mxu0
        %v2193 = vadd.f32 0.0, %v2192
        %v2194 = vpop.f32.mrb[0].mxu0
        %2195 = vdwg.mxu0
        %v2196 = vadd.f32 %v1911, %v2190
        %v2197 = vadd.f32 %v1912, %v2193
        %2198 = vrot.lane.b32.xlu0 %v1637, 64
        %v2199 = vpop.permute.xlu0 %2198
        %2200 = vrot.lane.b32.xlu0 %v1639, 64
        %v2201 = vpop.permute.xlu0 %2200
        %v2203 = vsel %vm1641, %v2199, 0
        %v2206 = vsel %vm1641, %v2201, 0
        %2208 = vmatprep.subr.bf16.mxu0 0
        %2209 = vmatpush1.bf16.xpose.msra.mxu0 %v2206
        %2210 = vmatprep.subr.bf16.mxu0 0
        %2211 = vmatpush1.bf16.xpose.msra.mxu0 0
        %2212 = vmatprep.subr.bf16.mxu0 0
        %2213 = vmatpush1.bf16.xpose.msra.mxu0 0
        %2214 = vmatprep.subr.bf16.mxu0 0
        %2215 = vmatpush1.bf16.xpose.msra.mxu0 0
        %2216 = vmatprep.subr.bf16.mxu0 0
        %2217 = vmatpush1.bf16.xpose.msra.mxu0 0
        %2218 = vmatprep.subr.bf16.mxu0 0
        %2219 = vmatpush1.bf16.xpose.msra.mxu0 0
        %2220 = vmatprep.subr.bf16.mxu0 0
        %2221 = vmatpush1.bf16.xpose.msra.mxu0 0
        %2222 = vmatprep.subr.bf16.mxu0 0
        %2223 = vmatpush1.bf16.xpose.msra.mxu0 0
        %2224 = vmatprep.subr.bf16.mxu0 0
        %2225 = vmatpush1.bf16.xpose.msra.mxu0 0
        %2226 = vmatprep.subr.bf16.mxu0 0
        %2227 = vmatpush1.bf16.xpose.msra.mxu0 0
        %2228 = vmatprep.subr.bf16.mxu0 0
        %2229 = vmatpush1.bf16.xpose.msra.mxu0 0
        %2230 = vmatprep.subr.bf16.mxu0 0
        %2231 = vmatpush1.bf16.xpose.msra.mxu0 0
        %2232 = vmatprep.subr.bf16.mxu0 0
        %2233 = vmatpush1.bf16.xpose.msra.mxu0 0
        %2234 = vmatprep.subr.bf16.mxu0 0
        %2235 = vmatpush1.bf16.xpose.msra.mxu0 0
        %2236 = vmatprep.subr.bf16.mxu0 0
        %2237 = vmatpush1.bf16.xpose.msra.mxu0 0
        %2238 = vmatprep.subr.bf16.mxu0 0
        %2239 = vmatpush1.bf16.xpose.msra.mxu0 0
        %2240 = vmatprep.mubr.bf16.mxu0 0
        %2241 = vmatmul.mubr.bf16.gmra.mrb[0].mxu0 %v2203
        %v2242 = vpop.f32.mrb[0].mxu0
        %v2243 = vadd.f32 %v1609, %v2242
        %v2244 = vpop.f32.mrb[0].mxu0
        %v2245 = vpop.f32.mrb[0].mxu0
        %v2246 = vpop.f32.mrb[0].mxu0
        %2247 = vdwg.mxu0
        %2248 = vrot.lane.b32.xlu0 %v1638, 64
        %v2249 = vpop.permute.xlu0 %2248
        %2250 = vrot.lane.b32.xlu0 %v1640, 64
        %v2251 = vpop.permute.xlu0 %2250
        %v2253 = vsel %vm1641, %v2249, 0
        %v2256 = vsel %vm1641, %v2251, 0
        %2258 = vmatprep.subr.bf16.mxu0 0
        %2259 = vmatpush1.bf16.xpose.msra.mxu0 %v2256
        %2260 = vmatprep.subr.bf16.mxu0 0
        %2261 = vmatpush1.bf16.xpose.msra.mxu0 0
        %2262 = vmatprep.subr.bf16.mxu0 0
        %2263 = vmatpush1.bf16.xpose.msra.mxu0 0
        %2264 = vmatprep.subr.bf16.mxu0 0
        %2265 = vmatpush1.bf16.xpose.msra.mxu0 0
        %2266 = vmatprep.subr.bf16.mxu0 0
        %2267 = vmatpush1.bf16.xpose.msra.mxu0 0
        %2268 = vmatprep.subr.bf16.mxu0 0
        %2269 = vmatpush1.bf16.xpose.msra.mxu0 0
        %2270 = vmatprep.subr.bf16.mxu0 0
        %2271 = vmatpush1.bf16.xpose.msra.mxu0 0
        %2272 = vmatprep.subr.bf16.mxu0 0
        %2273 = vmatpush1.bf16.xpose.msra.mxu0 0
        %2274 = vmatprep.subr.bf16.mxu0 0
        %2275 = vmatpush1.bf16.xpose.msra.mxu0 0
        %2276 = vmatprep.subr.bf16.mxu0 0
        %2277 = vmatpush1.bf16.xpose.msra.mxu0 0
        %2278 = vmatprep.subr.bf16.mxu0 0
        %2279 = vmatpush1.bf16.xpose.msra.mxu0 0
        %2280 = vmatprep.subr.bf16.mxu0 0
        %2281 = vmatpush1.bf16.xpose.msra.mxu0 0
        %2282 = vmatprep.subr.bf16.mxu0 0
        %2283 = vmatpush1.bf16.xpose.msra.mxu0 0
        %2284 = vmatprep.subr.bf16.mxu0 0
        %2285 = vmatpush1.bf16.xpose.msra.mxu0 0
        %2286 = vmatprep.subr.bf16.mxu0 0
        %2287 = vmatpush1.bf16.xpose.msra.mxu0 0
        %2288 = vmatprep.subr.bf16.mxu0 0
        %2289 = vmatpush1.bf16.xpose.msra.mxu0 0
        %2290 = vmatprep.mubr.bf16.mxu0 0
        %2291 = vmatmul.mubr.bf16.gmra.mrb[0].mxu0 %v2253
        %v2292 = vpop.f32.mrb[0].mxu0
        %v2293 = vadd.f32 %v1609, %v2292
        %v2294 = vpop.f32.mrb[0].mxu0
        %v2295 = vpop.f32.mrb[0].mxu0
        %v2296 = vpop.f32.mrb[0].mxu0
        %2297 = vdwg.mxu0
        %v2298 = vsel %vm1734, %v2243, -inf
        %2299 = vmax.xlane.f32.xlu0 %v2298
        %v2300 = vpop.xlane.xlu0 %2299
        %v2301 = vsel %vm1734, %v2293, -inf
        %2302 = vmax.xlane.f32.xlu0 %v2301
        %v2303 = vpop.xlane.xlu0 %2302
        %v2304 = vsub.f32 %v2243, %v2300
        %v2305 = vsub.f32 %v2293, %v2303
        %v2306 = vmul.f32 %v2304, 1.442695
        %v2307 = vpow.pop %v2306
        %v2308 = vmul.f32 %v2305, 1.442695
        %v2309 = vpow.pop %v2308
        %v2310 = vsel %vm1734, %v2307, 0.0
        %2311 = vadd.xlane.f32.xlu0 %v2310
        %v2312 = vpop.xlane.xlu0 %2311
        %v2313 = vsel %vm1734, %v2309, 0.0
        %2314 = vadd.xlane.f32.xlu0 %v2313
        %v2315 = vpop.xlane.xlu0 %2314
        %v2316 = vrcp.pop %v2312
        %v2317 = vmul.f32 %v2307, %v2316
        %v2318 = vrcp.pop %v2315
        %v2319 = vmul.f32 %v2309, %v2318
        %v2320 = vpack.c.bf16 %v2317, %v2317
        %v2321 = vpack.c.bf16 %v2319, %v2319
        %2322 = vrot.lane.b32.xlu0 %v1759, 64
        %v2323 = vpop.permute.xlu0 %2322
        %v2325 = vsel %vm1734, %v2320, 0
        %v2328 = vsel %vm1764, %v2323, 0
        %2330 = vmatprep.subr.bf16.mxu0 0
        %2331 = vmatpush1.bf16.msra.mxu0 %v2328
        %2332 = vmatprep.subr.bf16.mxu0 0
        %2333 = vmatpush1.bf16.msra.mxu0 0
        %2334 = vmatprep.subr.bf16.mxu0 0
        %2335 = vmatpush1.bf16.msra.mxu0 0
        %2336 = vmatprep.subr.bf16.mxu0 0
        %2337 = vmatpush1.bf16.msra.mxu0 0
        %2338 = vmatprep.subr.bf16.mxu0 0
        %2339 = vmatpush1.bf16.msra.mxu0 0
        %2340 = vmatprep.subr.bf16.mxu0 0
        %2341 = vmatpush1.bf16.msra.mxu0 0
        %2342 = vmatprep.subr.bf16.mxu0 0
        %2343 = vmatpush1.bf16.msra.mxu0 0
        %2344 = vmatprep.subr.bf16.mxu0 0
        %2345 = vmatpush1.bf16.msra.mxu0 0
        %2346 = vmatprep.subr.bf16.mxu0 0
        %2347 = vmatpush1.bf16.msra.mxu0 0
        %2348 = vmatprep.subr.bf16.mxu0 0
        %2349 = vmatpush1.bf16.msra.mxu0 0
        %2350 = vmatprep.subr.bf16.mxu0 0
        %2351 = vmatpush1.bf16.msra.mxu0 0
        %2352 = vmatprep.subr.bf16.mxu0 0
        %2353 = vmatpush1.bf16.msra.mxu0 0
        %2354 = vmatprep.subr.bf16.mxu0 0
        %2355 = vmatpush1.bf16.msra.mxu0 0
        %2356 = vmatprep.subr.bf16.mxu0 0
        %2357 = vmatpush1.bf16.msra.mxu0 0
        %2358 = vmatprep.subr.bf16.mxu0 0
        %2359 = vmatpush1.bf16.msra.mxu0 0
        %2360 = vmatprep.subr.bf16.mxu0 0
        %2361 = vmatpush1.bf16.msra.mxu0 0
        %2362 = vmatprep.mubr.bf16.mxu0 0
        %2363 = vmatmul.mubr.bf16.gmra.mrb[0].mxu0 %v2325
        %v2364 = vpop.f32.mrb[0].mxu0
        %v2365 = vadd.f32 0.0, %v2364
        %v2366 = vpop.f32.mrb[0].mxu0
        %v2367 = vpop.f32.mrb[0].mxu0
        %v2368 = vpop.f32.mrb[0].mxu0
        %2369 = vdwg.mxu0
        %2370 = vrot.lane.b32.xlu0 %v1760, 64
        %v2371 = vpop.permute.xlu0 %2370
        %v2373 = vsel %vm1734, %v2321, 0
        %v2376 = vsel %vm1764, %v2371, 0
        %2378 = vmatprep.subr.bf16.mxu0 0
        %2379 = vmatpush1.bf16.msra.mxu0 %v2376
        %2380 = vmatprep.subr.bf16.mxu0 0
        %2381 = vmatpush1.bf16.msra.mxu0 0
        %2382 = vmatprep.subr.bf16.mxu0 0
        %2383 = vmatpush1.bf16.msra.mxu0 0
        %2384 = vmatprep.subr.bf16.mxu0 0
        %2385 = vmatpush1.bf16.msra.mxu0 0
        %2386 = vmatprep.subr.bf16.mxu0 0
        %2387 = vmatpush1.bf16.msra.mxu0 0
        %2388 = vmatprep.subr.bf16.mxu0 0
        %2389 = vmatpush1.bf16.msra.mxu0 0
        %2390 = vmatprep.subr.bf16.mxu0 0
        %2391 = vmatpush1.bf16.msra.mxu0 0
        %2392 = vmatprep.subr.bf16.mxu0 0
        %2393 = vmatpush1.bf16.msra.mxu0 0
        %2394 = vmatprep.subr.bf16.mxu0 0
        %2395 = vmatpush1.bf16.msra.mxu0 0
        %2396 = vmatprep.subr.bf16.mxu0 0
        %2397 = vmatpush1.bf16.msra.mxu0 0
        %2398 = vmatprep.subr.bf16.mxu0 0
        %2399 = vmatpush1.bf16.msra.mxu0 0
        %2400 = vmatprep.subr.bf16.mxu0 0
        %2401 = vmatpush1.bf16.msra.mxu0 0
        %2402 = vmatprep.subr.bf16.mxu0 0
        %2403 = vmatpush1.bf16.msra.mxu0 0
        %2404 = vmatprep.subr.bf16.mxu0 0
        %2405 = vmatpush1.bf16.msra.mxu0 0
        %2406 = vmatprep.subr.bf16.mxu0 0
        %2407 = vmatpush1.bf16.msra.mxu0 0
        %2408 = vmatprep.subr.bf16.mxu0 0
        %2409 = vmatpush1.bf16.msra.mxu0 0
        %2410 = vmatprep.mubr.bf16.mxu0 0
        %2411 = vmatmul.mubr.bf16.gmra.mrb[0].mxu0 %v2373
        %v2412 = vpop.f32.mrb[0].mxu0
        %v2413 = vadd.f32 0.0, %v2412
        %v2414 = vpop.f32.mrb[0].mxu0
        %v2415 = vpop.f32.mrb[0].mxu0
        %v2416 = vpop.f32.mrb[0].mxu0
        %2417 = vdwg.mxu0
        %v2418 = vpack.c.bf16 %v2413, %v2365
        %v2423 = vunpack.c.l.b16 %v1618
        %v2424 = vunpack.c.l.b16 %v1619
        %v2425 = vunpack.c.l.b16 %v1620
        %v2426 = vunpack.c.l.b16 %v1621
        %v2427 = vpack.c.b16 %v2424, %v2423
        %v2428 = vpack.c.b16 %v2426, %v2425
        %v2432 = vsel %vm1641, %v2418, 0
        %2434 = vmatprep.subr.bf16.mxu0 0
        %2435 = vmatpush1.bf16.msra.mxu0 %v2427
        %2436 = vmatprep.subr.bf16.mxu0 0
        %2437 = vmatpush1.bf16.msra.mxu0 %v2428
        %2438 = vmatprep.subr.bf16.mxu0 0
        %2439 = vmatpush1.bf16.msra.mxu0 0
        %2440 = vmatprep.subr.bf16.mxu0 0
        %2441 = vmatpush1.bf16.msra.mxu0 0
        %2442 = vmatprep.subr.bf16.mxu0 0
        %2443 = vmatpush1.bf16.msra.mxu0 0
        %2444 = vmatprep.subr.bf16.mxu0 0
        %2445 = vmatpush1.bf16.msra.mxu0 0
        %2446 = vmatprep.subr.bf16.mxu0 0
        %2447 = vmatpush1.bf16.msra.mxu0 0
        %2448 = vmatprep.subr.bf16.mxu0 0
        %2449 = vmatpush1.bf16.msra.mxu0 0
        %2450 = vmatprep.subr.bf16.mxu0 0
        %2451 = vmatpush1.bf16.msra.mxu0 0
        %2452 = vmatprep.subr.bf16.mxu0 0
        %2453 = vmatpush1.bf16.msra.mxu0 0
        %2454 = vmatprep.subr.bf16.mxu0 0
        %2455 = vmatpush1.bf16.msra.mxu0 0
        %2456 = vmatprep.subr.bf16.mxu0 0
        %2457 = vmatpush1.bf16.msra.mxu0 0
        %2458 = vmatprep.subr.bf16.mxu0 0
        %2459 = vmatpush1.bf16.msra.mxu0 0
        %2460 = vmatprep.subr.bf16.mxu0 0
        %2461 = vmatpush1.bf16.msra.mxu0 0
        %2462 = vmatprep.subr.bf16.mxu0 0
        %2463 = vmatpush1.bf16.msra.mxu0 0
        %2464 = vmatprep.subr.bf16.mxu0 0
        %2465 = vmatpush1.bf16.msra.mxu0 0
        %2466 = vmatprep.mubr.bf16.mxu0 0
        %2467 = vmatmul.mubr.bf16.gmra.mrb[0].mxu0 %v2432
        %v2468 = vpop.f32.mrb[0].mxu0
        %v2469 = vadd.f32 0.0, %v2468
        %v2470 = vpop.f32.mrb[0].mxu0
        %v2471 = vpop.f32.mrb[0].mxu0
        %v2472 = vadd.f32 0.0, %v2471
        %v2473 = vpop.f32.mrb[0].mxu0
        %2474 = vdwg.mxu0
        %v2475 = vadd.f32 %v2196, %v2469
        %v2476 = vadd.f32 %v2197, %v2472
        %2477 = vrot.lane.b32.xlu0 %v1637, 32
        %v2478 = vpop.permute.xlu0 %2477
        %2479 = vrot.lane.b32.xlu0 %v1639, 32
        %v2480 = vpop.permute.xlu0 %2479
        %v2482 = vsel %vm1641, %v2478, 0
        %v2485 = vsel %vm1641, %v2480, 0
        %2487 = vmatprep.subr.bf16.mxu0 0
        %2488 = vmatpush1.bf16.xpose.msra.mxu0 %v2485
        %2489 = vmatprep.subr.bf16.mxu0 0
        %2490 = vmatpush1.bf16.xpose.msra.mxu0 0
        %2491 = vmatprep.subr.bf16.mxu0 0
        %2492 = vmatpush1.bf16.xpose.msra.mxu0 0
        %2493 = vmatprep.subr.bf16.mxu0 0
        %2494 = vmatpush1.bf16.xpose.msra.mxu0 0
        %2495 = vmatprep.subr.bf16.mxu0 0
        %2496 = vmatpush1.bf16.xpose.msra.mxu0 0
        %2497 = vmatprep.subr.bf16.mxu0 0
        %2498 = vmatpush1.bf16.xpose.msra.mxu0 0
        %2499 = vmatprep.subr.bf16.mxu0 0
        %2500 = vmatpush1.bf16.xpose.msra.mxu0 0
        %2501 = vmatprep.subr.bf16.mxu0 0
        %2502 = vmatpush1.bf16.xpose.msra.mxu0 0
        %2503 = vmatprep.subr.bf16.mxu0 0
        %2504 = vmatpush1.bf16.xpose.msra.mxu0 0
        %2505 = vmatprep.subr.bf16.mxu0 0
        %2506 = vmatpush1.bf16.xpose.msra.mxu0 0
        %2507 = vmatprep.subr.bf16.mxu0 0
        %2508 = vmatpush1.bf16.xpose.msra.mxu0 0
        %2509 = vmatprep.subr.bf16.mxu0 0
        %2510 = vmatpush1.bf16.xpose.msra.mxu0 0
        %2511 = vmatprep.subr.bf16.mxu0 0
        %2512 = vmatpush1.bf16.xpose.msra.mxu0 0
        %2513 = vmatprep.subr.bf16.mxu0 0
        %2514 = vmatpush1.bf16.xpose.msra.mxu0 0
        %2515 = vmatprep.subr.bf16.mxu0 0
        %2516 = vmatpush1.bf16.xpose.msra.mxu0 0
        %2517 = vmatprep.subr.bf16.mxu0 0
        %2518 = vmatpush1.bf16.xpose.msra.mxu0 0
        %2519 = vmatprep.mubr.bf16.mxu0 0
        %2520 = vmatmul.mubr.bf16.gmra.mrb[0].mxu0 %v2482
        %v2521 = vpop.f32.mrb[0].mxu0
        %v2522 = vadd.f32 %v1609, %v2521
        %v2523 = vpop.f32.mrb[0].mxu0
        %v2524 = vpop.f32.mrb[0].mxu0
        %v2525 = vpop.f32.mrb[0].mxu0
        %2526 = vdwg.mxu0
        %2527 = vrot.lane.b32.xlu0 %v1638, 32
        %v2528 = vpop.permute.xlu0 %2527
        %2529 = vrot.lane.b32.xlu0 %v1640, 32
        %v2530 = vpop.permute.xlu0 %2529
        %v2532 = vsel %vm1641, %v2528, 0
        %v2535 = vsel %vm1641, %v2530, 0
        %2537 = vmatprep.subr.bf16.mxu0 0
        %2538 = vmatpush1.bf16.xpose.msra.mxu0 %v2535
        %2539 = vmatprep.subr.bf16.mxu0 0
        %2540 = vmatpush1.bf16.xpose.msra.mxu0 0
        %2541 = vmatprep.subr.bf16.mxu0 0
        %2542 = vmatpush1.bf16.xpose.msra.mxu0 0
        %2543 = vmatprep.subr.bf16.mxu0 0
        %2544 = vmatpush1.bf16.xpose.msra.mxu0 0
        %2545 = vmatprep.subr.bf16.mxu0 0
        %2546 = vmatpush1.bf16.xpose.msra.mxu0 0
        %2547 = vmatprep.subr.bf16.mxu0 0
        %2548 = vmatpush1.bf16.xpose.msra.mxu0 0
        %2549 = vmatprep.subr.bf16.mxu0 0
        %2550 = vmatpush1.bf16.xpose.msra.mxu0 0
        %2551 = vmatprep.subr.bf16.mxu0 0
        %2552 = vmatpush1.bf16.xpose.msra.mxu0 0
        %2553 = vmatprep.subr.bf16.mxu0 0
        %2554 = vmatpush1.bf16.xpose.msra.mxu0 0
        %2555 = vmatprep.subr.bf16.mxu0 0
        %2556 = vmatpush1.bf16.xpose.msra.mxu0 0
        %2557 = vmatprep.subr.bf16.mxu0 0
        %2558 = vmatpush1.bf16.xpose.msra.mxu0 0
        %2559 = vmatprep.subr.bf16.mxu0 0
        %2560 = vmatpush1.bf16.xpose.msra.mxu0 0
        %2561 = vmatprep.subr.bf16.mxu0 0
        %2562 = vmatpush1.bf16.xpose.msra.mxu0 0
        %2563 = vmatprep.subr.bf16.mxu0 0
        %2564 = vmatpush1.bf16.xpose.msra.mxu0 0
        %2565 = vmatprep.subr.bf16.mxu0 0
        %2566 = vmatpush1.bf16.xpose.msra.mxu0 0
        %2567 = vmatprep.subr.bf16.mxu0 0
        %2568 = vmatpush1.bf16.xpose.msra.mxu0 0
        %2569 = vmatprep.mubr.bf16.mxu0 0
        %2570 = vmatmul.mubr.bf16.gmra.mrb[0].mxu0 %v2532
        %v2571 = vpop.f32.mrb[0].mxu0
        %v2572 = vadd.f32 %v1609, %v2571
        %v2573 = vpop.f32.mrb[0].mxu0
        %v2574 = vpop.f32.mrb[0].mxu0
        %v2575 = vpop.f32.mrb[0].mxu0
        %2576 = vdwg.mxu0
        %v2577 = vsel %vm1734, %v2522, -inf
        %2578 = vmax.xlane.f32.xlu0 %v2577
        %v2579 = vpop.xlane.xlu0 %2578
        %v2580 = vsel %vm1734, %v2572, -inf
        %2581 = vmax.xlane.f32.xlu0 %v2580
        %v2582 = vpop.xlane.xlu0 %2581
        %v2583 = vsub.f32 %v2522, %v2579
        %v2584 = vsub.f32 %v2572, %v2582
        %v2585 = vmul.f32 %v2583, 1.442695
        %v2586 = vpow.pop %v2585
        %v2587 = vmul.f32 %v2584, 1.442695
        %v2588 = vpow.pop %v2587
        %v2589 = vsel %vm1734, %v2586, 0.0
        %2590 = vadd.xlane.f32.xlu0 %v2589
        %v2591 = vpop.xlane.xlu0 %2590
        %v2592 = vsel %vm1734, %v2588, 0.0
        %2593 = vadd.xlane.f32.xlu0 %v2592
        %v2594 = vpop.xlane.xlu0 %2593
        %v2595 = vrcp.pop %v2591
        %v2596 = vmul.f32 %v2586, %v2595
        %v2597 = vrcp.pop %v2594
        %v2598 = vmul.f32 %v2588, %v2597
        %v2599 = vpack.c.bf16 %v2596, %v2596
        %v2600 = vpack.c.bf16 %v2598, %v2598
        %2601 = vrot.lane.b32.xlu0 %v1759, 32
        %v2602 = vpop.permute.xlu0 %2601
        %v2604 = vsel %vm1734, %v2599, 0
        %v2607 = vsel %vm1764, %v2602, 0
        %2609 = vmatprep.subr.bf16.mxu0 0
        %2610 = vmatpush1.bf16.msra.mxu0 %v2607
        %2611 = vmatprep.subr.bf16.mxu0 0
        %2612 = vmatpush1.bf16.msra.mxu0 0
        %2613 = vmatprep.subr.bf16.mxu0 0
        %2614 = vmatpush1.bf16.msra.mxu0 0
        %2615 = vmatprep.subr.bf16.mxu0 0
        %2616 = vmatpush1.bf16.msra.mxu0 0
        %2617 = vmatprep.subr.bf16.mxu0 0
        %2618 = vmatpush1.bf16.msra.mxu0 0
        %2619 = vmatprep.subr.bf16.mxu0 0
        %2620 = vmatpush1.bf16.msra.mxu0 0
        %2621 = vmatprep.subr.bf16.mxu0 0
        %2622 = vmatpush1.bf16.msra.mxu0 0
        %2623 = vmatprep.subr.bf16.mxu0 0
        %2624 = vmatpush1.bf16.msra.mxu0 0
        %2625 = vmatprep.subr.bf16.mxu0 0
        %2626 = vmatpush1.bf16.msra.mxu0 0
        %2627 = vmatprep.subr.bf16.mxu0 0
        %2628 = vmatpush1.bf16.msra.mxu0 0
        %2629 = vmatprep.subr.bf16.mxu0 0
        %2630 = vmatpush1.bf16.msra.mxu0 0
        %2631 = vmatprep.subr.bf16.mxu0 0
        %2632 = vmatpush1.bf16.msra.mxu0 0
        %2633 = vmatprep.subr.bf16.mxu0 0
        %2634 = vmatpush1.bf16.msra.mxu0 0
        %2635 = vmatprep.subr.bf16.mxu0 0
        %2636 = vmatpush1.bf16.msra.mxu0 0
        %2637 = vmatprep.subr.bf16.mxu0 0
        %2638 = vmatpush1.bf16.msra.mxu0 0
        %2639 = vmatprep.subr.bf16.mxu0 0
        %2640 = vmatpush1.bf16.msra.mxu0 0
        %2641 = vmatprep.mubr.bf16.mxu0 0
        %2642 = vmatmul.mubr.bf16.gmra.mrb[0].mxu0 %v2604
        %v2643 = vpop.f32.mrb[0].mxu0
        %v2644 = vadd.f32 0.0, %v2643
        %v2645 = vpop.f32.mrb[0].mxu0
        %v2646 = vpop.f32.mrb[0].mxu0
        %v2647 = vpop.f32.mrb[0].mxu0
        %2648 = vdwg.mxu0
        %2649 = vrot.lane.b32.xlu0 %v1760, 32
        %v2650 = vpop.permute.xlu0 %2649
        %v2652 = vsel %vm1734, %v2600, 0
        %v2655 = vsel %vm1764, %v2650, 0
        %2657 = vmatprep.subr.bf16.mxu0 0
        %2658 = vmatpush1.bf16.msra.mxu0 %v2655
        %2659 = vmatprep.subr.bf16.mxu0 0
        %2660 = vmatpush1.bf16.msra.mxu0 0
        %2661 = vmatprep.subr.bf16.mxu0 0
        %2662 = vmatpush1.bf16.msra.mxu0 0
        %2663 = vmatprep.subr.bf16.mxu0 0
        %2664 = vmatpush1.bf16.msra.mxu0 0
        %2665 = vmatprep.subr.bf16.mxu0 0
        %2666 = vmatpush1.bf16.msra.mxu0 0
        %2667 = vmatprep.subr.bf16.mxu0 0
        %2668 = vmatpush1.bf16.msra.mxu0 0
        %2669 = vmatprep.subr.bf16.mxu0 0
        %2670 = vmatpush1.bf16.msra.mxu0 0
        %2671 = vmatprep.subr.bf16.mxu0 0
        %2672 = vmatpush1.bf16.msra.mxu0 0
        %2673 = vmatprep.subr.bf16.mxu0 0
        %2674 = vmatpush1.bf16.msra.mxu0 0
        %2675 = vmatprep.subr.bf16.mxu0 0
        %2676 = vmatpush1.bf16.msra.mxu0 0
        %2677 = vmatprep.subr.bf16.mxu0 0
        %2678 = vmatpush1.bf16.msra.mxu0 0
        %2679 = vmatprep.subr.bf16.mxu0 0
        %2680 = vmatpush1.bf16.msra.mxu0 0
        %2681 = vmatprep.subr.bf16.mxu0 0
        %2682 = vmatpush1.bf16.msra.mxu0 0
        %2683 = vmatprep.subr.bf16.mxu0 0
        %2684 = vmatpush1.bf16.msra.mxu0 0
        %2685 = vmatprep.subr.bf16.mxu0 0
        %2686 = vmatpush1.bf16.msra.mxu0 0
        %2687 = vmatprep.subr.bf16.mxu0 0
        %2688 = vmatpush1.bf16.msra.mxu0 0
        %2689 = vmatprep.mubr.bf16.mxu0 0
        %2690 = vmatmul.mubr.bf16.gmra.mrb[0].mxu0 %v2652
        %v2691 = vpop.f32.mrb[0].mxu0
        %v2692 = vadd.f32 0.0, %v2691
        %v2693 = vpop.f32.mrb[0].mxu0
        %v2694 = vpop.f32.mrb[0].mxu0
        %v2695 = vpop.f32.mrb[0].mxu0
        %2696 = vdwg.mxu0
        %v2697 = vpack.c.bf16 %v2692, %v2644
        %v2702 = vunpack.c.l.b16 %v1622
        %v2703 = vunpack.c.l.b16 %v1623
        %v2704 = vunpack.c.l.b16 %v1624
        %v2705 = vunpack.c.l.b16 %v1625
        %v2706 = vpack.c.b16 %v2703, %v2702
        %v2707 = vpack.c.b16 %v2705, %v2704
        %v2711 = vsel %vm1641, %v2697, 0
        %2713 = vmatprep.subr.bf16.mxu0 0
        %2714 = vmatpush1.bf16.msra.mxu0 %v2706
        %2715 = vmatprep.subr.bf16.mxu0 0
        %2716 = vmatpush1.bf16.msra.mxu0 %v2707
        %2717 = vmatprep.subr.bf16.mxu0 0
        %2718 = vmatpush1.bf16.msra.mxu0 0
        %2719 = vmatprep.subr.bf16.mxu0 0
        %2720 = vmatpush1.bf16.msra.mxu0 0
        %2721 = vmatprep.subr.bf16.mxu0 0
        %2722 = vmatpush1.bf16.msra.mxu0 0
        %2723 = vmatprep.subr.bf16.mxu0 0
        %2724 = vmatpush1.bf16.msra.mxu0 0
        %2725 = vmatprep.subr.bf16.mxu0 0
        %2726 = vmatpush1.bf16.msra.mxu0 0
        %2727 = vmatprep.subr.bf16.mxu0 0
        %2728 = vmatpush1.bf16.msra.mxu0 0
        %2729 = vmatprep.subr.bf16.mxu0 0
        %2730 = vmatpush1.bf16.msra.mxu0 0
        %2731 = vmatprep.subr.bf16.mxu0 0
        %2732 = vmatpush1.bf16.msra.mxu0 0
        %2733 = vmatprep.subr.bf16.mxu0 0
        %2734 = vmatpush1.bf16.msra.mxu0 0
        %2735 = vmatprep.subr.bf16.mxu0 0
        %2736 = vmatpush1.bf16.msra.mxu0 0
        %2737 = vmatprep.subr.bf16.mxu0 0
        %2738 = vmatpush1.bf16.msra.mxu0 0
        %2739 = vmatprep.subr.bf16.mxu0 0
        %2740 = vmatpush1.bf16.msra.mxu0 0
        %2741 = vmatprep.subr.bf16.mxu0 0
        %2742 = vmatpush1.bf16.msra.mxu0 0
        %2743 = vmatprep.subr.bf16.mxu0 0
        %2744 = vmatpush1.bf16.msra.mxu0 0
        %2745 = vmatprep.mubr.bf16.mxu0 0
        %2746 = vmatmul.mubr.bf16.gmra.mrb[0].mxu0 %v2711
        %v2747 = vpop.f32.mrb[0].mxu0
        %v2748 = vadd.f32 0.0, %v2747
        %v2749 = vpop.f32.mrb[0].mxu0
        %v2750 = vpop.f32.mrb[0].mxu0
        %v2751 = vadd.f32 0.0, %v2750
        %v2752 = vpop.f32.mrb[0].mxu0
        %2753 = vdwg.mxu0
        %v2754 = vadd.f32 %v2475, %v2748
        %v2755 = vadd.f32 %v2476, %v2751
        %v2756 = vld [vmem:[%s727] sm:$0x1]
        %v2757 = vld [vmem:[%s730] sm:$0x1]
        %2758 = vadd.xlane.f32.xlu0 %v2754
        %v2759 = vpop.xlane.xlu0 %2758
        %2760 = vadd.xlane.f32.xlu0 %v2755
        %v2761 = vpop.xlane.xlu0 %2760
        %v2762 = vmul.f32 %v2759, %v1309
        %v2763 = vmul.f32 %v2761, %v1309
        %v2764 = vsub.f32 %v2754, %v2762
        %v2765 = vsub.f32 %v2755, %v2763
        %v2766 = vmul.f32 %v2764, %v2764
        %v2767 = vmul.f32 %v2765, %v2765
        %2768 = vadd.xlane.f32.xlu0 %v2766
        %v2769 = vpop.xlane.xlu0 %2768
        %2770 = vadd.xlane.f32.xlu0 %v2767
        %v2771 = vpop.xlane.xlu0 %2770
        %v2772 = vmul.f32 %v2769, %v1309
        %v2773 = vmul.f32 %v2771, %v1309
        %v2774 = vadd.f32 %v2772, 1e-06
        %v2775 = vadd.f32 %v2773, 1e-06
        %v2776 = vrsqrt.pop %v2774
        %v2777 = vrsqrt.pop %v2775
        %v2778 = vmul.f32 %v2764, %v2776
        %v2779 = vmul.f32 %v2765, %v2777
        %v2781 = vlaneseq
        %v2782 = vshrl.u32 %v2781, 7
        %v2783 = vsub.s32 0, %v2782
        %v2784 = vrot.slane %v2756, %v2783
        %v2786 = vmul.f32 %v2778, %v2784
        %v2787 = vmul.f32 %v2779, %v2784
        %v2789 = vlaneseq
        %v2790 = vshrl.u32 %v2789, 7
        %v2791 = vsub.s32 0, %v2790
        %v2792 = vrot.slane %v2757, %v2791
        %v2794 = vadd.f32 %v2786, %v2792
        %v2795 = vadd.f32 %v2787, %v2792
        %v2796 = vpack.c.bf16 %v2795, %v2794
        %v2797 = vld [vmem:[%s735] sm:$0xff]
        %v2798 = vld [vmem:[%s735 + $0x8] sm:$0xff]
        %v2799 = vld [vmem:[%s735 + $0x10] sm:$0xff]
        %v2800 = vld [vmem:[%s735 + $0x18] sm:$0xff]
        %v2801 = vld [vmem:[%s735 + $0x20] sm:$0xff]
        %v2802 = vld [vmem:[%s735 + $0x28] sm:$0xff]
        %v2803 = vld [vmem:[%s735 + $0x30] sm:$0xff]
        %v2804 = vld [vmem:[%s735 + $0x38] sm:$0xff]
        %v2805 = vld [vmem:[%s735 + $0x40] sm:$0xff]
        %v2806 = vld [vmem:[%s735 + $0x48] sm:$0xff]
        %v2807 = vld [vmem:[%s735 + $0x50] sm:$0xff]
        %v2808 = vld [vmem:[%s735 + $0x58] sm:$0xff]
        %v2809 = vld [vmem:[%s735 + $0x60] sm:$0xff]
        %v2810 = vld [vmem:[%s735 + $0x68] sm:$0xff]
        %v2811 = vld [vmem:[%s735 + $0x70] sm:$0xff]
        %v2812 = vld [vmem:[%s735 + $0x78] sm:$0xff]
        %v2813 = vld [vmem:[%s735 + $0x80] sm:$0xff]
        %v2814 = vld [vmem:[%s735 + $0x88] sm:$0xff]
        %v2815 = vld [vmem:[%s735 + $0x90] sm:$0xff]
        %v2816 = vld [vmem:[%s735 + $0x98] sm:$0xff]
        %v2817 = vld [vmem:[%s735 + $0xa0] sm:$0xff]
        %v2818 = vld [vmem:[%s735 + $0xa8] sm:$0xff]
        %v2819 = vld [vmem:[%s735 + $0xb0] sm:$0xff]
        %v2820 = vld [vmem:[%s735 + $0xb8] sm:$0xff]
        %v2821 = vld [vmem:[%s735 + $0xc0] sm:$0xff]
        %v2822 = vld [vmem:[%s735 + $0xc8] sm:$0xff]
        %v2823 = vld [vmem:[%s735 + $0xd0] sm:$0xff]
        %v2824 = vld [vmem:[%s735 + $0xd8] sm:$0xff]
        %v2825 = vld [vmem:[%s735 + $0xe0] sm:$0xff]
        %v2826 = vld [vmem:[%s735 + $0xe8] sm:$0xff]
        %v2827 = vld [vmem:[%s735 + $0xf0] sm:$0xff]
        %v2828 = vld [vmem:[%s735 + $0xf8] sm:$0xff]
        %v2829 = vld [vmem:[%s739] sm:$0xf]
        %v2831 = vlaneseq
        %v2832 = vshrl.u32 %v2831, 7
        %v2833 = vsub.s32 0, %v2832
        %v2834 = vrot.slane %v2829, %v2833
        %v2835 = vlaneseq
        %v2836 = vshrl.u32 %v2835, 7
        %v2837 = vsub.s32 1, %v2836
        %v2838 = vrot.slane %v2829, %v2837
        %v2839 = vlaneseq
        %v2840 = vshrl.u32 %v2839, 7
        %v2841 = vsub.s32 2, %v2840
        %v2842 = vrot.slane %v2829, %v2841
        %v2843 = vlaneseq
        %v2844 = vshrl.u32 %v2843, 7
        %v2845 = vsub.s32 3, %v2844
        %v2846 = vrot.slane %v2829, %v2845
        %v2883 = vunpack.c.l.b16 %v2797
        %v2884 = vunpack.c.h.b16 %v2797
        %v2885 = vunpack.c.l.b16 %v2798
        %v2886 = vunpack.c.h.b16 %v2798
        %v2887 = vunpack.c.l.b16 %v2799
        %v2888 = vunpack.c.h.b16 %v2799
        %v2889 = vunpack.c.l.b16 %v2800
        %v2890 = vunpack.c.h.b16 %v2800
        %v2891 = vunpack.c.l.b16 %v2801
        %v2892 = vunpack.c.h.b16 %v2801
        %v2893 = vunpack.c.l.b16 %v2802
        %v2894 = vunpack.c.h.b16 %v2802
        %v2895 = vunpack.c.l.b16 %v2803
        %v2896 = vunpack.c.h.b16 %v2803
        %v2897 = vunpack.c.l.b16 %v2804
        %v2898 = vunpack.c.h.b16 %v2804
        %v2899 = vunpack.c.l.b16 %v2805
        %v2900 = vunpack.c.h.b16 %v2805
        %v2901 = vunpack.c.l.b16 %v2806
        %v2902 = vunpack.c.h.b16 %v2806
        %v2903 = vunpack.c.l.b16 %v2807
        %v2904 = vunpack.c.h.b16 %v2807
        %v2905 = vunpack.c.l.b16 %v2808
        %v2906 = vunpack.c.h.b16 %v2808
        %v2907 = vunpack.c.l.b16 %v2809
        %v2908 = vunpack.c.h.b16 %v2809
        %v2909 = vunpack.c.l.b16 %v2810
        %v2910 = vunpack.c.h.b16 %v2810
        %v2911 = vunpack.c.l.b16 %v2811
        %v2912 = vunpack.c.h.b16 %v2811
        %v2913 = vunpack.c.l.b16 %v2812
        %v2914 = vunpack.c.h.b16 %v2812
        %v2915 = vunpack.c.l.b16 %v2813
        %v2916 = vunpack.c.h.b16 %v2813
        %v2917 = vunpack.c.l.b16 %v2814
        %v2918 = vunpack.c.h.b16 %v2814
        %v2919 = vunpack.c.l.b16 %v2815
        %v2920 = vunpack.c.h.b16 %v2815
        %v2921 = vunpack.c.l.b16 %v2816
        %v2922 = vunpack.c.h.b16 %v2816
        %v2923 = vunpack.c.l.b16 %v2817
        %v2924 = vunpack.c.h.b16 %v2817
        %v2925 = vunpack.c.l.b16 %v2818
        %v2926 = vunpack.c.h.b16 %v2818
        %v2927 = vunpack.c.l.b16 %v2819
        %v2928 = vunpack.c.h.b16 %v2819
        %v2929 = vunpack.c.l.b16 %v2820
        %v2930 = vunpack.c.h.b16 %v2820
        %v2931 = vunpack.c.l.b16 %v2821
        %v2932 = vunpack.c.h.b16 %v2821
        %v2933 = vunpack.c.l.b16 %v2822
        %v2934 = vunpack.c.h.b16 %v2822
        %v2935 = vunpack.c.l.b16 %v2823
        %v2936 = vunpack.c.h.b16 %v2823
        %v2937 = vunpack.c.l.b16 %v2824
        %v2938 = vunpack.c.h.b16 %v2824
        %v2939 = vunpack.c.l.b16 %v2825
        %v2940 = vunpack.c.h.b16 %v2825
        %v2941 = vunpack.c.l.b16 %v2826
        %v2942 = vunpack.c.h.b16 %v2826
        %v2943 = vunpack.c.l.b16 %v2827
        %v2944 = vunpack.c.h.b16 %v2827
        %v2945 = vunpack.c.l.b16 %v2828
        %v2946 = vunpack.c.h.b16 %v2828
        %v2947 = vpack.c.b16 %v2887, %v2883
        %v2948 = vpack.c.b16 %v2888, %v2884
        %v2949 = vpack.c.b16 %v2889, %v2885
        %v2950 = vpack.c.b16 %v2890, %v2886
        %v2951 = vpack.c.b16 %v2895, %v2891
        %v2952 = vpack.c.b16 %v2896, %v2892
        %v2953 = vpack.c.b16 %v2897, %v2893
        %v2954 = vpack.c.b16 %v2898, %v2894
        %v2955 = vpack.c.b16 %v2903, %v2899
        %v2956 = vpack.c.b16 %v2904, %v2900
        %v2957 = vpack.c.b16 %v2905, %v2901
        %v2958 = vpack.c.b16 %v2906, %v2902
        %v2959 = vpack.c.b16 %v2911, %v2907
        %v2960 = vpack.c.b16 %v2912, %v2908
        %v2961 = vpack.c.b16 %v2913, %v2909
        %v2962 = vpack.c.b16 %v2914, %v2910
        %v2963 = vpack.c.b16 %v2919, %v2915
        %v2964 = vpack.c.b16 %v2920, %v2916
        %v2965 = vpack.c.b16 %v2921, %v2917
        %v2966 = vpack.c.b16 %v2922, %v2918
        %v2967 = vpack.c.b16 %v2927, %v2923
        %v2968 = vpack.c.b16 %v2928, %v2924
        %v2969 = vpack.c.b16 %v2929, %v2925
        %v2970 = vpack.c.b16 %v2930, %v2926
        %v2971 = vpack.c.b16 %v2935, %v2931
        %v2972 = vpack.c.b16 %v2936, %v2932
        %v2973 = vpack.c.b16 %v2937, %v2933
        %v2974 = vpack.c.b16 %v2938, %v2934
        %v2975 = vpack.c.b16 %v2943, %v2939
        %v2976 = vpack.c.b16 %v2944, %v2940
        %v2977 = vpack.c.b16 %v2945, %v2941
        %v2978 = vpack.c.b16 %v2946, %v2942
        %3011 = vmatprep.subr.bf16.mxu0 %v2948
        %3012 = vmatpush1.bf16.msra.mxu0 %v2947
        %3013 = vmatprep.subr.bf16.mxu0 %v2952
        %3014 = vmatpush1.bf16.msra.mxu0 %v2951
        %3015 = vmatprep.subr.bf16.mxu0 %v2956
        %3016 = vmatpush1.bf16.msra.mxu0 %v2955
        %3017 = vmatprep.subr.bf16.mxu0 %v2960
        %3018 = vmatpush1.bf16.msra.mxu0 %v2959
        %3019 = vmatprep.subr.bf16.mxu0 %v2964
        %3020 = vmatpush1.bf16.msra.mxu0 %v2963
        %3021 = vmatprep.subr.bf16.mxu0 %v2968
        %3022 = vmatpush1.bf16.msra.mxu0 %v2967
        %3023 = vmatprep.subr.bf16.mxu0 %v2972
        %3024 = vmatpush1.bf16.msra.mxu0 %v2971
        %3025 = vmatprep.subr.bf16.mxu0 %v2976
        %3026 = vmatpush1.bf16.msra.mxu0 %v2975
        %3027 = vmatprep.subr.bf16.mxu0 0
        %3028 = vmatpush1.bf16.msra.mxu0 0
        %3029 = vmatprep.subr.bf16.mxu0 0
        %3030 = vmatpush1.bf16.msra.mxu0 0
        %3031 = vmatprep.subr.bf16.mxu0 0
        %3032 = vmatpush1.bf16.msra.mxu0 0
        %3033 = vmatprep.subr.bf16.mxu0 0
        %3034 = vmatpush1.bf16.msra.mxu0 0
        %3035 = vmatprep.subr.bf16.mxu0 0
        %3036 = vmatpush1.bf16.msra.mxu0 0
        %3037 = vmatprep.subr.bf16.mxu0 0
        %3038 = vmatpush1.bf16.msra.mxu0 0
        %3039 = vmatprep.subr.bf16.mxu0 0
        %3040 = vmatpush1.bf16.msra.mxu0 0
        %3041 = vmatprep.subr.bf16.mxu0 0
        %3042 = vmatpush1.bf16.msra.mxu0 0
        %3043 = vmatprep.mubr.bf16.mxu0 0
        %3044 = vmatmul.mubr.bf16.gmra.mrb[0].mxu0 %v2796
        %v3045 = vpop.f32.mrb[0].mxu0
        %v3046 = vadd.f32 %v2834, %v3045
        %v3047 = vpop.f32.mrb[0].mxu0
        %v3048 = vadd.f32 %v2838, %v3047
        %v3049 = vpop.f32.mrb[0].mxu0
        %v3050 = vadd.f32 %v2834, %v3049
        %v3051 = vpop.f32.mrb[0].mxu0
        %v3052 = vadd.f32 %v2838, %v3051
        %3053 = vdwg.mxu0
        %3054 = vmatprep.subr.bf16.mxu0 %v2950
        %3055 = vmatpush1.bf16.msra.mxu0 %v2949
        %3056 = vmatprep.subr.bf16.mxu0 %v2954
        %3057 = vmatpush1.bf16.msra.mxu0 %v2953
        %3058 = vmatprep.subr.bf16.mxu0 %v2958
        %3059 = vmatpush1.bf16.msra.mxu0 %v2957
        %3060 = vmatprep.subr.bf16.mxu0 %v2962
        %3061 = vmatpush1.bf16.msra.mxu0 %v2961
        %3062 = vmatprep.subr.bf16.mxu0 %v2966
        %3063 = vmatpush1.bf16.msra.mxu0 %v2965
        %3064 = vmatprep.subr.bf16.mxu0 %v2970
        %3065 = vmatpush1.bf16.msra.mxu0 %v2969
        %3066 = vmatprep.subr.bf16.mxu0 %v2974
        %3067 = vmatpush1.bf16.msra.mxu0 %v2973
        %3068 = vmatprep.subr.bf16.mxu0 %v2978
        %3069 = vmatpush1.bf16.msra.mxu0 %v2977
        %3070 = vmatprep.subr.bf16.mxu0 0
        %3071 = vmatpush1.bf16.msra.mxu0 0
        %3072 = vmatprep.subr.bf16.mxu0 0
        %3073 = vmatpush1.bf16.msra.mxu0 0
        %3074 = vmatprep.subr.bf16.mxu0 0
        %3075 = vmatpush1.bf16.msra.mxu0 0
        %3076 = vmatprep.subr.bf16.mxu0 0
        %3077 = vmatpush1.bf16.msra.mxu0 0
        %3078 = vmatprep.subr.bf16.mxu0 0
        %3079 = vmatpush1.bf16.msra.mxu0 0
        %3080 = vmatprep.subr.bf16.mxu0 0
        %3081 = vmatpush1.bf16.msra.mxu0 0
        %3082 = vmatprep.subr.bf16.mxu0 0
        %3083 = vmatpush1.bf16.msra.mxu0 0
        %3084 = vmatprep.subr.bf16.mxu0 0
        %3085 = vmatpush1.bf16.msra.mxu0 0
        %3086 = vmatprep.mubr.bf16.mxu0 0
        %3087 = vmatmul.mubr.bf16.gmra.mrb[0].mxu0 %v2796
        %v3088 = vpop.f32.mrb[0].mxu0
        %v3089 = vadd.f32 %v2842, %v3088
        %v3090 = vpop.f32.mrb[0].mxu0
        %v3091 = vadd.f32 %v2846, %v3090
        %v3092 = vpop.f32.mrb[0].mxu0
        %v3093 = vadd.f32 %v2842, %v3092
        %v3094 = vpop.f32.mrb[0].mxu0
        %v3095 = vadd.f32 %v2846, %v3094
        %3096 = vdwg.mxu0
        %v3097 = vmul.f32 %v3046, %v3046
        %v3098 = vmul.f32 %v3048, %v3048
        %v3099 = vmul.f32 %v3089, %v3089
        %v3100 = vmul.f32 %v3091, %v3091
        %v3101 = vmul.f32 %v3050, %v3050
        %v3102 = vmul.f32 %v3052, %v3052
        %v3103 = vmul.f32 %v3093, %v3093
        %v3104 = vmul.f32 %v3095, %v3095
        %v3105 = vmul.f32 %v3046, %v3097
        %v3106 = vmul.f32 %v3048, %v3098
        %v3107 = vmul.f32 %v3089, %v3099
        %v3108 = vmul.f32 %v3091, %v3100
        %v3109 = vmul.f32 %v3050, %v3101
        %v3110 = vmul.f32 %v3052, %v3102
        %v3111 = vmul.f32 %v3093, %v3103
        %v3112 = vmul.f32 %v3095, %v3104
        %v3113 = vmul.f32 %v3105, 0.044715
        %v3114 = vmul.f32 %v3106, 0.044715
        %v3115 = vmul.f32 %v3107, 0.044715
        %v3116 = vmul.f32 %v3108, 0.044715
        %v3117 = vmul.f32 %v3109, 0.044715
        %v3118 = vmul.f32 %v3110, 0.044715
        %v3119 = vmul.f32 %v3111, 0.044715
        %v3120 = vmul.f32 %v3112, 0.044715
        %v3121 = vadd.f32 %v3046, %v3113
        %v3122 = vadd.f32 %v3048, %v3114
        %v3123 = vadd.f32 %v3089, %v3115
        %v3124 = vadd.f32 %v3091, %v3116
        %v3125 = vadd.f32 %v3050, %v3117
        %v3126 = vadd.f32 %v3052, %v3118
        %v3127 = vadd.f32 %v3093, %v3119
        %v3128 = vadd.f32 %v3095, %v3120
        %v3129 = vmul.f32 %v3121, 0.7978846
        %v3130 = vmul.f32 %v3122, 0.7978846
        %v3131 = vmul.f32 %v3123, 0.7978846
        %v3132 = vmul.f32 %v3124, 0.7978846
        %v3133 = vmul.f32 %v3125, 0.7978846
        %v3134 = vmul.f32 %v3126, 0.7978846
        %v3135 = vmul.f32 %v3127, 0.7978846
        %v3136 = vmul.f32 %v3128, 0.7978846
        %v3137 = vtanh.pop %v3129
        %v3138 = vtanh.pop %v3130
        %v3139 = vtanh.pop %v3131
        %v3140 = vtanh.pop %v3132
        %v3141 = vtanh.pop %v3133
        %v3142 = vtanh.pop %v3134
        %v3143 = vtanh.pop %v3135
        %v3144 = vtanh.pop %v3136
        %v3145 = vadd.f32 %v3137, 1.0
        %v3146 = vadd.f32 %v3138, 1.0
        %v3147 = vadd.f32 %v3139, 1.0
        %v3148 = vadd.f32 %v3140, 1.0
        %v3149 = vadd.f32 %v3141, 1.0
        %v3150 = vadd.f32 %v3142, 1.0
        %v3151 = vadd.f32 %v3143, 1.0
        %v3152 = vadd.f32 %v3144, 1.0
        %v3153 = vmul.f32 %v3145, 0.5
        %v3154 = vmul.f32 %v3146, 0.5
        %v3155 = vmul.f32 %v3147, 0.5
        %v3156 = vmul.f32 %v3148, 0.5
        %v3157 = vmul.f32 %v3149, 0.5
        %v3158 = vmul.f32 %v3150, 0.5
        %v3159 = vmul.f32 %v3151, 0.5
        %v3160 = vmul.f32 %v3152, 0.5
        %v3161 = vmul.f32 %v3046, %v3153
        %v3162 = vmul.f32 %v3048, %v3154
        %v3163 = vmul.f32 %v3089, %v3155
        %v3164 = vmul.f32 %v3091, %v3156
        %v3165 = vmul.f32 %v3050, %v3157
        %v3166 = vmul.f32 %v3052, %v3158
        %v3167 = vmul.f32 %v3093, %v3159
        %v3168 = vmul.f32 %v3095, %v3160
        %v3169 = vpack.c.bf16 %v3165, %v3161
        %v3170 = vpack.c.bf16 %v3166, %v3162
        %v3171 = vpack.c.bf16 %v3167, %v3163
        %v3172 = vpack.c.bf16 %v3168, %v3164
        %v3173 = vld [vmem:[%s744] sm:$0xf]
        %v3174 = vld [vmem:[%s744 + $0x4] sm:$0xf]
        %v3175 = vld [vmem:[%s744 + $0x8] sm:$0xf]
        %v3176 = vld [vmem:[%s744 + $0xc] sm:$0xf]
        %v3177 = vld [vmem:[%s744 + $0x10] sm:$0xf]
        %v3178 = vld [vmem:[%s744 + $0x14] sm:$0xf]
        %v3179 = vld [vmem:[%s744 + $0x18] sm:$0xf]
        %v3180 = vld [vmem:[%s744 + $0x1c] sm:$0xf]
        %v3181 = vld [vmem:[%s744 + $0x20] sm:$0xf]
        %v3182 = vld [vmem:[%s744 + $0x24] sm:$0xf]
        %v3183 = vld [vmem:[%s744 + $0x28] sm:$0xf]
        %v3184 = vld [vmem:[%s744 + $0x2c] sm:$0xf]
        %v3185 = vld [vmem:[%s744 + $0x30] sm:$0xf]
        %v3186 = vld [vmem:[%s744 + $0x34] sm:$0xf]
        %v3187 = vld [vmem:[%s744 + $0x38] sm:$0xf]
        %v3188 = vld [vmem:[%s744 + $0x3c] sm:$0xf]
        %v3189 = vld [vmem:[%s744 + $0x40] sm:$0xf]
        %v3190 = vld [vmem:[%s744 + $0x44] sm:$0xf]
        %v3191 = vld [vmem:[%s744 + $0x48] sm:$0xf]
        %v3192 = vld [vmem:[%s744 + $0x4c] sm:$0xf]
        %v3193 = vld [vmem:[%s744 + $0x50] sm:$0xf]
        %v3194 = vld [vmem:[%s744 + $0x54] sm:$0xf]
        %v3195 = vld [vmem:[%s744 + $0x58] sm:$0xf]
        %v3196 = vld [vmem:[%s744 + $0x5c] sm:$0xf]
        %v3197 = vld [vmem:[%s744 + $0x60] sm:$0xf]
        %v3198 = vld [vmem:[%s744 + $0x64] sm:$0xf]
        %v3199 = vld [vmem:[%s744 + $0x68] sm:$0xf]
        %v3200 = vld [vmem:[%s744 + $0x6c] sm:$0xf]
        %v3201 = vld [vmem:[%s744 + $0x70] sm:$0xf]
        %v3202 = vld [vmem:[%s744 + $0x74] sm:$0xf]
        %v3203 = vld [vmem:[%s744 + $0x78] sm:$0xf]
        %v3204 = vld [vmem:[%s744 + $0x7c] sm:$0xf]
        %v3205 = vld [vmem:[%s744 + $0x80] sm:$0xf]
        %v3206 = vld [vmem:[%s744 + $0x84] sm:$0xf]
        %v3207 = vld [vmem:[%s744 + $0x88] sm:$0xf]
        %v3208 = vld [vmem:[%s744 + $0x8c] sm:$0xf]
        %v3209 = vld [vmem:[%s744 + $0x90] sm:$0xf]
        %v3210 = vld [vmem:[%s744 + $0x94] sm:$0xf]
        %v3211 = vld [vmem:[%s744 + $0x98] sm:$0xf]
        %v3212 = vld [vmem:[%s744 + $0x9c] sm:$0xf]
        %v3213 = vld [vmem:[%s744 + $0xa0] sm:$0xf]
        %v3214 = vld [vmem:[%s744 + $0xa4] sm:$0xf]
        %v3215 = vld [vmem:[%s744 + $0xa8] sm:$0xf]
        %v3216 = vld [vmem:[%s744 + $0xac] sm:$0xf]
        %v3217 = vld [vmem:[%s744 + $0xb0] sm:$0xf]
        %v3218 = vld [vmem:[%s744 + $0xb4] sm:$0xf]
        %v3219 = vld [vmem:[%s744 + $0xb8] sm:$0xf]
        %v3220 = vld [vmem:[%s744 + $0xbc] sm:$0xf]
        %v3221 = vld [vmem:[%s744 + $0xc0] sm:$0xf]
        %v3222 = vld [vmem:[%s744 + $0xc4] sm:$0xf]
        %v3223 = vld [vmem:[%s744 + $0xc8] sm:$0xf]
        %v3224 = vld [vmem:[%s744 + $0xcc] sm:$0xf]
        %v3225 = vld [vmem:[%s744 + $0xd0] sm:$0xf]
        %v3226 = vld [vmem:[%s744 + $0xd4] sm:$0xf]
        %v3227 = vld [vmem:[%s744 + $0xd8] sm:$0xf]
        %v3228 = vld [vmem:[%s744 + $0xdc] sm:$0xf]
        %v3229 = vld [vmem:[%s744 + $0xe0] sm:$0xf]
        %v3230 = vld [vmem:[%s744 + $0xe4] sm:$0xf]
        %v3231 = vld [vmem:[%s744 + $0xe8] sm:$0xf]
        %v3232 = vld [vmem:[%s744 + $0xec] sm:$0xf]
        %v3233 = vld [vmem:[%s744 + $0xf0] sm:$0xf]
        %v3234 = vld [vmem:[%s744 + $0xf4] sm:$0xf]
        %v3235 = vld [vmem:[%s744 + $0xf8] sm:$0xf]
        %v3236 = vld [vmem:[%s744 + $0xfc] sm:$0xf]
        %v3301 = vunpack.c.l.b16 %v3173
        %v3302 = vunpack.c.l.b16 %v3174
        %v3303 = vunpack.c.l.b16 %v3175
        %v3304 = vunpack.c.l.b16 %v3176
        %v3305 = vunpack.c.l.b16 %v3177
        %v3306 = vunpack.c.l.b16 %v3178
        %v3307 = vunpack.c.l.b16 %v3179
        %v3308 = vunpack.c.l.b16 %v3180
        %v3309 = vunpack.c.l.b16 %v3181
        %v3310 = vunpack.c.l.b16 %v3182
        %v3311 = vunpack.c.l.b16 %v3183
        %v3312 = vunpack.c.l.b16 %v3184
        %v3313 = vunpack.c.l.b16 %v3185
        %v3314 = vunpack.c.l.b16 %v3186
        %v3315 = vunpack.c.l.b16 %v3187
        %v3316 = vunpack.c.l.b16 %v3188
        %v3317 = vunpack.c.l.b16 %v3189
        %v3318 = vunpack.c.l.b16 %v3190
        %v3319 = vunpack.c.l.b16 %v3191
        %v3320 = vunpack.c.l.b16 %v3192
        %v3321 = vunpack.c.l.b16 %v3193
        %v3322 = vunpack.c.l.b16 %v3194
        %v3323 = vunpack.c.l.b16 %v3195
        %v3324 = vunpack.c.l.b16 %v3196
        %v3325 = vunpack.c.l.b16 %v3197
        %v3326 = vunpack.c.l.b16 %v3198
        %v3327 = vunpack.c.l.b16 %v3199
        %v3328 = vunpack.c.l.b16 %v3200
        %v3329 = vunpack.c.l.b16 %v3201
        %v3330 = vunpack.c.l.b16 %v3202
        %v3331 = vunpack.c.l.b16 %v3203
        %v3332 = vunpack.c.l.b16 %v3204
        %v3333 = vunpack.c.l.b16 %v3205
        %v3334 = vunpack.c.l.b16 %v3206
        %v3335 = vunpack.c.l.b16 %v3207
        %v3336 = vunpack.c.l.b16 %v3208
        %v3337 = vunpack.c.l.b16 %v3209
        %v3338 = vunpack.c.l.b16 %v3210
        %v3339 = vunpack.c.l.b16 %v3211
        %v3340 = vunpack.c.l.b16 %v3212
        %v3341 = vunpack.c.l.b16 %v3213
        %v3342 = vunpack.c.l.b16 %v3214
        %v3343 = vunpack.c.l.b16 %v3215
        %v3344 = vunpack.c.l.b16 %v3216
        %v3345 = vunpack.c.l.b16 %v3217
        %v3346 = vunpack.c.l.b16 %v3218
        %v3347 = vunpack.c.l.b16 %v3219
        %v3348 = vunpack.c.l.b16 %v3220
        %v3349 = vunpack.c.l.b16 %v3221
        %v3350 = vunpack.c.l.b16 %v3222
        %v3351 = vunpack.c.l.b16 %v3223
        %v3352 = vunpack.c.l.b16 %v3224
        %v3353 = vunpack.c.l.b16 %v3225
        %v3354 = vunpack.c.l.b16 %v3226
        %v3355 = vunpack.c.l.b16 %v3227
        %v3356 = vunpack.c.l.b16 %v3228
        %v3357 = vunpack.c.l.b16 %v3229
        %v3358 = vunpack.c.l.b16 %v3230
        %v3359 = vunpack.c.l.b16 %v3231
        %v3360 = vunpack.c.l.b16 %v3232
        %v3361 = vunpack.c.l.b16 %v3233
        %v3362 = vunpack.c.l.b16 %v3234
        %v3363 = vunpack.c.l.b16 %v3235
        %v3364 = vunpack.c.l.b16 %v3236
        %v3365 = vpack.c.b16 %v3302, %v3301
        %v3366 = vpack.c.b16 %v3304, %v3303
        %v3367 = vpack.c.b16 %v3306, %v3305
        %v3368 = vpack.c.b16 %v3308, %v3307
        %v3369 = vpack.c.b16 %v3310, %v3309
        %v3370 = vpack.c.b16 %v3312, %v3311
        %v3371 = vpack.c.b16 %v3314, %v3313
        %v3372 = vpack.c.b16 %v3316, %v3315
        %v3373 = vpack.c.b16 %v3318, %v3317
        %v3374 = vpack.c.b16 %v3320, %v3319
        %v3375 = vpack.c.b16 %v3322, %v3321
        %v3376 = vpack.c.b16 %v3324, %v3323
        %v3377 = vpack.c.b16 %v3326, %v3325
        %v3378 = vpack.c.b16 %v3328, %v3327
        %v3379 = vpack.c.b16 %v3330, %v3329
        %v3380 = vpack.c.b16 %v3332, %v3331
        %v3381 = vpack.c.b16 %v3334, %v3333
        %v3382 = vpack.c.b16 %v3336, %v3335
        %v3383 = vpack.c.b16 %v3338, %v3337
        %v3384 = vpack.c.b16 %v3340, %v3339
        %v3385 = vpack.c.b16 %v3342, %v3341
        %v3386 = vpack.c.b16 %v3344, %v3343
        %v3387 = vpack.c.b16 %v3346, %v3345
        %v3388 = vpack.c.b16 %v3348, %v3347
        %v3389 = vpack.c.b16 %v3350, %v3349
        %v3390 = vpack.c.b16 %v3352, %v3351
        %v3391 = vpack.c.b16 %v3354, %v3353
        %v3392 = vpack.c.b16 %v3356, %v3355
        %v3393 = vpack.c.b16 %v3358, %v3357
        %v3394 = vpack.c.b16 %v3360, %v3359
        %v3395 = vpack.c.b16 %v3362, %v3361
        %v3396 = vpack.c.b16 %v3364, %v3363
        %3429 = vmatprep.subr.bf16.mxu0 0
        %3430 = vmatpush1.bf16.msra.mxu0 %v3365
        %3431 = vmatprep.subr.bf16.mxu0 0
        %3432 = vmatpush1.bf16.msra.mxu0 %v3366
        %3433 = vmatprep.subr.bf16.mxu0 0
        %3434 = vmatpush1.bf16.msra.mxu0 %v3367
        %3435 = vmatprep.subr.bf16.mxu0 0
        %3436 = vmatpush1.bf16.msra.mxu0 %v3368
        %3437 = vmatprep.subr.bf16.mxu0 0
        %3438 = vmatpush1.bf16.msra.mxu0 %v3369
        %3439 = vmatprep.subr.bf16.mxu0 0
        %3440 = vmatpush1.bf16.msra.mxu0 %v3370
        %3441 = vmatprep.subr.bf16.mxu0 0
        %3442 = vmatpush1.bf16.msra.mxu0 %v3371
        %3443 = vmatprep.subr.bf16.mxu0 0
        %3444 = vmatpush1.bf16.msra.mxu0 %v3372
        %3445 = vmatprep.subr.bf16.mxu0 0
        %3446 = vmatpush1.bf16.msra.mxu0 %v3373
        %3447 = vmatprep.subr.bf16.mxu0 0
        %3448 = vmatpush1.bf16.msra.mxu0 %v3374
        %3449 = vmatprep.subr.bf16.mxu0 0
        %3450 = vmatpush1.bf16.msra.mxu0 %v3375
        %3451 = vmatprep.subr.bf16.mxu0 0
        %3452 = vmatpush1.bf16.msra.mxu0 %v3376
        %3453 = vmatprep.subr.bf16.mxu0 0
        %3454 = vmatpush1.bf16.msra.mxu0 %v3377
        %3455 = vmatprep.subr.bf16.mxu0 0
        %3456 = vmatpush1.bf16.msra.mxu0 %v3378
        %3457 = vmatprep.subr.bf16.mxu0 0
        %3458 = vmatpush1.bf16.msra.mxu0 %v3379
        %3459 = vmatprep.subr.bf16.mxu0 0
        %3460 = vmatpush1.bf16.msra.mxu0 %v3380
        %3461 = vmatprep.mubr.bf16.mxu0 %v3170
        %3462 = vmatmul.mubr.bf16.gmra.mrb[0].mxu0 %v3169
        %v3463 = vpop.f32.mrb[0].mxu0
        %v3464 = vadd.f32 0.0, %v3463
        %v3465 = vpop.f32.mrb[0].mxu0
        %v3466 = vpop.f32.mrb[0].mxu0
        %v3467 = vadd.f32 0.0, %v3466
        %v3468 = vpop.f32.mrb[0].mxu0
        %3469 = vdwg.mxu0
        %3470 = vmatprep.subr.bf16.mxu0 0
        %3471 = vmatpush1.bf16.msra.mxu0 %v3381
        %3472 = vmatprep.subr.bf16.mxu0 0
        %3473 = vmatpush1.bf16.msra.mxu0 %v3382
        %3474 = vmatprep.subr.bf16.mxu0 0
        %3475 = vmatpush1.bf16.msra.mxu0 %v3383
        %3476 = vmatprep.subr.bf16.mxu0 0
        %3477 = vmatpush1.bf16.msra.mxu0 %v3384
        %3478 = vmatprep.subr.bf16.mxu0 0
        %3479 = vmatpush1.bf16.msra.mxu0 %v3385
        %3480 = vmatprep.subr.bf16.mxu0 0
        %3481 = vmatpush1.bf16.msra.mxu0 %v3386
        %3482 = vmatprep.subr.bf16.mxu0 0
        %3483 = vmatpush1.bf16.msra.mxu0 %v3387
        %3484 = vmatprep.subr.bf16.mxu0 0
        %3485 = vmatpush1.bf16.msra.mxu0 %v3388
        %3486 = vmatprep.subr.bf16.mxu0 0
        %3487 = vmatpush1.bf16.msra.mxu0 %v3389
        %3488 = vmatprep.subr.bf16.mxu0 0
        %3489 = vmatpush1.bf16.msra.mxu0 %v3390
        %3490 = vmatprep.subr.bf16.mxu0 0
        %3491 = vmatpush1.bf16.msra.mxu0 %v3391
        %3492 = vmatprep.subr.bf16.mxu0 0
        %3493 = vmatpush1.bf16.msra.mxu0 %v3392
        %3494 = vmatprep.subr.bf16.mxu0 0
        %3495 = vmatpush1.bf16.msra.mxu0 %v3393
        %3496 = vmatprep.subr.bf16.mxu0 0
        %3497 = vmatpush1.bf16.msra.mxu0 %v3394
        %3498 = vmatprep.subr.bf16.mxu0 0
        %3499 = vmatpush1.bf16.msra.mxu0 %v3395
        %3500 = vmatprep.subr.bf16.mxu0 0
        %3501 = vmatpush1.bf16.msra.mxu0 %v3396
        %3502 = vmatprep.mubr.bf16.mxu0 %v3172
        %3503 = vmatmul.mubr.bf16.gmra.mrb[0].mxu0 %v3171
        %v3504 = vpop.f32.mrb[0].mxu0
        %v3505 = vadd.f32 %v3464, %v3504
        %v3506 = vpop.f32.mrb[0].mxu0
        %v3507 = vpop.f32.mrb[0].mxu0
        %v3508 = vadd.f32 %v3467, %v3507
        %v3509 = vpop.f32.mrb[0].mxu0
        %3510 = vdwg.mxu0
        %v3511 = vadd.f32 %v2754, %v3505
        %v3512 = vadd.f32 %v2755, %v3508
        %v3513 = vld [vmem:[%s747] sm:$0x1]
        %v3515 = vlaneseq
        %v3516 = vshrl.u32 %v3515, 7
        %v3517 = vsub.s32 0, %v3516
        %v3518 = vrot.slane %v3513, %v3517
        %v3520 = vadd.f32 %v3511, %v3518
        %v3521 = vadd.f32 %v3512, %v3518
        %3522 = vst [vmem:[#allocation2] sm:$0xff] %v3520
        %3523 = vst [vmem:[#allocation2 + $0x8] sm:$0xff] %v3521
        %p3524 = scmp.eq.s32.totalorder %s33, 1
        // Predicated region
        $region101: #{cradio_v2_summary.1} parent=87 // pred_check
          %p3525 = pneg %p3524
        $region102: #{cradio_v2_summary.1} parent=87 // pred_check_branch
          %3527 = sbr.rel (%p3525) target = $region104
        $region103: #{cradio_v2_summary.1} parent=87 // pred_region
          %v3528 = vld [vmem:[%s3] sm:$0x1]
          %v3529 = vld [vmem:[%s4] sm:$0x1]
          %v3532 = vrot.slane %v3521, 7
          %vm3533 = vcmask 1041409
          %v3534 = vsel %vm3533, %v3532, %v3520
          %vm3536 = vcmask 1041408
          %v3537 = vsel %vm3536, %v3534, 0.0
          %3538 = vadd.xlane.f32.xlu0 %v3537
          %v3539 = vpop.xlane.xlu0 %3538
          %v3540 = vmul.f32 %v3539, %v1309
          %v3542 = vrot.slane %v3540, 1
          %v3545 = vsub.f32 %v3520, %v3540
          %v3546 = vsub.f32 %v3521, %v3542
          %v3547 = vmul.f32 %v3545, %v3545
          %v3548 = vmul.f32 %v3546, %v3546
          %v3551 = vrot.slane %v3548, 7
          %v3552 = vsel %vm3533, %v3551, %v3547
          %v3554 = vsel %vm3536, %v3552, 0.0
          %3555 = vadd.xlane.f32.xlu0 %v3554
          %v3556 = vpop.xlane.xlu0 %3555
          %v3557 = vmul.f32 %v3556, %v1309
          %v3558 = vadd.f32 %v3557, 1e-06
          %v3559 = vrsqrt.pop %v3558
          %v3561 = vrot.slane %v3559, 1
          %v3564 = vmul.f32 %v3545, %v3559
          %v3565 = vmul.f32 %v3546, %v3561
          %v3567 = vlaneseq
          %v3568 = vshrl.u32 %v3567, 7
          %v3569 = vsub.s32 0, %v3568
          %v3570 = vrot.slane %v3528, %v3569
          %v3572 = vmul.f32 %v3564, %v3570
          %v3573 = vmul.f32 %v3565, %v3570
          %v3575 = vlaneseq
          %v3576 = vshrl.u32 %v3575, 7
          %v3577 = vsub.s32 0, %v3576
          %v3578 = vrot.slane %v3529, %v3577
          %v3580 = vadd.f32 %v3572, %v3578
          %v3581 = vadd.f32 %v3573, %v3578
          %v3584 = vrot.slane %v3581, 7
          %v3585 = vsel %vm3533, %v3584, %v3580
          %3587 = vst [vmem:[#allocation8] sm:$0x3] %v3585
        $region104: #{cradio_v2_summary.1} parent=87 // pred_fallthru
          _
        // Predicated region
        $region105: #{cradio_v2_summary.1} parent=87 // pred_check
          %p3588 = pneg %p463
        $region106: #{cradio_v2_summary.1} parent=87 // pred_check_branch
          %3590 = sbr.rel (%p3588) target = $region108
        $region107: #{cradio_v2_summary.1} parent=87 // pred_region
          %s3592 = ssub.s32 32, 32
          %3593 = vsyncadd [#allocation5], %s3592
          %s3595 = sshll.u32 [#allocation8], 4
          %s3596 = int_to_ptr.vmem [resolvable:$true] %s3595
          %3598 = dma.vmem_to_hbm [thread:$0]  %s3596, 32, %s17, [#allocation5]
        $region108: #{cradio_v2_summary.1} parent=87 // pred_fallthru
          _
        // Predicated region
        $region109: #{cradio_v2_summary.1} parent=87 // pred_check
          %p3599 = pneg %p463
        $region110: #{cradio_v2_summary.1} parent=87 // pred_check_branch
          %3601 = sbr.rel (%p3599) target = $region112
        $region111: #{cradio_v2_summary.1} parent=87 // pred_region
          %3602 = dma.done [#allocation5], 32
        $region112: #{cradio_v2_summary.1} parent=87 // pred_fallthru
          _
      $region88: #{cradio_v2_summary.1} parent=5 // pred_fallthru
        _
      %p3603 = scmp.le.s32.totalorder 2, %s28
      // Predicated region
      $region113: #{cradio_v2_summary.1} parent=5 // pred_check
        %p3604 = pneg %p3603
      $region114: #{cradio_v2_summary.1} parent=5 // pred_check_branch
        %3606 = sbr.rel (%p3604) target = $region116
      $region115: #{cradio_v2_summary.1} parent=5 // pred_region
        %s3607 = ssub.s32 %s28, 2
      $region116: #{cradio_v2_summary.1} parent=5 // pred_fallthru
        _
    $region6: #{cradio_v2_summary.1} parent=1 // loop_footer
      %s32 = sadd.s32 1, %s28
    $region7: #{cradio_v2_summary.1} parent=1 // loop_footer_branch
      %27 = sbr.rel target = $region3
    $region8: #{cradio_v2_summary.1} parent=1 // loop_exit
      _
    %3608 = vsyncpa [#allocation4], 1
    %s3609 = scalar_lea.sflag [#allocation4], 1
    %3610 = vsyncpa %s3609, 1
    %3611 = vsyncpa [#allocation7], 1
    %s3612 = scalar_lea.sflag [#allocation7], 1
    %3613 = vsyncpa %s3612, 1
    %3614 = vsyncpa [#allocation5], 1
    %s3615 = scalar_lea.sflag [#allocation5], 1
    %3616 = vsyncpa %s3615, 1

</llo_original>
